<compile_context>
chip_gen: v7x
topology: tpu7x:2x2x1
jax: 0.10.0
libtpu: 0.0.40
codegen_flags: <defaults>
</compile_context>

<pallas_src>
import jax
import jax.numpy as jnp
import numpy as np
from jax import lax
from jax.experimental import pallas as pl
from jax.experimental.pallas import tpu as pltpu

EPS = 1e-5


def _make_kernel(H, dk, TQ, TK, D, F):
    dh = dk // 2

    def rms(v, g):
        return v * lax.rsqrt(jnp.mean(v * v, axis=-1, keepdims=True) + EPS) * g

    def rope(t, c, s):
        # rotate-half convention; Wq/Wk output columns were pre-permuted in the wrapper so this
        # is numerically identical to the PyTorch interleaved-pair convention.
        t1 = t[..., :dh]
        t2 = t[..., dh:]
        return jnp.concatenate([t1 * c - t2 * s, t2 * c + t1 * s], axis=-1)

    def kernel(xq_ref, xkv_ref, wqt_ref, wkvt_ref, wot_ref, g1_ref, g2_ref,
               w13t_ref, w2t_ref, cos_ref, sin_ref, o_ref):
        qi = pl.program_id(1)
        q_start = pl.multiple_of(qi * TQ, TQ)

        x_q = xq_ref[...]                                  # (TQ, D) f32
        g1 = g1_ref[...]

        # ---- RMSNorm1 + Q projection (1/sqrt(dk) already folded into wqt) + RoPE ----
        hq = rms(x_q, g1).astype(jnp.bfloat16)
        q = jnp.dot(hq, wqt_ref[...], preferred_element_type=jnp.float32)   # (TQ, D)
        q = jnp.swapaxes(q.reshape(TQ, H, dk), 0, 1)                        # (H, TQ, dk)
        cos_q = cos_ref[pl.ds(q_start, TQ), :][None]                        # (1, TQ, dk/2)
        sin_q = sin_ref[pl.ds(q_start, TQ), :][None]
        q16 = rope(q, cos_q, sin_q).astype(jnp.bfloat16)

        q_pos = q_start + lax.broadcasted_iota(jnp.int32, (TQ, TK), 0)      # (TQ, TK)
        wkvt = wkvt_ref[...]                                                # (D, 2D) bf16

        # ---- flash attention: loop over the causally-needed KV tiles only ----
        def kv_step(ki, carry):
            m, l, acc = carry
            k_start = pl.multiple_of(ki * TK, TK)
            xk = xkv_ref[pl.ds(k_start, TK), :]                             # (TK, D) f32
            hkv = rms(xk, g1).astype(jnp.bfloat16)
            kv = jnp.dot(hkv, wkvt, preferred_element_type=jnp.float32)     # (TK, 2D) f32
            k = jnp.swapaxes(kv[:, :D].reshape(TK, H, dk), 0, 1)            # (H, TK, dk)
            v16 = jnp.swapaxes(kv[:, D:].reshape(TK, H, dk), 0, 1).astype(jnp.bfloat16)
            cos_k = cos_ref[pl.ds(k_start, TK), :][None]
            sin_k = sin_ref[pl.ds(k_start, TK), :][None]
            k16 = rope(k, cos_k, sin_k).astype(jnp.bfloat16)

            s = jnp.einsum("hqd,hkd->hqk", q16, k16,
                           preferred_element_type=jnp.float32)              # (H, TQ, TK)
            k_pos = k_start + lax.broadcasted_iota(jnp.int32, (TQ, TK), 1)
            s = jnp.where((q_pos >= k_pos)[None], s, -1e30)

            m_new = jnp.maximum(m, jnp.max(s, axis=-1, keepdims=True))
            alpha = jnp.exp(m - m_new)
            p = jnp.exp(s - m_new)
            l_new = alpha * l + jnp.sum(p, axis=-1, keepdims=True)
            acc_new = alpha * acc + jnp.einsum(
                "hqk,hkd->hqd", p.astype(jnp.bfloat16), v16,
                preferred_element_type=jnp.float32)
            return m_new, l_new, acc_new

        m0 = jnp.full((H, TQ, 1), -1e30, jnp.float32)
        l0 = jnp.zeros((H, TQ, 1), jnp.float32)
        a0 = jnp.zeros((H, TQ, dk), jnp.float32)
        # KV tiles with index > qi are fully masked (TK == TQ), so they are skipped entirely.
        m, l, acc = lax.fori_loop(0, qi + 1, kv_step, (m0, l0, a0))

        # normalize AFTER the PV matmul (EUP reciprocal, O(H*TQ*dk) multiply)
        o = acc * pl.reciprocal(l, approx=True)
        attn = jnp.swapaxes(o, 0, 1).reshape(TQ, D).astype(jnp.bfloat16)
        y = x_q + jnp.dot(attn, wot_ref[...], preferred_element_type=jnp.float32)

        # ---- RMSNorm2 + SwiGLU (fused W1/W3 matmul) ----
        h2 = rms(y, g2_ref[...]).astype(jnp.bfloat16)
        ab = jnp.dot(h2, w13t_ref[...], preferred_element_type=jnp.float32)  # (TQ, 2F)
        a = ab[:, :F]
        b = ab[:, F:]
        gated = (a * jax.nn.sigmoid(a) * b).astype(jnp.bfloat16)
        ff = jnp.dot(gated, w2t_ref[...], preferred_element_type=jnp.float32)
        o_ref[...] = y + ff                                # single lane-dense epilogue store

    return kernel


def _pick_tile(S):
    for cand in (256, 128, 64, 32, 16, 8):
        if S >= cand and S % cand == 0:
            return cand
    return S


def transformer_block(x, params, cos_half, sin_half, *, q_tile=None, vmem_limit_bytes=None):
    B, S, D = x.shape
    dh = cos_half.shape[1]
    dk = 2 * dh
    H = D // dk
    F = params["w13t"].shape[1] // 2

    TQ = TK = q_tile if q_tile is not None else _pick_tile(S)
    assert S % TQ == 0, "sequence length must be a multiple of the query tile"
    n_q = S // TQ

    if vmem_limit_bytes is None:
        try:
            cap = pltpu.get_tpu_info().vmem_capacity_bytes
            vmem_limit_bytes = min(cap * 3 // 4, 100 * 1024 * 1024)   # ~48 MiB v7x, ~96 MiB v5e/v6e
        except Exception:
            vmem_limit_bytes = 64 * 1024 * 1024

    # ---- peak-VMEM estimate: resident weights (conservatively x2), pipeline blocks,
    #      and the per-step in-kernel temporaries (score-class tensors counted ~4x) ----
    weight_arrays = [params[k] for k in ("wqt", "wkvt", "wot", "w13t", "w2t", "g1", "g2")]
    weight_arrays += [cos_half, sin_half]
    weight_bytes = sum(int(np.prod(a.shape)) * a.dtype.itemsize for a in weight_arrays)
    pipeline_bytes = 2 * (2 * TQ * D * 4) + 2 * (S * D * 4)
    tmp_bytes = (4 * H * TQ * TK * 4
                 + 6 * H * TQ * dk * 4 + 4 * H * TK * dk * 4
                 + 3 * TQ * 2 * F * 4 + 6 * TQ * D * 4)
    assert 2 * weight_bytes + pipeline_bytes + tmp_bytes < vmem_limit_bytes, \
        "estimated peak VMEM exceeds the scoped limit: shrink q_tile or split the FFN"

    kernel = _make_kernel(H, dk, TQ, TK, D, F)

    def run(single_buffer_weights):
        def const_spec(shape):
            nd = len(shape)

            def idx(b, q):
                return (0,) * nd

            if single_buffer_weights:
                return pl.BlockSpec(shape, idx, pipeline_mode=pl.Buffered(1))
            return pl.BlockSpec(shape, idx)

        grid_spec = pltpu.PrefetchScalarGridSpec(
            num_scalar_prefetch=0,
            grid=(B, n_q),
            in_specs=[
                pl.BlockSpec((None, TQ, D), lambda b, q: (b, q, 0)),   # x: query tile
                pl.BlockSpec((None, S, D), lambda b, q: (b, 0, 0)),    # x: full seq (K/V source)
                const_spec((D, D)),          # WqT (scaled, rope-permuted), bf16
                const_spec((D, 2 * D)),      # [WkT | WvT] fused, bf16
                const_spec((D, D)),          # WoT, bf16
                const_spec((1, D)),          # RMSNorm1 gain (f32)
                const_spec((1, D)),          # RMSNorm2 gain (f32)
                const_spec((D, 2 * F)),      # [W1T | W3T] fused, bf16
                const_spec((F, D)),          # W2T, bf16
                const_spec((S, dh)),         # RoPE cos (half width)
                const_spec((S, dh)),         # RoPE sin (half width)
            ],
            out_specs=pl.BlockSpec((None, TQ, D), lambda b, q: (b, q, 0)),
        )
        return pl.pallas_call(
            kernel,
            out_shape=jax.ShapeDtypeStruct((B, S, D), jnp.float32),
            grid_spec=grid_spec,
            compiler_params=pltpu.CompilerParams(
                dimension_semantics=("parallel", "parallel"),
                vmem_limit_bytes=vmem_limit_bytes),
        )(x, x, params["wqt"], params["wkvt"], params["wot"],
          params["g1"], params["g2"], params["w13t"], params["w2t"],
          cos_half, sin_half)

    try:
        # constant-index weights only ever need one VMEM buffer
        return run(single_buffer_weights=True)
    except Exception:
        # fallback for jax versions that reject pipeline_mode=pl.Buffered(1)
        return run(single_buffer_weights=False)


def reference(x, p, cos, sin, rot, num_heads, d_k):
    """Pure-f32 JAX reference mirroring the PyTorch forward semantics
    (interleaved-pair RoPE, unpermuted / unfused weights)."""
    def rms(v, g):
        return v * lax.rsqrt(jnp.mean(v * v, axis=-1, keepdims=True) + EPS) * g

    B, S, D = x.shape
    h = rms(x, p["g1"])
    q = h @ p["wqt"]
    k = h @ p["wkt"]
    v = h @ p["wvt"]

    def split(t):
        return t.reshape(B, S, num_heads, d_k).transpose(0, 2, 1, 3)

    q, k, vv = split(q), split(k), split(v)

    def rope(t):
        return t * cos + (t @ rot) * sin

    q, k = rope(q), rope(k)
    s = jnp.einsum("bhqd,bhkd->bhqk", q, k) / (float(d_k) ** 0.5)
    mask = jnp.tril(jnp.ones((S, S), dtype=bool))
    s = jnp.where(mask, s, -1e30)
    pa = jax.nn.softmax(s, axis=-1)
    o = jnp.einsum("bhqk,bhkd->bhqd", pa, vv).transpose(0, 2, 1, 3).reshape(B, S, D)
    y = x + o @ p["wot"]
    h2 = rms(y, p["g2"])
    a = h2 @ p["w1t"]
    b = h2 @ p["w3t"]
    return y + (a * jax.nn.sigmoid(a) * b) @ p["w2t"]


if __name__ == "__main__":
    # Small shapes consistent with the module's forward.
    B, S, D, H, F = 2, 8, 32, 4, 64
    dk = D // H
    theta = 10000.0

    key = jax.random.PRNGKey(0)
    ks = jax.random.split(key, 10)
    sc = 0.02
    wq = sc * jax.random.normal(ks[0], (D, D), jnp.float32)   # (out, in) like nn.Linear
    wk = sc * jax.random.normal(ks[1], (D, D), jnp.float32)
    wv = sc * jax.random.normal(ks[2], (D, D), jnp.float32)
    wo = sc * jax.random.normal(ks[3], (D, D), jnp.float32)
    w1 = sc * jax.random.normal(ks[4], (F, D), jnp.float32)   # ffn.w1: d_model -> d_ff
    w2 = sc * jax.random.normal(ks[5], (D, F), jnp.float32)   # ffn.w2: d_ff -> d_model
    w3 = sc * jax.random.normal(ks[6], (F, D), jnp.float32)   # ffn.w3: d_model -> d_ff
    g1 = 1.0 + 0.1 * jax.random.normal(ks[7], (1, D), jnp.float32)
    g2 = 1.0 + 0.1 * jax.random.normal(ks[8], (1, D), jnp.float32)
    x = jax.random.normal(ks[9], (B, S, D), jnp.float32)

    # RoPE tables (max_seq_len == S here).
    pos = jnp.arange(S, dtype=jnp.float32)
    inv_freq = theta ** (-jnp.arange(0, dk, 2, dtype=jnp.float32) / dk)   # (dk/2,)
    ang = pos[:, None] * inv_freq[None, :]                                 # (S, dk/2)
    cos_half, sin_half = jnp.cos(ang), jnp.sin(ang)                        # kernel tables

    # Interleaved-convention tables for the pure-f32 reference.
    cos_rep = jnp.repeat(cos_half, 2, axis=-1)                             # (S, dk)
    sin_rep = jnp.repeat(sin_half, 2, axis=-1)
    idx = jnp.arange(0, dk, 2)
    rot = jnp.zeros((dk, dk), jnp.float32)
    rot = rot.at[idx + 1, idx].set(-1.0)   # out[2i]   gets -x[2i+1]
    rot = rot.at[idx, idx + 1].set(1.0)    # out[2i+1] gets  x[2i]

    # Kernel weights: fold interleaved -> rotate-half permutation into Wq/Wk output columns,
    # fold 1/sqrt(dk) into Wq, fuse K/V and W1/W3, pre-transpose, cast matmul weights to bf16.
    head_perm = np.concatenate([np.arange(0, dk, 2), np.arange(1, dk, 2)])
    row_perm = (np.arange(H)[:, None] * dk + head_perm[None, :]).reshape(-1)
    bf16 = jnp.bfloat16
    scale = 1.0 / float(dk) ** 0.5
    krn_params = {
        "wqt": (wq[row_perm, :].T * scale).astype(bf16),
        "wkvt": jnp.concatenate([wk[row_perm, :].T, wv.T], axis=1).astype(bf16),
        "wot": wo.T.astype(bf16),
        "w13t": jnp.concatenate([w1.T, w3.T], axis=1).astype(bf16),
        "w2t": w2.T.astype(bf16),
        "g1": g1, "g2": g2,
    }
    ref_params = {
        "wqt": wq.T, "wkt": wk.T, "wvt": wv.T, "wot": wo.T,
        "w1t": w1.T, "w2t": w2.T, "w3t": w3.T,
        "g1": g1, "g2": g2,
    }

    out = jax.block_until_ready(transformer_block(x, krn_params, cos_half, sin_half))
    ref = reference(x, ref_params, cos_rep, sin_rep, rot, H, dk)

    assert out.shape == (B, S, D)
    max_diff = float(jnp.max(jnp.abs(out - ref)))
    # bf16 matmul operands + approx reciprocal vs. a pure-f32 reference -> loose-ish tolerance.
    assert jnp.allclose(out, ref, atol=2e-2, rtol=2e-2), f"max abs diff {max_diff}"

    print("KERNEL_OK")
</pallas_src>

<mosaic_0001>
module attributes {stable_mosaic.version = 11 : i64} {
  func.func @kernel(%arg0: i32, %arg1: i32, %arg2: memref<1x8x32xf32, #tpu.memory_space<vmem>>, %arg3: memref<1x8x32xf32, #tpu.memory_space<vmem>>, %arg4: memref<32x32xbf16, #tpu.memory_space<vmem>>, %arg5: memref<32x64xbf16, #tpu.memory_space<vmem>>, %arg6: memref<32x32xbf16, #tpu.memory_space<vmem>>, %arg7: memref<1x32xf32, #tpu.memory_space<vmem>>, %arg8: memref<1x32xf32, #tpu.memory_space<vmem>>, %arg9: memref<32x128xbf16, #tpu.memory_space<vmem>>, %arg10: memref<64x32xbf16, #tpu.memory_space<vmem>>, %arg11: memref<8x4xf32, #tpu.memory_space<vmem>>, %arg12: memref<8x4xf32, #tpu.memory_space<vmem>>, %arg13: memref<1x8x32xf32, #tpu.memory_space<vmem>>) attributes {dimension_semantics = [#tpu.dimension_semantics<parallel>, #tpu.dimension_semantics<parallel>], iteration_bounds = array<i64: 2, 1>, scalar_prefetch = 0 : i64, scratch_operands = 0 : i64, tpu.core_type = #tpu.core_type<tc>, window_params = [{transform_indices = @transform_0, window_bounds = array<i64: 1, 8, 32>}, {transform_indices = @transform_1, window_bounds = array<i64: 1, 8, 32>}, {pipeline_mode = #tpu.pipeline_mode<synchronous>, transform_indices = @transform_2, window_bounds = array<i64: 32, 32>}, {pipeline_mode = #tpu.pipeline_mode<synchronous>, transform_indices = @transform_3, window_bounds = array<i64: 32, 64>}, {pipeline_mode = #tpu.pipeline_mode<synchronous>, transform_indices = @transform_4, window_bounds = array<i64: 32, 32>}, {pipeline_mode = #tpu.pipeline_mode<synchronous>, transform_indices = @transform_5, window_bounds = array<i64: 1, 32>}, {pipeline_mode = #tpu.pipeline_mode<synchronous>, transform_indices = @transform_6, window_bounds = array<i64: 1, 32>}, {pipeline_mode = #tpu.pipeline_mode<synchronous>, transform_indices = @transform_7, window_bounds = array<i64: 32, 128>}, {pipeline_mode = #tpu.pipeline_mode<synchronous>, transform_indices = @transform_8, window_bounds = array<i64: 64, 32>}, {pipeline_mode = #tpu.pipeline_mode<synchronous>, transform_indices = @transform_9, window_bounds = array<i64: 8, 4>}, {pipeline_mode = #tpu.pipeline_mode<synchronous>, transform_indices = @transform_10, window_bounds = array<i64: 8, 4>}, {transform_indices = @transform_11, window_bounds = array<i64: 1, 8, 32>}]} {
    %c8_i32 = arith.constant 8 : i32
    %0 = arith.muli %arg1, %c8_i32 : i32
    %1 = tpu.assume_multiple %0, 8 : i32
    %c0 = arith.constant 0 : index
    %c0_0 = arith.constant 0 : index
    %c0_1 = arith.constant 0 : index
    %2 = vector.load %arg2[%c0, %c0_0, %c0_1] : memref<1x8x32xf32, #tpu.memory_space<vmem>>, vector<1x8x32xf32>
    %3 = vector.shape_cast %2 : vector<1x8x32xf32> to vector<8x32xf32>
    %c0_2 = arith.constant 0 : index
    %c0_3 = arith.constant 0 : index
    %4 = vector.load %arg7[%c0_2, %c0_3] : memref<1x32xf32, #tpu.memory_space<vmem>>, vector<1x32xf32>
    %5 = arith.mulf %3, %3 : vector<8x32xf32>
    %cst = arith.constant dense<0.000000e+00> : vector<8xf32>
    %6 = vector.multi_reduction <add>, %5, %cst [1] : vector<8x32xf32> to vector<8xf32>
    %7 = vector.shape_cast %6 : vector<8xf32> to vector<8x1xf32>
    %cst_4 = arith.constant 3.200000e+01 : f32
    %8 = vector.broadcast %cst_4 : f32 to vector<8x1xf32>
    %9 = arith.divf %7, %8 : vector<8x1xf32>
    %cst_5 = arith.constant 9.99999974E-6 : f32
    %10 = vector.broadcast %cst_5 : f32 to vector<8x1xf32>
    %11 = arith.addf %9, %10 : vector<8x1xf32>
    %12 = math.rsqrt %11 : vector<8x1xf32>
    %13 = vector.broadcast %12 : vector<8x1xf32> to vector<8x32xf32>
    %14 = arith.mulf %3, %13 : vector<8x32xf32>
    %15 = vector.broadcast %4 : vector<1x32xf32> to vector<8x32xf32>
    %16 = arith.mulf %14, %15 : vector<8x32xf32>
    %17 = arith.truncf %16 : vector<8x32xf32> to vector<8x32xbf16>
    %c0_6 = arith.constant 0 : index
    %c0_7 = arith.constant 0 : index
    %18 = vector.load %arg4[%c0_6, %c0_7] : memref<32x32xbf16, #tpu.memory_space<vmem>>, vector<32x32xbf16>
    %cst_8 = arith.constant dense<0.000000e+00> : vector<8x32xf32>
    %19 = tpu.matmul %17, %18, %cst_8 {dimension_numbers = #tpu.dot_dimension_numbers<[1], [0], [0], [1], [0, 0, 1, 1], [], []>} : vector<8x32xbf16>, vector<32x32xbf16>, vector<8x32xf32> -> vector<8x32xf32>
    %20 = vector.shape_cast %19 : vector<8x32xf32> to vector<8x4x8xf32>
    %21 = tpu.transpose %20, [1, 0, 2] : vector<8x4x8xf32> -> vector<4x8x8xf32>
    %22 = arith.index_cast %1 : i32 to index
    %c0_9 = arith.constant 0 : index
    %23 = vector.load %arg11[%22, %c0_9] : memref<8x4xf32, #tpu.memory_space<vmem>>, vector<8x4xf32>
    %24 = vector.shape_cast %23 : vector<8x4xf32> to vector<1x8x4xf32>
    %25 = arith.index_cast %1 : i32 to index
    %c0_10 = arith.constant 0 : index
    %26 = vector.load %arg12[%25, %c0_10] : memref<8x4xf32, #tpu.memory_space<vmem>>, vector<8x4xf32>
    %27 = vector.shape_cast %26 : vector<8x4xf32> to vector<1x8x4xf32>
    %28 = vector.extract_strided_slice %21 {offsets = [0, 0, 0], sizes = [4, 8, 4], strides = [1, 1, 1]} : vector<4x8x8xf32> to vector<4x8x4xf32>
    %29 = vector.extract_strided_slice %21 {offsets = [0, 0, 4], sizes = [4, 8, 4], strides = [1, 1, 1]} : vector<4x8x8xf32> to vector<4x8x4xf32>
    %30 = vector.broadcast %24 : vector<1x8x4xf32> to vector<4x8x4xf32>
    %31 = arith.mulf %28, %30 : vector<4x8x4xf32>
    %32 = vector.broadcast %27 : vector<1x8x4xf32> to vector<4x8x4xf32>
    %33 = arith.mulf %29, %32 : vector<4x8x4xf32>
    %34 = arith.subf %31, %33 : vector<4x8x4xf32>
    %35 = vector.broadcast %24 : vector<1x8x4xf32> to vector<4x8x4xf32>
    %36 = arith.mulf %29, %35 : vector<4x8x4xf32>
    %37 = vector.broadcast %27 : vector<1x8x4xf32> to vector<4x8x4xf32>
    %38 = arith.mulf %28, %37 : vector<4x8x4xf32>
    %39 = arith.addf %36, %38 : vector<4x8x4xf32>
    %40 = tpu.concatenate %34, %39 in 2 : vector<4x8x4xf32>, vector<4x8x4xf32> -> vector<4x8x8xf32>
    %41 = arith.truncf %40 : vector<4x8x8xf32> to vector<4x8x8xbf16>
    %42 = tpu.iota {dimensions = array<i32: 0>} : vector<8x8xi32>
    %43 = vector.broadcast %1 : i32 to vector<8x8xi32>
    %44 = arith.addi %43, %42 : vector<8x8xi32>
    %c0_11 = arith.constant 0 : index
    %c0_12 = arith.constant 0 : index
    %45 = vector.load %arg5[%c0_11, %c0_12] : memref<32x64xbf16, #tpu.memory_space<vmem>>, vector<32x64xbf16>
    %cst_13 = arith.constant -1.000000e+30 : f32
    %46 = vector.broadcast %cst_13 : f32 to vector<4x8x1xf32>
    %cst_14 = arith.constant 0.000000e+00 : f32
    %47 = vector.broadcast %cst_14 : f32 to vector<4x8x1xf32>
    %cst_15 = arith.constant 0.000000e+00 : f32
    %48 = vector.broadcast %cst_15 : f32 to vector<4x8x8xf32>
    %c1_i32 = arith.constant 1 : i32
    %49 = arith.addi %arg1, %c1_i32 : i32
    %c0_i32 = arith.constant 0 : i32
    %50 = arith.subi %49, %c0_i32 : i32
    %51 = arith.addi %c0_i32, %50 : i32
    %c1_i32_16 = arith.constant 1 : i32
    %52:3 = scf.for %arg14 = %c0_i32 to %51 step %c1_i32_16 iter_args(%arg15 = %46, %arg16 = %47, %arg17 = %48) -> (vector<4x8x1xf32>, vector<4x8x1xf32>, vector<4x8x8xf32>)  : i32 {
      %c8_i32_35 = arith.constant 8 : i32
      %94 = arith.muli %arg14, %c8_i32_35 : i32
      %95 = tpu.assume_multiple %94, 8 : i32
      %c0_36 = arith.constant 0 : index
      %96 = arith.index_cast %95 : i32 to index
      %c0_37 = arith.constant 0 : index
      %97 = vector.load %arg3[%c0_36, %96, %c0_37] : memref<1x8x32xf32, #tpu.memory_space<vmem>>, vector<1x8x32xf32>
      %98 = vector.shape_cast %97 : vector<1x8x32xf32> to vector<8x32xf32>
      %99 = arith.mulf %98, %98 : vector<8x32xf32>
      %cst_38 = arith.constant dense<0.000000e+00> : vector<8xf32>
      %100 = vector.multi_reduction <add>, %99, %cst_38 [1] : vector<8x32xf32> to vector<8xf32>
      %101 = vector.shape_cast %100 : vector<8xf32> to vector<8x1xf32>
      %cst_39 = arith.constant 3.200000e+01 : f32
      %102 = vector.broadcast %cst_39 : f32 to vector<8x1xf32>
      %103 = arith.divf %101, %102 : vector<8x1xf32>
      %cst_40 = arith.constant 9.99999974E-6 : f32
      %104 = vector.broadcast %cst_40 : f32 to vector<8x1xf32>
      %105 = arith.addf %103, %104 : vector<8x1xf32>
      %106 = math.rsqrt %105 : vector<8x1xf32>
      %107 = vector.broadcast %106 : vector<8x1xf32> to vector<8x32xf32>
      %108 = arith.mulf %98, %107 : vector<8x32xf32>
      %109 = vector.broadcast %4 : vector<1x32xf32> to vector<8x32xf32>
      %110 = arith.mulf %108, %109 : vector<8x32xf32>
      %111 = arith.truncf %110 : vector<8x32xf32> to vector<8x32xbf16>
      %cst_41 = arith.constant dense<0.000000e+00> : vector<8x64xf32>
      %112 = tpu.matmul %111, %45, %cst_41 {dimension_numbers = #tpu.dot_dimension_numbers<[1], [0], [0], [1], [0, 0, 1, 1], [], []>} : vector<8x32xbf16>, vector<32x64xbf16>, vector<8x64xf32> -> vector<8x64xf32>
      %113 = vector.extract_strided_slice %112 {offsets = [0, 0], sizes = [8, 32], strides = [1, 1]} : vector<8x64xf32> to vector<8x32xf32>
      %114 = vector.shape_cast %113 : vector<8x32xf32> to vector<8x4x8xf32>
      %115 = tpu.transpose %114, [1, 0, 2] : vector<8x4x8xf32> -> vector<4x8x8xf32>
      %116 = vector.extract_strided_slice %112 {offsets = [0, 32], sizes = [8, 32], strides = [1, 1]} : vector<8x64xf32> to vector<8x32xf32>
      %117 = vector.shape_cast %116 : vector<8x32xf32> to vector<8x4x8xf32>
      %118 = tpu.transpose %117, [1, 0, 2] : vector<8x4x8xf32> -> vector<4x8x8xf32>
      %119 = arith.truncf %118 : vector<4x8x8xf32> to vector<4x8x8xbf16>
      %120 = arith.index_cast %95 : i32 to index
      %c0_42 = arith.constant 0 : index
      %121 = vector.load %arg11[%120, %c0_42] : memref<8x4xf32, #tpu.memory_space<vmem>>, vector<8x4xf32>
      %122 = vector.shape_cast %121 : vector<8x4xf32> to vector<1x8x4xf32>
      %123 = arith.index_cast %95 : i32 to index
      %c0_43 = arith.constant 0 : index
      %124 = vector.load %arg12[%123, %c0_43] : memref<8x4xf32, #tpu.memory_space<vmem>>, vector<8x4xf32>
      %125 = vector.shape_cast %124 : vector<8x4xf32> to vector<1x8x4xf32>
      %126 = vector.extract_strided_slice %115 {offsets = [0, 0, 0], sizes = [4, 8, 4], strides = [1, 1, 1]} : vector<4x8x8xf32> to vector<4x8x4xf32>
      %127 = vector.extract_strided_slice %115 {offsets = [0, 0, 4], sizes = [4, 8, 4], strides = [1, 1, 1]} : vector<4x8x8xf32> to vector<4x8x4xf32>
      %128 = vector.broadcast %122 : vector<1x8x4xf32> to vector<4x8x4xf32>
      %129 = arith.mulf %126, %128 : vector<4x8x4xf32>
      %130 = vector.broadcast %125 : vector<1x8x4xf32> to vector<4x8x4xf32>
      %131 = arith.mulf %127, %130 : vector<4x8x4xf32>
      %132 = arith.subf %129, %131 : vector<4x8x4xf32>
      %133 = vector.broadcast %122 : vector<1x8x4xf32> to vector<4x8x4xf32>
      %134 = arith.mulf %127, %133 : vector<4x8x4xf32>
      %135 = vector.broadcast %125 : vector<1x8x4xf32> to vector<4x8x4xf32>
      %136 = arith.mulf %126, %135 : vector<4x8x4xf32>
      %137 = arith.addf %134, %136 : vector<4x8x4xf32>
      %138 = tpu.concatenate %132, %137 in 2 : vector<4x8x4xf32>, vector<4x8x4xf32> -> vector<4x8x8xf32>
      %139 = arith.truncf %138 : vector<4x8x8xf32> to vector<4x8x8xbf16>
      "tpu.trace_start"() <{level = 10 : i32, message = "hqd,hkd->hqk"}> : () -> ()
      %cst_44 = arith.constant dense<0.000000e+00> : vector<4x8x8xf32>
      %140 = tpu.matmul %41, %139, %cst_44 {dimension_numbers = #tpu.dot_dimension_numbers<[2], [2], [1], [1], [0, 0, 0, 1, 1, 1], [0], [0]>} : vector<4x8x8xbf16>, vector<4x8x8xbf16>, vector<4x8x8xf32> -> vector<4x8x8xf32>
      "tpu.trace_stop"() : () -> ()
      %141 = tpu.iota {dimensions = array<i32: 1>} : vector<8x8xi32>
      %142 = vector.broadcast %95 : i32 to vector<8x8xi32>
      %143 = arith.addi %142, %141 : vector<8x8xi32>
      %144 = arith.cmpi sge, %44, %143 : vector<8x8xi32>
      %145 = vector.shape_cast %144 : vector<8x8xi1> to vector<1x8x8xi1>
      %cst_45 = arith.constant -1.000000e+30 : f32
      %146 = vector.shape_cast %145 : vector<1x8x8xi1> to vector<1x8x8xi1>
      %147 = vector.broadcast %146 : vector<1x8x8xi1> to vector<4x8x8xi1>
      %148 = vector.broadcast %cst_45 : f32 to vector<4x8x8xf32>
      %149 = arith.select %147, %140, %148 : vector<4x8x8xi1>, vector<4x8x8xf32>
      %cst_46 = arith.constant dense<0xFF800000> : vector<4x8xf32>
      %150 = vector.multi_reduction <maximumf>, %149, %cst_46 [2] : vector<4x8x8xf32> to vector<4x8xf32>
      %151 = vector.shape_cast %150 : vector<4x8xf32> to vector<4x8x1xf32>
      %152 = arith.maximumf %arg15, %151 : vector<4x8x1xf32>
      %153 = arith.subf %arg15, %152 : vector<4x8x1xf32>
      %154 = math.exp %153 : vector<4x8x1xf32>
      %155 = vector.broadcast %152 : vector<4x8x1xf32> to vector<4x8x8xf32>
      %156 = arith.subf %149, %155 : vector<4x8x8xf32>
      %157 = math.exp %156 : vector<4x8x8xf32>
      %158 = arith.mulf %154, %arg16 : vector<4x8x1xf32>
      %cst_47 = arith.constant dense<0.000000e+00> : vector<4x8xf32>
      %159 = vector.multi_reduction <add>, %157, %cst_47 [2] : vector<4x8x8xf32> to vector<4x8xf32>
      %160 = vector.shape_cast %159 : vector<4x8xf32> to vector<4x8x1xf32>
      %161 = arith.addf %158, %160 : vector<4x8x1xf32>
      %162 = vector.broadcast %154 : vector<4x8x1xf32> to vector<4x8x8xf32>
      %163 = arith.mulf %162, %arg17 : vector<4x8x8xf32>
      %164 = arith.truncf %157 : vector<4x8x8xf32> to vector<4x8x8xbf16>
      "tpu.trace_start"() <{level = 10 : i32, message = "hqk,hkd->hqd"}> : () -> ()
      %cst_48 = arith.constant dense<0.000000e+00> : vector<4x8x8xf32>
      %165 = tpu.matmul %164, %119, %cst_48 {dimension_numbers = #tpu.dot_dimension_numbers<[2], [1], [1], [2], [0, 0, 0, 1, 1, 2], [0], [0]>} : vector<4x8x8xbf16>, vector<4x8x8xbf16>, vector<4x8x8xf32> -> vector<4x8x8xf32>
      "tpu.trace_stop"() : () -> ()
      %166 = arith.addf %163, %165 : vector<4x8x8xf32>
      scf.yield %152, %161, %166 : vector<4x8x1xf32>, vector<4x8x1xf32>, vector<4x8x8xf32>
    }
    %53 = tpu.reciprocal %52#1 {approx = true} : vector<4x8x1xf32> -> vector<4x8x1xf32>
    %54 = vector.broadcast %53 : vector<4x8x1xf32> to vector<4x8x8xf32>
    %55 = arith.mulf %52#2, %54 : vector<4x8x8xf32>
    %56 = tpu.transpose %55, [1, 0, 2] : vector<4x8x8xf32> -> vector<8x4x8xf32>
    %57 = vector.shape_cast %56 : vector<8x4x8xf32> to vector<8x32xf32>
    %58 = arith.truncf %57 : vector<8x32xf32> to vector<8x32xbf16>
    %c0_17 = arith.constant 0 : index
    %c0_18 = arith.constant 0 : index
    %59 = vector.load %arg6[%c0_17, %c0_18] : memref<32x32xbf16, #tpu.memory_space<vmem>>, vector<32x32xbf16>
    %cst_19 = arith.constant dense<0.000000e+00> : vector<8x32xf32>
    %60 = tpu.matmul %58, %59, %cst_19 {dimension_numbers = #tpu.dot_dimension_numbers<[1], [0], [0], [1], [0, 0, 1, 1], [], []>} : vector<8x32xbf16>, vector<32x32xbf16>, vector<8x32xf32> -> vector<8x32xf32>
    %61 = arith.addf %3, %60 : vector<8x32xf32>
    %c0_20 = arith.constant 0 : index
    %c0_21 = arith.constant 0 : index
    %62 = vector.load %arg8[%c0_20, %c0_21] : memref<1x32xf32, #tpu.memory_space<vmem>>, vector<1x32xf32>
    %63 = arith.mulf %61, %61 : vector<8x32xf32>
    %cst_22 = arith.constant dense<0.000000e+00> : vector<8xf32>
    %64 = vector.multi_reduction <add>, %63, %cst_22 [1] : vector<8x32xf32> to vector<8xf32>
    %65 = vector.shape_cast %64 : vector<8xf32> to vector<8x1xf32>
    %cst_23 = arith.constant 3.200000e+01 : f32
    %66 = vector.broadcast %cst_23 : f32 to vector<8x1xf32>
    %67 = arith.divf %65, %66 : vector<8x1xf32>
    %cst_24 = arith.constant 9.99999974E-6 : f32
    %68 = vector.broadcast %cst_24 : f32 to vector<8x1xf32>
    %69 = arith.addf %67, %68 : vector<8x1xf32>
    %70 = math.rsqrt %69 : vector<8x1xf32>
    %71 = vector.broadcast %70 : vector<8x1xf32> to vector<8x32xf32>
    %72 = arith.mulf %61, %71 : vector<8x32xf32>
    %73 = vector.broadcast %62 : vector<1x32xf32> to vector<8x32xf32>
    %74 = arith.mulf %72, %73 : vector<8x32xf32>
    %75 = arith.truncf %74 : vector<8x32xf32> to vector<8x32xbf16>
    %c0_25 = arith.constant 0 : index
    %c0_26 = arith.constant 0 : index
    %76 = vector.load %arg9[%c0_25, %c0_26] : memref<32x128xbf16, #tpu.memory_space<vmem>>, vector<32x128xbf16>
    %cst_27 = arith.constant dense<0.000000e+00> : vector<8x128xf32>
    %77 = tpu.matmul %75, %76, %cst_27 {dimension_numbers = #tpu.dot_dimension_numbers<[1], [0], [0], [1], [0, 0, 1, 1], [], []>} : vector<8x32xbf16>, vector<32x128xbf16>, vector<8x128xf32> -> vector<8x128xf32>
    %78 = vector.extract_strided_slice %77 {offsets = [0, 0], sizes = [8, 64], strides = [1, 1]} : vector<8x128xf32> to vector<8x64xf32>
    %79 = vector.extract_strided_slice %77 {offsets = [0, 64], sizes = [8, 64], strides = [1, 1]} : vector<8x128xf32> to vector<8x64xf32>
    %80 = arith.negf %78 : vector<8x64xf32>
    %81 = math.exp %80 : vector<8x64xf32>
    %cst_28 = arith.constant 1.000000e+00 : f32
    %82 = vector.broadcast %cst_28 : f32 to vector<8x64xf32>
    %83 = arith.addf %82, %81 : vector<8x64xf32>
    %84 = arith.divf %82, %83 : vector<8x64xf32>
    %85 = arith.mulf %78, %84 : vector<8x64xf32>
    %86 = arith.mulf %85, %79 : vector<8x64xf32>
    %87 = arith.truncf %86 : vector<8x64xf32> to vector<8x64xbf16>
    %c0_29 = arith.constant 0 : index
    %c0_30 = arith.constant 0 : index
    %88 = vector.load %arg10[%c0_29, %c0_30] : memref<64x32xbf16, #tpu.memory_space<vmem>>, vector<64x32xbf16>
    %cst_31 = arith.constant dense<0.000000e+00> : vector<8x32xf32>
    %89 = tpu.matmul %87, %88, %cst_31 {dimension_numbers = #tpu.dot_dimension_numbers<[1], [0], [0], [1], [0, 0, 1, 1], [], []>} : vector<8x64xbf16>, vector<64x32xbf16>, vector<8x32xf32> -> vector<8x32xf32>
    %90 = arith.addf %61, %89 : vector<8x32xf32>
    %c0_32 = arith.constant 0 : index
    %c0_33 = arith.constant 0 : index
    %c0_34 = arith.constant 0 : index
    %91 = vector.load %arg13[%c0_32, %c0_33, %c0_34] : memref<1x8x32xf32, #tpu.memory_space<vmem>>, vector<1x8x32xf32>
    %92 = vector.shape_cast %91 : vector<1x8x32xf32> to vector<8x32xf32>
    %93 = vector.shape_cast %90 : vector<8x32xf32> to vector<1x8x32xf32>
    tpu.vector_store %arg13[%c0_32, %c0_33, %c0_34], %93 {strides = array<i32>} : memref<1x8x32xf32, #tpu.memory_space<vmem>>, vector<1x8x32xf32>,
    return
  }
  func.func @transform_0(%arg0: i32, %arg1: i32) -> (i32, i32, i32) {
    %c0_i32 = arith.constant 0 : i32
    %c0_i32_0 = arith.constant 0 : i32
    return %arg0, %arg1, %c0_i32 : i32, i32, i32
  }
  func.func @transform_1(%arg0: i32, %arg1: i32) -> (i32, i32, i32) {
    %c0_i32 = arith.constant 0 : i32
    %c0_i32_0 = arith.constant 0 : i32
    %c0_i32_1 = arith.constant 0 : i32
    return %arg0, %c0_i32, %c0_i32_0 : i32, i32, i32
  }
  func.func @transform_2(%arg0: i32, %arg1: i32) -> (i32, i32) {
    %c0_i32 = arith.constant 0 : i32
    %c0_i32_0 = arith.constant 0 : i32
    %c0_i32_1 = arith.constant 0 : i32
    return %c0_i32, %c0_i32_0 : i32, i32
  }
  func.func @transform_3(%arg0: i32, %arg1: i32) -> (i32, i32) {
    %c0_i32 = arith.constant 0 : i32
    %c0_i32_0 = arith.constant 0 : i32
    %c0_i32_1 = arith.constant 0 : i32
    return %c0_i32, %c0_i32_0 : i32, i32
  }
  func.func @transform_4(%arg0: i32, %arg1: i32) -> (i32, i32) {
    %c0_i32 = arith.constant 0 : i32
    %c0_i32_0 = arith.constant 0 : i32
    %c0_i32_1 = arith.constant 0 : i32
    return %c0_i32, %c0_i32_0 : i32, i32
  }
  func.func @transform_5(%arg0: i32, %arg1: i32) -> (i32, i32) {
    %c0_i32 = arith.constant 0 : i32
    %c0_i32_0 = arith.constant 0 : i32
    %c0_i32_1 = arith.constant 0 : i32
    return %c0_i32, %c0_i32_0 : i32, i32
  }
  func.func @transform_6(%arg0: i32, %arg1: i32) -> (i32, i32) {
    %c0_i32 = arith.constant 0 : i32
    %c0_i32_0 = arith.constant 0 : i32
    %c0_i32_1 = arith.constant 0 : i32
    return %c0_i32, %c0_i32_0 : i32, i32
  }
  func.func @transform_7(%arg0: i32, %arg1: i32) -> (i32, i32) {
    %c0_i32 = arith.constant 0 : i32
    %c0_i32_0 = arith.constant 0 : i32
    %c0_i32_1 = arith.constant 0 : i32
    return %c0_i32, %c0_i32_0 : i32, i32
  }
  func.func @transform_8(%arg0: i32, %arg1: i32) -> (i32, i32) {
    %c0_i32 = arith.constant 0 : i32
    %c0_i32_0 = arith.constant 0 : i32
    %c0_i32_1 = arith.constant 0 : i32
    return %c0_i32, %c0_i32_0 : i32, i32
  }
  func.func @transform_9(%arg0: i32, %arg1: i32) -> (i32, i32) {
    %c0_i32 = arith.constant 0 : i32
    %c0_i32_0 = arith.constant 0 : i32
    %c0_i32_1 = arith.constant 0 : i32
    return %c0_i32, %c0_i32_0 : i32, i32
  }
  func.func @transform_10(%arg0: i32, %arg1: i32) -> (i32, i32) {
    %c0_i32 = arith.constant 0 : i32
    %c0_i32_0 = arith.constant 0 : i32
    %c0_i32_1 = arith.constant 0 : i32
    return %c0_i32, %c0_i32_0 : i32, i32
  }
  func.func @transform_11(%arg0: i32, %arg1: i32) -> (i32, i32, i32) {
    %c0_i32 = arith.constant 0 : i32
    %c0_i32_0 = arith.constant 0 : i32
    return %arg0, %arg1, %c0_i32 : i32, i32, i32
  }
}

module attributes {stable_mosaic.version = 11 : i64} {
  func.func @kernel(%arg0: i32, %arg1: i32, %arg2: memref<1x8x32xf32, #tpu.memory_space<vmem>>, %arg3: memref<1x8x32xf32, #tpu.memory_space<vmem>>, %arg4: memref<32x32xbf16, #tpu.memory_space<vmem>>, %arg5: memref<32x64xbf16, #tpu.memory_space<vmem>>, %arg6: memref<32x32xbf16, #tpu.memory_space<vmem>>, %arg7: memref<1x32xf32, #tpu.memory_space<vmem>>, %arg8: memref<1x32xf32, #tpu.memory_space<vmem>>, %arg9: memref<32x128xbf16, #tpu.memory_space<vmem>>, %arg10: memref<64x32xbf16, #tpu.memory_space<vmem>>, %arg11: memref<8x4xf32, #tpu.memory_space<vmem>>, %arg12: memref<8x4xf32, #tpu.memory_space<vmem>>, %arg13: memref<1x8x32xf32, #tpu.memory_space<vmem>>) attributes {dimension_semantics = [#tpu.dimension_semantics<parallel>, #tpu.dimension_semantics<parallel>], iteration_bounds = array<i64: 2, 1>, scalar_prefetch = 0 : i64, scratch_operands = 0 : i64, tpu.core_type = #tpu.core_type<tc>, window_params = [{transform_indices = @transform_0, window_bounds = array<i64: 1, 8, 32>}, {transform_indices = @transform_1, window_bounds = array<i64: 1, 8, 32>}, {pipeline_mode = #tpu.pipeline_mode<synchronous>, transform_indices = @transform_2, window_bounds = array<i64: 32, 32>}, {pipeline_mode = #tpu.pipeline_mode<synchronous>, transform_indices = @transform_3, window_bounds = array<i64: 32, 64>}, {pipeline_mode = #tpu.pipeline_mode<synchronous>, transform_indices = @transform_4, window_bounds = array<i64: 32, 32>}, {pipeline_mode = #tpu.pipeline_mode<synchronous>, transform_indices = @transform_5, window_bounds = array<i64: 1, 32>}, {pipeline_mode = #tpu.pipeline_mode<synchronous>, transform_indices = @transform_6, window_bounds = array<i64: 1, 32>}, {pipeline_mode = #tpu.pipeline_mode<synchronous>, transform_indices = @transform_7, window_bounds = array<i64: 32, 128>}, {pipeline_mode = #tpu.pipeline_mode<synchronous>, transform_indices = @transform_8, window_bounds = array<i64: 64, 32>}, {pipeline_mode = #tpu.pipeline_mode<synchronous>, transform_indices = @transform_9, window_bounds = array<i64: 8, 4>}, {pipeline_mode = #tpu.pipeline_mode<synchronous>, transform_indices = @transform_10, window_bounds = array<i64: 8, 4>}, {transform_indices = @transform_11, window_bounds = array<i64: 1, 8, 32>}]} {
    %c8_i32 = arith.constant 8 : i32
    %0 = arith.muli %arg1, %c8_i32 : i32
    %1 = tpu.assume_multiple %0, 8 : i32
    %c0 = arith.constant 0 : index
    %c0_0 = arith.constant 0 : index
    %c0_1 = arith.constant 0 : index
    %2 = vector.load %arg2[%c0, %c0_0, %c0_1] : memref<1x8x32xf32, #tpu.memory_space<vmem>>, vector<1x8x32xf32>
    %3 = vector.shape_cast %2 : vector<1x8x32xf32> to vector<8x32xf32>
    %c0_2 = arith.constant 0 : index
    %c0_3 = arith.constant 0 : index
    %4 = vector.load %arg7[%c0_2, %c0_3] : memref<1x32xf32, #tpu.memory_space<vmem>>, vector<1x32xf32>
    %5 = arith.mulf %3, %3 : vector<8x32xf32>
    %cst = arith.constant dense<0.000000e+00> : vector<8xf32>
    %6 = vector.multi_reduction <add>, %5, %cst [1] : vector<8x32xf32> to vector<8xf32>
    %7 = vector.shape_cast %6 : vector<8xf32> to vector<8x1xf32>
    %cst_4 = arith.constant 3.200000e+01 : f32
    %8 = vector.broadcast %cst_4 : f32 to vector<8x1xf32>
    %9 = arith.divf %7, %8 : vector<8x1xf32>
    %cst_5 = arith.constant 9.99999974E-6 : f32
    %10 = vector.broadcast %cst_5 : f32 to vector<8x1xf32>
    %11 = arith.addf %9, %10 : vector<8x1xf32>
    %12 = math.rsqrt %11 : vector<8x1xf32>
    %13 = vector.broadcast %12 : vector<8x1xf32> to vector<8x32xf32>
    %14 = arith.mulf %3, %13 : vector<8x32xf32>
    %15 = vector.broadcast %4 : vector<1x32xf32> to vector<8x32xf32>
    %16 = arith.mulf %14, %15 : vector<8x32xf32>
    %17 = arith.truncf %16 : vector<8x32xf32> to vector<8x32xbf16>
    %c0_6 = arith.constant 0 : index
    %c0_7 = arith.constant 0 : index
    %18 = vector.load %arg4[%c0_6, %c0_7] : memref<32x32xbf16, #tpu.memory_space<vmem>>, vector<32x32xbf16>
    %cst_8 = arith.constant dense<0.000000e+00> : vector<8x32xf32>
    %19 = tpu.matmul %17, %18, %cst_8 {dimension_numbers = #tpu.dot_dimension_numbers<[1], [0], [0], [1], [0, 0, 1, 1], [], []>} : vector<8x32xbf16>, vector<32x32xbf16>, vector<8x32xf32> -> vector<8x32xf32>
    %20 = vector.shape_cast %19 : vector<8x32xf32> to vector<8x4x8xf32>
    %21 = tpu.transpose %20, [1, 0, 2] : vector<8x4x8xf32> -> vector<4x8x8xf32>
    %22 = arith.index_cast %1 : i32 to index
    %c0_9 = arith.constant 0 : index
    %23 = vector.load %arg11[%22, %c0_9] : memref<8x4xf32, #tpu.memory_space<vmem>>, vector<8x4xf32>
    %24 = vector.shape_cast %23 : vector<8x4xf32> to vector<1x8x4xf32>
    %25 = arith.index_cast %1 : i32 to index
    %c0_10 = arith.constant 0 : index
    %26 = vector.load %arg12[%25, %c0_10] : memref<8x4xf32, #tpu.memory_space<vmem>>, vector<8x4xf32>
    %27 = vector.shape_cast %26 : vector<8x4xf32> to vector<1x8x4xf32>
    %28 = vector.extract_strided_slice %21 {offsets = [0, 0, 0], sizes = [4, 8, 4], strides = [1, 1, 1]} : vector<4x8x8xf32> to vector<4x8x4xf32>
    %29 = vector.extract_strided_slice %21 {offsets = [0, 0, 4], sizes = [4, 8, 4], strides = [1, 1, 1]} : vector<4x8x8xf32> to vector<4x8x4xf32>
    %30 = vector.broadcast %24 : vector<1x8x4xf32> to vector<4x8x4xf32>
    %31 = arith.mulf %28, %30 : vector<4x8x4xf32>
    %32 = vector.broadcast %27 : vector<1x8x4xf32> to vector<4x8x4xf32>
    %33 = arith.mulf %29, %32 : vector<4x8x4xf32>
    %34 = arith.subf %31, %33 : vector<4x8x4xf32>
    %35 = vector.broadcast %24 : vector<1x8x4xf32> to vector<4x8x4xf32>
    %36 = arith.mulf %29, %35 : vector<4x8x4xf32>
    %37 = vector.broadcast %27 : vector<1x8x4xf32> to vector<4x8x4xf32>
    %38 = arith.mulf %28, %37 : vector<4x8x4xf32>
    %39 = arith.addf %36, %38 : vector<4x8x4xf32>
    %40 = tpu.concatenate %34, %39 in 2 : vector<4x8x4xf32>, vector<4x8x4xf32> -> vector<4x8x8xf32>
    %41 = arith.truncf %40 : vector<4x8x8xf32> to vector<4x8x8xbf16>
    %42 = tpu.iota {dimensions = array<i32: 0>} : vector<8x8xi32>
    %43 = vector.broadcast %1 : i32 to vector<8x8xi32>
    %44 = arith.addi %43, %42 : vector<8x8xi32>
    %c0_11 = arith.constant 0 : index
    %c0_12 = arith.constant 0 : index
    %45 = vector.load %arg5[%c0_11, %c0_12] : memref<32x64xbf16, #tpu.memory_space<vmem>>, vector<32x64xbf16>
    %cst_13 = arith.constant -1.000000e+30 : f32
    %46 = vector.broadcast %cst_13 : f32 to vector<4x8x1xf32>
    %cst_14 = arith.constant 0.000000e+00 : f32
    %47 = vector.broadcast %cst_14 : f32 to vector<4x8x1xf32>
    %cst_15 = arith.constant 0.000000e+00 : f32
    %48 = vector.broadcast %cst_15 : f32 to vector<4x8x8xf32>
    %c1_i32 = arith.constant 1 : i32
    %49 = arith.addi %arg1, %c1_i32 : i32
    %c0_i32 = arith.constant 0 : i32
    %50 = arith.subi %49, %c0_i32 : i32
    %51 = arith.addi %c0_i32, %50 : i32
    %c1_i32_16 = arith.constant 1 : i32
    %52:3 = scf.for %arg14 = %c0_i32 to %51 step %c1_i32_16 iter_args(%arg15 = %46, %arg16 = %47, %arg17 = %48) -> (vector<4x8x1xf32>, vector<4x8x1xf32>, vector<4x8x8xf32>)  : i32 {
      %c8_i32_35 = arith.constant 8 : i32
      %94 = arith.muli %arg14, %c8_i32_35 : i32
      %95 = tpu.assume_multiple %94, 8 : i32
      %c0_36 = arith.constant 0 : index
      %96 = arith.index_cast %95 : i32 to index
      %c0_37 = arith.constant 0 : index
      %97 = vector.load %arg3[%c0_36, %96, %c0_37] : memref<1x8x32xf32, #tpu.memory_space<vmem>>, vector<1x8x32xf32>
      %98 = vector.shape_cast %97 : vector<1x8x32xf32> to vector<8x32xf32>
      %99 = arith.mulf %98, %98 : vector<8x32xf32>
      %cst_38 = arith.constant dense<0.000000e+00> : vector<8xf32>
      %100 = vector.multi_reduction <add>, %99, %cst_38 [1] : vector<8x32xf32> to vector<8xf32>
      %101 = vector.shape_cast %100 : vector<8xf32> to vector<8x1xf32>
      %cst_39 = arith.constant 3.200000e+01 : f32
      %102 = vector.broadcast %cst_39 : f32 to vector<8x1xf32>
      %103 = arith.divf %101, %102 : vector<8x1xf32>
      %cst_40 = arith.constant 9.99999974E-6 : f32
      %104 = vector.broadcast %cst_40 : f32 to vector<8x1xf32>
      %105 = arith.addf %103, %104 : vector<8x1xf32>
      %106 = math.rsqrt %105 : vector<8x1xf32>
      %107 = vector.broadcast %106 : vector<8x1xf32> to vector<8x32xf32>
      %108 = arith.mulf %98, %107 : vector<8x32xf32>
      %109 = vector.broadcast %4 : vector<1x32xf32> to vector<8x32xf32>
      %110 = arith.mulf %108, %109 : vector<8x32xf32>
      %111 = arith.truncf %110 : vector<8x32xf32> to vector<8x32xbf16>
      %cst_41 = arith.constant dense<0.000000e+00> : vector<8x64xf32>
      %112 = tpu.matmul %111, %45, %cst_41 {dimension_numbers = #tpu.dot_dimension_numbers<[1], [0], [0], [1], [0, 0, 1, 1], [], []>} : vector<8x32xbf16>, vector<32x64xbf16>, vector<8x64xf32> -> vector<8x64xf32>
      %113 = vector.extract_strided_slice %112 {offsets = [0, 0], sizes = [8, 32], strides = [1, 1]} : vector<8x64xf32> to vector<8x32xf32>
      %114 = vector.shape_cast %113 : vector<8x32xf32> to vector<8x4x8xf32>
      %115 = tpu.transpose %114, [1, 0, 2] : vector<8x4x8xf32> -> vector<4x8x8xf32>
      %116 = vector.extract_strided_slice %112 {offsets = [0, 32], sizes = [8, 32], strides = [1, 1]} : vector<8x64xf32> to vector<8x32xf32>
      %117 = vector.shape_cast %116 : vector<8x32xf32> to vector<8x4x8xf32>
      %118 = tpu.transpose %117, [1, 0, 2] : vector<8x4x8xf32> -> vector<4x8x8xf32>
      %119 = arith.truncf %118 : vector<4x8x8xf32> to vector<4x8x8xbf16>
      %120 = arith.index_cast %95 : i32 to index
      %c0_42 = arith.constant 0 : index
      %121 = vector.load %arg11[%120, %c0_42] : memref<8x4xf32, #tpu.memory_space<vmem>>, vector<8x4xf32>
      %122 = vector.shape_cast %121 : vector<8x4xf32> to vector<1x8x4xf32>
      %123 = arith.index_cast %95 : i32 to index
      %c0_43 = arith.constant 0 : index
      %124 = vector.load %arg12[%123, %c0_43] : memref<8x4xf32, #tpu.memory_space<vmem>>, vector<8x4xf32>
      %125 = vector.shape_cast %124 : vector<8x4xf32> to vector<1x8x4xf32>
      %126 = vector.extract_strided_slice %115 {offsets = [0, 0, 0], sizes = [4, 8, 4], strides = [1, 1, 1]} : vector<4x8x8xf32> to vector<4x8x4xf32>
      %127 = vector.extract_strided_slice %115 {offsets = [0, 0, 4], sizes = [4, 8, 4], strides = [1, 1, 1]} : vector<4x8x8xf32> to vector<4x8x4xf32>
      %128 = vector.broadcast %122 : vector<1x8x4xf32> to vector<4x8x4xf32>
      %129 = arith.mulf %126, %128 : vector<4x8x4xf32>
      %130 = vector.broadcast %125 : vector<1x8x4xf32> to vector<4x8x4xf32>
      %131 = arith.mulf %127, %130 : vector<4x8x4xf32>
      %132 = arith.subf %129, %131 : vector<4x8x4xf32>
      %133 = vector.broadcast %122 : vector<1x8x4xf32> to vector<4x8x4xf32>
      %134 = arith.mulf %127, %133 : vector<4x8x4xf32>
      %135 = vector.broadcast %125 : vector<1x8x4xf32> to vector<4x8x4xf32>
      %136 = arith.mulf %126, %135 : vector<4x8x4xf32>
      %137 = arith.addf %134, %136 : vector<4x8x4xf32>
      %138 = tpu.concatenate %132, %137 in 2 : vector<4x8x4xf32>, vector<4x8x4xf32> -> vector<4x8x8xf32>
      %139 = arith.truncf %138 : vector<4x8x8xf32> to vector<4x8x8xbf16>
      "tpu.trace_start"() <{level = 10 : i32, message = "hqd,hkd->hqk"}> : () -> ()
      %cst_44 = arith.constant dense<0.000000e+00> : vector<4x8x8xf32>
      %140 = tpu.matmul %41, %139, %cst_44 {dimension_numbers = #tpu.dot_dimension_numbers<[2], [2], [1], [1], [0, 0, 0, 1, 1, 1], [0], [0]>} : vector<4x8x8xbf16>, vector<4x8x8xbf16>, vector<4x8x8xf32> -> vector<4x8x8xf32>
      "tpu.trace_stop"() : () -> ()
      %141 = tpu.iota {dimensions = array<i32: 1>} : vector<8x8xi32>
      %142 = vector.broadcast %95 : i32 to vector<8x8xi32>
      %143 = arith.addi %142, %141 : vector<8x8xi32>
      %144 = arith.cmpi sge, %44, %143 : vector<8x8xi32>
      %145 = vector.shape_cast %144 : vector<8x8xi1> to vector<1x8x8xi1>
      %cst_45 = arith.constant -1.000000e+30 : f32
      %146 = vector.shape_cast %145 : vector<1x8x8xi1> to vector<1x8x8xi1>
      %147 = vector.broadcast %146 : vector<1x8x8xi1> to vector<4x8x8xi1>
      %148 = vector.broadcast %cst_45 : f32 to vector<4x8x8xf32>
      %149 = arith.select %147, %140, %148 : vector<4x8x8xi1>, vector<4x8x8xf32>
      %cst_46 = arith.constant dense<0xFF800000> : vector<4x8xf32>
      %150 = vector.multi_reduction <maximumf>, %149, %cst_46 [2] : vector<4x8x8xf32> to vector<4x8xf32>
      %151 = vector.shape_cast %150 : vector<4x8xf32> to vector<4x8x1xf32>
      %152 = arith.maximumf %arg15, %151 : vector<4x8x1xf32>
      %153 = arith.subf %arg15, %152 : vector<4x8x1xf32>
      %154 = math.exp %153 : vector<4x8x1xf32>
      %155 = vector.broadcast %152 : vector<4x8x1xf32> to vector<4x8x8xf32>
      %156 = arith.subf %149, %155 : vector<4x8x8xf32>
      %157 = math.exp %156 : vector<4x8x8xf32>
      %158 = arith.mulf %154, %arg16 : vector<4x8x1xf32>
      %cst_47 = arith.constant dense<0.000000e+00> : vector<4x8xf32>
      %159 = vector.multi_reduction <add>, %157, %cst_47 [2] : vector<4x8x8xf32> to vector<4x8xf32>
      %160 = vector.shape_cast %159 : vector<4x8xf32> to vector<4x8x1xf32>
      %161 = arith.addf %158, %160 : vector<4x8x1xf32>
      %162 = vector.broadcast %154 : vector<4x8x1xf32> to vector<4x8x8xf32>
      %163 = arith.mulf %162, %arg17 : vector<4x8x8xf32>
      %164 = arith.truncf %157 : vector<4x8x8xf32> to vector<4x8x8xbf16>
      "tpu.trace_start"() <{level = 10 : i32, message = "hqk,hkd->hqd"}> : () -> ()
      %cst_48 = arith.constant dense<0.000000e+00> : vector<4x8x8xf32>
      %165 = tpu.matmul %164, %119, %cst_48 {dimension_numbers = #tpu.dot_dimension_numbers<[2], [1], [1], [2], [0, 0, 0, 1, 1, 2], [0], [0]>} : vector<4x8x8xbf16>, vector<4x8x8xbf16>, vector<4x8x8xf32> -> vector<4x8x8xf32>
      "tpu.trace_stop"() : () -> ()
      %166 = arith.addf %163, %165 : vector<4x8x8xf32>
      scf.yield %152, %161, %166 : vector<4x8x1xf32>, vector<4x8x1xf32>, vector<4x8x8xf32>
    }
    %53 = tpu.reciprocal %52#1 {approx = true} : vector<4x8x1xf32> -> vector<4x8x1xf32>
    %54 = vector.broadcast %53 : vector<4x8x1xf32> to vector<4x8x8xf32>
    %55 = arith.mulf %52#2, %54 : vector<4x8x8xf32>
    %56 = tpu.transpose %55, [1, 0, 2] : vector<4x8x8xf32> -> vector<8x4x8xf32>
    %57 = vector.shape_cast %56 : vector<8x4x8xf32> to vector<8x32xf32>
    %58 = arith.truncf %57 : vector<8x32xf32> to vector<8x32xbf16>
    %c0_17 = arith.constant 0 : index
    %c0_18 = arith.constant 0 : index
    %59 = vector.load %arg6[%c0_17, %c0_18] : memref<32x32xbf16, #tpu.memory_space<vmem>>, vector<32x32xbf16>
    %cst_19 = arith.constant dense<0.000000e+00> : vector<8x32xf32>
    %60 = tpu.matmul %58, %59, %cst_19 {dimension_numbers = #tpu.dot_dimension_numbers<[1], [0], [0], [1], [0, 0, 1, 1], [], []>} : vector<8x32xbf16>, vector<32x32xbf16>, vector<8x32xf32> -> vector<8x32xf32>
    %61 = arith.addf %3, %60 : vector<8x32xf32>
    %c0_20 = arith.constant 0 : index
    %c0_21 = arith.constant 0 : index
    %62 = vector.load %arg8[%c0_20, %c0_21] : memref<1x32xf32, #tpu.memory_space<vmem>>, vector<1x32xf32>
    %63 = arith.mulf %61, %61 : vector<8x32xf32>
    %cst_22 = arith.constant dense<0.000000e+00> : vector<8xf32>
    %64 = vector.multi_reduction <add>, %63, %cst_22 [1] : vector<8x32xf32> to vector<8xf32>
    %65 = vector.shape_cast %64 : vector<8xf32> to vector<8x1xf32>
    %cst_23 = arith.constant 3.200000e+01 : f32
    %66 = vector.broadcast %cst_23 : f32 to vector<8x1xf32>
    %67 = arith.divf %65, %66 : vector<8x1xf32>
    %cst_24 = arith.constant 9.99999974E-6 : f32
    %68 = vector.broadcast %cst_24 : f32 to vector<8x1xf32>
    %69 = arith.addf %67, %68 : vector<8x1xf32>
    %70 = math.rsqrt %69 : vector<8x1xf32>
    %71 = vector.broadcast %70 : vector<8x1xf32> to vector<8x32xf32>
    %72 = arith.mulf %61, %71 : vector<8x32xf32>
    %73 = vector.broadcast %62 : vector<1x32xf32> to vector<8x32xf32>
    %74 = arith.mulf %72, %73 : vector<8x32xf32>
    %75 = arith.truncf %74 : vector<8x32xf32> to vector<8x32xbf16>
    %c0_25 = arith.constant 0 : index
    %c0_26 = arith.constant 0 : index
    %76 = vector.load %arg9[%c0_25, %c0_26] : memref<32x128xbf16, #tpu.memory_space<vmem>>, vector<32x128xbf16>
    %cst_27 = arith.constant dense<0.000000e+00> : vector<8x128xf32>
    %77 = tpu.matmul %75, %76, %cst_27 {dimension_numbers = #tpu.dot_dimension_numbers<[1], [0], [0], [1], [0, 0, 1, 1], [], []>} : vector<8x32xbf16>, vector<32x128xbf16>, vector<8x128xf32> -> vector<8x128xf32>
    %78 = vector.extract_strided_slice %77 {offsets = [0, 0], sizes = [8, 64], strides = [1, 1]} : vector<8x128xf32> to vector<8x64xf32>
    %79 = vector.extract_strided_slice %77 {offsets = [0, 64], sizes = [8, 64], strides = [1, 1]} : vector<8x128xf32> to vector<8x64xf32>
    %80 = arith.negf %78 : vector<8x64xf32>
    %81 = math.exp %80 : vector<8x64xf32>
    %cst_28 = arith.constant 1.000000e+00 : f32
    %82 = vector.broadcast %cst_28 : f32 to vector<8x64xf32>
    %83 = arith.addf %82, %81 : vector<8x64xf32>
    %84 = arith.divf %82, %83 : vector<8x64xf32>
    %85 = arith.mulf %78, %84 : vector<8x64xf32>
    %86 = arith.mulf %85, %79 : vector<8x64xf32>
    %87 = arith.truncf %86 : vector<8x64xf32> to vector<8x64xbf16>
    %c0_29 = arith.constant 0 : index
    %c0_30 = arith.constant 0 : index
    %88 = vector.load %arg10[%c0_29, %c0_30] : memref<64x32xbf16, #tpu.memory_space<vmem>>, vector<64x32xbf16>
    %cst_31 = arith.constant dense<0.000000e+00> : vector<8x32xf32>
    %89 = tpu.matmul %87, %88, %cst_31 {dimension_numbers = #tpu.dot_dimension_numbers<[1], [0], [0], [1], [0, 0, 1, 1], [], []>} : vector<8x64xbf16>, vector<64x32xbf16>, vector<8x32xf32> -> vector<8x32xf32>
    %90 = arith.addf %61, %89 : vector<8x32xf32>
    %c0_32 = arith.constant 0 : index
    %c0_33 = arith.constant 0 : index
    %c0_34 = arith.constant 0 : index
    %91 = vector.load %arg13[%c0_32, %c0_33, %c0_34] : memref<1x8x32xf32, #tpu.memory_space<vmem>>, vector<1x8x32xf32>
    %92 = vector.shape_cast %91 : vector<1x8x32xf32> to vector<8x32xf32>
    %93 = vector.shape_cast %90 : vector<8x32xf32> to vector<1x8x32xf32>
    tpu.vector_store %arg13[%c0_32, %c0_33, %c0_34], %93 {strides = array<i32>} : memref<1x8x32xf32, #tpu.memory_space<vmem>>, vector<1x8x32xf32>,
    return
  }
  func.func @transform_0(%arg0: i32, %arg1: i32) -> (i32, i32, i32) {
    %c0_i32 = arith.constant 0 : i32
    %c0_i32_0 = arith.constant 0 : i32
    return %arg0, %arg1, %c0_i32 : i32, i32, i32
  }
  func.func @transform_1(%arg0: i32, %arg1: i32) -> (i32, i32, i32) {
    %c0_i32 = arith.constant 0 : i32
    %c0_i32_0 = arith.constant 0 : i32
    %c0_i32_1 = arith.constant 0 : i32
    return %arg0, %c0_i32, %c0_i32_0 : i32, i32, i32
  }
  func.func @transform_2(%arg0: i32, %arg1: i32) -> (i32, i32) {
    %c0_i32 = arith.constant 0 : i32
    %c0_i32_0 = arith.constant 0 : i32
    %c0_i32_1 = arith.constant 0 : i32
    return %c0_i32, %c0_i32_0 : i32, i32
  }
  func.func @transform_3(%arg0: i32, %arg1: i32) -> (i32, i32) {
    %c0_i32 = arith.constant 0 : i32
    %c0_i32_0 = arith.constant 0 : i32
    %c0_i32_1 = arith.constant 0 : i32
    return %c0_i32, %c0_i32_0 : i32, i32
  }
  func.func @transform_4(%arg0: i32, %arg1: i32) -> (i32, i32) {
    %c0_i32 = arith.constant 0 : i32
    %c0_i32_0 = arith.constant 0 : i32
    %c0_i32_1 = arith.constant 0 : i32
    return %c0_i32, %c0_i32_0 : i32, i32
  }
  func.func @transform_5(%arg0: i32, %arg1: i32) -> (i32, i32) {
    %c0_i32 = arith.constant 0 : i32
    %c0_i32_0 = arith.constant 0 : i32
    %c0_i32_1 = arith.constant 0 : i32
    return %c0_i32, %c0_i32_0 : i32, i32
  }
  func.func @transform_6(%arg0: i32, %arg1: i32) -> (i32, i32) {
    %c0_i32 = arith.constant 0 : i32
    %c0_i32_0 = arith.constant 0 : i32
    %c0_i32_1 = arith.constant 0 : i32
    return %c0_i32, %c0_i32_0 : i32, i32
  }
  func.func @transform_7(%arg0: i32, %arg1: i32) -> (i32, i32) {
    %c0_i32 = arith.constant 0 : i32
    %c0_i32_0 = arith.constant 0 : i32
    %c0_i32_1 = arith.constant 0 : i32
    return %c0_i32, %c0_i32_0 : i32, i32
  }
  func.func @transform_8(%arg0: i32, %arg1: i32) -> (i32, i32) {
    %c0_i32 = arith.constant 0 : i32
    %c0_i32_0 = arith.constant 0 : i32
    %c0_i32_1 = arith.constant 0 : i32
    return %c0_i32, %c0_i32_0 : i32, i32
  }
  func.func @transform_9(%arg0: i32, %arg1: i32) -> (i32, i32) {
    %c0_i32 = arith.constant 0 : i32
    %c0_i32_0 = arith.constant 0 : i32
    %c0_i32_1 = arith.constant 0 : i32
    return %c0_i32, %c0_i32_0 : i32, i32
  }
  func.func @transform_10(%arg0: i32, %arg1: i32) -> (i32, i32) {
    %c0_i32 = arith.constant 0 : i32
    %c0_i32_0 = arith.constant 0 : i32
    %c0_i32_1 = arith.constant 0 : i32
    return %c0_i32, %c0_i32_0 : i32, i32
  }
  func.func @transform_11(%arg0: i32, %arg1: i32) -> (i32, i32, i32) {
    %c0_i32 = arith.constant 0 : i32
    %c0_i32_0 = arith.constant 0 : i32
    return %arg0, %arg1, %c0_i32 : i32, i32, i32
  }
}

</mosaic_0001>

<llo_original>
// kernel: tpu_custom_call.1
$region0: #{tpu_custom_call.1}
  #allocation0 [shape = 'u32[]', space=smem, size = 0x4, offset = 0x4, fixed_abs, tag = 'smem constant byte address 0x4 - core index']
  #allocation1 [shape = 'u32[144,128]{1,0:T(1,128)}', space=vmem, size = 0x12000, scoped, tag = 'internal scratch']
  %s0 = inlined_call_operand.hbm [shape: f32[2,8,32], index: 0, kind: input, shape index: {}]
  %s1 = inlined_call_operand.hbm [shape: f32[2,8,32], index: 1, kind: input, shape index: {}]
  %s2 = inlined_call_operand.hbm [shape: bf16[32,32], index: 2, kind: input, shape index: {}]
  %s3 = inlined_call_operand.hbm [shape: bf16[32,64], index: 3, kind: input, shape index: {}]
  %s4 = inlined_call_operand.hbm [shape: bf16[32,32], index: 4, kind: input, shape index: {}]
  %s5 = inlined_call_operand.hbm [shape: f32[1,32], index: 5, kind: input, shape index: {}]
  %s6 = inlined_call_operand.hbm [shape: f32[1,32], index: 6, kind: input, shape index: {}]
  %s7 = inlined_call_operand.hbm [shape: bf16[32,128], index: 7, kind: input, shape index: {}]
  %s8 = inlined_call_operand.hbm [shape: bf16[64,32], index: 8, kind: input, shape index: {}]
  %s9 = inlined_call_operand.hbm [shape: f32[8,4], index: 9, kind: input, shape index: {}]
  %s10 = inlined_call_operand.hbm [shape: f32[8,4], index: 10, kind: input, shape index: {}]
  %s11 = inlined_call_operand.hbm [shape: f32[2,8,32], index: 11, kind: output, shape index: {}]
  %s12 = sld [smem:[#allocation0]]
  $region128: #{tpu_custom_call.1} parent=0
    _
  %s14 = ssub.s32 1, %s12
  %s15 = scalar_select 0, %s14, %s12
  $region1: #{tpu_custom_call.1} parent=0
    #allocation2 [shape = 'u8[8192]{0}', space=vmem, size = 0x2000, scoped, tag = 'input window, operand 0']
    #allocation3 [shape = 's32[2]{0}', space=sflag, size = 0x8, scoped, tag = 'scoped memory for tpu_custom_call.1']
    #allocation4 [shape = 's32[2]{0}', space=sflag, size = 0x8, scoped, tag = 'scoped memory for tpu_custom_call.1']
    #allocation5 [shape = 'u8[8192]{0}', space=vmem, size = 0x2000, scoped, tag = 'input window, operand 1']
    #allocation6 [shape = 's32[2]{0}', space=sflag, size = 0x8, scoped, tag = 'scoped memory for tpu_custom_call.1']
    #allocation7 [shape = 'u8[8192]{0}', space=vmem, size = 0x2000, scoped, tag = 'input window, operand 2, single buffered']
    #allocation8 [shape = 'u8[8192]{0}', space=vmem, size = 0x2000, scoped, tag = 'input window, operand 3, single buffered']
    #allocation9 [shape = 's32[1]{0}', space=sflag, size = 0x4, scoped, tag = 'scoped memory for tpu_custom_call.1']
    #allocation10 [shape = 'u8[8192]{0}', space=vmem, size = 0x2000, scoped, tag = 'input window, operand 4, single buffered']
    #allocation11 [shape = 'u8[512]{0}', space=vmem, size = 0x400, scoped, tag = 'input window, operand 5, single buffered']
    #allocation12 [shape = 's32[1]{0}', space=sflag, size = 0x4, scoped, tag = 'scoped memory for tpu_custom_call.1']
    #allocation13 [shape = 'u8[512]{0}', space=vmem, size = 0x400, scoped, tag = 'input window, operand 6, single buffered']
    #allocation14 [shape = 'u8[8192]{0}', space=vmem, size = 0x2000, scoped, tag = 'input window, operand 7, single buffered']
    #allocation15 [shape = 's32[1]{0}', space=sflag, size = 0x4, scoped, tag = 'scoped memory for tpu_custom_call.1']
    #allocation16 [shape = 'u8[16384]{0}', space=vmem, size = 0x4000, scoped, tag = 'input window, operand 8, single buffered']
    #allocation17 [shape = 'u8[4096]{0}', space=vmem, size = 0x1000, scoped, tag = 'input window, operand 9, single buffered']
    #allocation18 [shape = 's32[1]{0}', space=sflag, size = 0x4, scoped, tag = 'scoped memory for tpu_custom_call.1']
    #allocation19 [shape = 'u8[4096]{0}', space=vmem, size = 0x1000, scoped, tag = 'input window, operand 10, single buffered']
    #allocation20 [shape = 'u8[8192]{0}', space=vmem, size = 0x2000, scoped, tag = 'output window, operand 0']
    %16 = vsyncpa [#allocation3], 0
    %s17 = scalar_lea.sflag [#allocation3], 1
    %18 = vsyncpa %s17, 0
    %19 = vsyncpa [#allocation6], 0
    %s20 = scalar_lea.sflag [#allocation6], 1
    %21 = vsyncpa %s20, 0
    %22 = vsyncpa [#allocation9], 0
    %23 = vsyncpa [#allocation12], 0
    %24 = vsyncpa [#allocation15], 0
    %25 = vsyncpa [#allocation18], 0
    %26 = vsyncpa [#allocation4], 0
    %s27 = scalar_lea.sflag [#allocation4], 1
    %28 = vsyncpa %s27, 0
    loop: start=0, step=1, limit=4
    $region2: #{tpu_custom_call.1} parent=1 // loop_pre_header
      _
    $region3: #{tpu_custom_call.1} parent=1 // loop_header
      %s30 = sphi 0, %s34
      %p31 = scmp.ge.s32.totalorder %s30, 4
      %s37 = sphi 0, %s49
      %s38 = sphi 0, %s45
      %s39 = sphi 0, %s37
      %s40 = sphi 0, %s38
      %s41 = sphi 0, %s39
      %s42 = sphi 0, %s40
      %s54 = sphi 0, %s56
      %s57 = sphi 0, %s54
      %s58 = sphi 0, %s57
      %s74 = sphi 0, %s58
      %s80 = sphi 0, %s82
      %s83 = sphi 0, %s80
      %s84 = sphi 0, %s83
      %s100 = sphi 0, %s84
      %s104 = sphi 0, %s104
      %s106 = sphi 0, %s104
      %s107 = sphi 0, %s106
      %s121 = sphi 0, %s107
      %s125 = sphi 0, %s125
      %s127 = sphi 0, %s125
      %s128 = sphi 0, %s127
      %s142 = sphi 0, %s128
      %s146 = sphi 0, %s146
      %s148 = sphi 0, %s146
      %s149 = sphi 0, %s148
      %s163 = sphi 0, %s149
      %s167 = sphi 0, %s167
      %s169 = sphi 0, %s167
      %s170 = sphi 0, %s169
      %s184 = sphi 0, %s170
      %s188 = sphi 0, %s188
      %s190 = sphi 0, %s188
      %s191 = sphi 0, %s190
      %s205 = sphi 0, %s191
      %s209 = sphi 0, %s209
      %s211 = sphi 0, %s209
      %s212 = sphi 0, %s211
      %s226 = sphi 0, %s212
      %s230 = sphi 0, %s230
      %s232 = sphi 0, %s230
      %s233 = sphi 0, %s232
      %s247 = sphi 0, %s233
      %s251 = sphi 0, %s251
      %s253 = sphi 0, %s251
      %s254 = sphi 0, %s253
      %s268 = sphi 0, %s254
      %s272 = sphi 0, %s272
      %s274 = sphi 0, %s272
      %s275 = sphi 0, %s274
      %s289 = sphi 0, %s275
      %s297 = sphi 0, %s299
      %s300 = sphi 0, %s297
      %s301 = sphi 0, %s300
      %s317 = sphi 0, %s301
    $region4: #{tpu_custom_call.1} parent=1 // loop_header_branch
      %33 = sbr.rel (%p31) target = $region8
    $region5: #{tpu_custom_call.1} parent=1 // loop_body
      %s35 = ssub.s32 %s30, 1
      %s36 = ssub.s32 %s30, 2
      %s43 = sadd.s32 1, %s38
      %p44 = scmp.ge.s32.totalorder %s43, 1
      %s45 = scalar_select %p44, 0, %s43
      %s46 = sadd.s32 1, %s37
      %s47 = scalar_select %p44, %s46, %s37
      %p48 = scmp.ge.s32.totalorder %s47, 2
      %s49 = scalar_select %p48, 0, %s47
      %s50 = ssub.s32 %s37, %s49
      %s51 = ssub.s32 %s38, %s45
      %s52 = sor.u32 %s50, %s51
      %p53 = scmp.eq.s32.totalorder %s52, 0
      %s55 = sadd.s32 %s54, 1
      %s56 = scalar_select %p53, %s54, %s55
      %p59 = pneg %p53
      %p60 = scmp.eq.s32.totalorder %s30, 1
      %p61 = por %p59, %p60
      %p62 = scmp.ne.s32.totalorder %s54, %s57
      %p63 = scmp.eq.s32.totalorder %s30, 0
      %p64 = por %p62, %p63
      %p65 = scmp.ne.s32.totalorder %s54, %s57
      %p66 = scmp.eq.s32.totalorder %s35, 1
      %p67 = por %p65, %p66
      %p68 = scmp.ne.s32.totalorder %s57, %s58
      %p69 = scmp.eq.s32.totalorder %s35, 0
      %p70 = por %p68, %p69
      %p71 = scmp.ne.s32.totalorder %s57, %s58
      %p72 = scmp.eq.s32.totalorder %s36, 1
      %p73 = por %p71, %p72
      %p75 = scmp.ne.s32.totalorder %s58, %s74
      %p76 = scmp.eq.s32.totalorder %s36, 0
      %p77 = por %p75, %p76
      %s78 = ssub.s32 %s37, %s49
      %p79 = scmp.eq.s32.totalorder %s78, 0
      %s81 = sadd.s32 %s80, 1
      %s82 = scalar_select %p79, %s80, %s81
      %p85 = pneg %p79
      %p86 = scmp.eq.s32.totalorder %s30, 1
      %p87 = por %p85, %p86
      %p88 = scmp.ne.s32.totalorder %s80, %s83
      %p89 = scmp.eq.s32.totalorder %s30, 0
      %p90 = por %p88, %p89
      %p91 = scmp.ne.s32.totalorder %s80, %s83
      %p92 = scmp.eq.s32.totalorder %s35, 1
      %p93 = por %p91, %p92
      %p94 = scmp.ne.s32.totalorder %s83, %s84
      %p95 = scmp.eq.s32.totalorder %s35, 0
      %p96 = por %p94, %p95
      %p97 = scmp.ne.s32.totalorder %s83, %s84
      %p98 = scmp.eq.s32.totalorder %s36, 1
      %p99 = por %p97, %p98
      %p101 = scmp.ne.s32.totalorder %s84, %s100
      %p102 = scmp.eq.s32.totalorder %s36, 0
      %p103 = por %p101, %p102
      %s105 = sadd.s32 %s104, 1
      %p108 = scmp.eq.s32.totalorder %s30, 1
      %p109 = scmp.ne.s32.totalorder %s104, %s106
      %p110 = scmp.eq.s32.totalorder %s30, 0
      %p111 = por %p109, %p110
      %p112 = scmp.ne.s32.totalorder %s104, %s106
      %p113 = scmp.eq.s32.totalorder %s35, 1
      %p114 = por %p112, %p113
      %p115 = scmp.ne.s32.totalorder %s106, %s107
      %p116 = scmp.eq.s32.totalorder %s35, 0
      %p117 = por %p115, %p116
      %p118 = scmp.ne.s32.totalorder %s106, %s107
      %p119 = scmp.eq.s32.totalorder %s36, 1
      %p120 = por %p118, %p119
      %p122 = scmp.ne.s32.totalorder %s107, %s121
      %p123 = scmp.eq.s32.totalorder %s36, 0
      %p124 = por %p122, %p123
      %s126 = sadd.s32 %s125, 1
      %p129 = scmp.eq.s32.totalorder %s30, 1
      %p130 = scmp.ne.s32.totalorder %s125, %s127
      %p131 = scmp.eq.s32.totalorder %s30, 0
      %p132 = por %p130, %p131
      %p133 = scmp.ne.s32.totalorder %s125, %s127
      %p134 = scmp.eq.s32.totalorder %s35, 1
      %p135 = por %p133, %p134
      %p136 = scmp.ne.s32.totalorder %s127, %s128
      %p137 = scmp.eq.s32.totalorder %s35, 0
      %p138 = por %p136, %p137
      %p139 = scmp.ne.s32.totalorder %s127, %s128
      %p140 = scmp.eq.s32.totalorder %s36, 1
      %p141 = por %p139, %p140
      %p143 = scmp.ne.s32.totalorder %s128, %s142
      %p144 = scmp.eq.s32.totalorder %s36, 0
      %p145 = por %p143, %p144
      %s147 = sadd.s32 %s146, 1
      %p150 = scmp.eq.s32.totalorder %s30, 1
      %p151 = scmp.ne.s32.totalorder %s146, %s148
      %p152 = scmp.eq.s32.totalorder %s30, 0
      %p153 = por %p151, %p152
      %p154 = scmp.ne.s32.totalorder %s146, %s148
      %p155 = scmp.eq.s32.totalorder %s35, 1
      %p156 = por %p154, %p155
      %p157 = scmp.ne.s32.totalorder %s148, %s149
      %p158 = scmp.eq.s32.totalorder %s35, 0
      %p159 = por %p157, %p158
      %p160 = scmp.ne.s32.totalorder %s148, %s149
      %p161 = scmp.eq.s32.totalorder %s36, 1
      %p162 = por %p160, %p161
      %p164 = scmp.ne.s32.totalorder %s149, %s163
      %p165 = scmp.eq.s32.totalorder %s36, 0
      %p166 = por %p164, %p165
      %s168 = sadd.s32 %s167, 1
      %p171 = scmp.eq.s32.totalorder %s30, 1
      %p172 = scmp.ne.s32.totalorder %s167, %s169
      %p173 = scmp.eq.s32.totalorder %s30, 0
      %p174 = por %p172, %p173
      %p175 = scmp.ne.s32.totalorder %s167, %s169
      %p176 = scmp.eq.s32.totalorder %s35, 1
      %p177 = por %p175, %p176
      %p178 = scmp.ne.s32.totalorder %s169, %s170
      %p179 = scmp.eq.s32.totalorder %s35, 0
      %p180 = por %p178, %p179
      %p181 = scmp.ne.s32.totalorder %s169, %s170
      %p182 = scmp.eq.s32.totalorder %s36, 1
      %p183 = por %p181, %p182
      %p185 = scmp.ne.s32.totalorder %s170, %s184
      %p186 = scmp.eq.s32.totalorder %s36, 0
      %p187 = por %p185, %p186
      %s189 = sadd.s32 %s188, 1
      %p192 = scmp.eq.s32.totalorder %s30, 1
      %p193 = scmp.ne.s32.totalorder %s188, %s190
      %p194 = scmp.eq.s32.totalorder %s30, 0
      %p195 = por %p193, %p194
      %p196 = scmp.ne.s32.totalorder %s188, %s190
      %p197 = scmp.eq.s32.totalorder %s35, 1
      %p198 = por %p196, %p197
      %p199 = scmp.ne.s32.totalorder %s190, %s191
      %p200 = scmp.eq.s32.totalorder %s35, 0
      %p201 = por %p199, %p200
      %p202 = scmp.ne.s32.totalorder %s190, %s191
      %p203 = scmp.eq.s32.totalorder %s36, 1
      %p204 = por %p202, %p203
      %p206 = scmp.ne.s32.totalorder %s191, %s205
      %p207 = scmp.eq.s32.totalorder %s36, 0
      %p208 = por %p206, %p207
      %s210 = sadd.s32 %s209, 1
      %p213 = scmp.eq.s32.totalorder %s30, 1
      %p214 = scmp.ne.s32.totalorder %s209, %s211
      %p215 = scmp.eq.s32.totalorder %s30, 0
      %p216 = por %p214, %p215
      %p217 = scmp.ne.s32.totalorder %s209, %s211
      %p218 = scmp.eq.s32.totalorder %s35, 1
      %p219 = por %p217, %p218
      %p220 = scmp.ne.s32.totalorder %s211, %s212
      %p221 = scmp.eq.s32.totalorder %s35, 0
      %p222 = por %p220, %p221
      %p223 = scmp.ne.s32.totalorder %s211, %s212
      %p224 = scmp.eq.s32.totalorder %s36, 1
      %p225 = por %p223, %p224
      %p227 = scmp.ne.s32.totalorder %s212, %s226
      %p228 = scmp.eq.s32.totalorder %s36, 0
      %p229 = por %p227, %p228
      %s231 = sadd.s32 %s230, 1
      %p234 = scmp.eq.s32.totalorder %s30, 1
      %p235 = scmp.ne.s32.totalorder %s230, %s232
      %p236 = scmp.eq.s32.totalorder %s30, 0
      %p237 = por %p235, %p236
      %p238 = scmp.ne.s32.totalorder %s230, %s232
      %p239 = scmp.eq.s32.totalorder %s35, 1
      %p240 = por %p238, %p239
      %p241 = scmp.ne.s32.totalorder %s232, %s233
      %p242 = scmp.eq.s32.totalorder %s35, 0
      %p243 = por %p241, %p242
      %p244 = scmp.ne.s32.totalorder %s232, %s233
      %p245 = scmp.eq.s32.totalorder %s36, 1
      %p246 = por %p244, %p245
      %p248 = scmp.ne.s32.totalorder %s233, %s247
      %p249 = scmp.eq.s32.totalorder %s36, 0
      %p250 = por %p248, %p249
      %s252 = sadd.s32 %s251, 1
      %p255 = scmp.eq.s32.totalorder %s30, 1
      %p256 = scmp.ne.s32.totalorder %s251, %s253
      %p257 = scmp.eq.s32.totalorder %s30, 0
      %p258 = por %p256, %p257
      %p259 = scmp.ne.s32.totalorder %s251, %s253
      %p260 = scmp.eq.s32.totalorder %s35, 1
      %p261 = por %p259, %p260
      %p262 = scmp.ne.s32.totalorder %s253, %s254
      %p263 = scmp.eq.s32.totalorder %s35, 0
      %p264 = por %p262, %p263
      %p265 = scmp.ne.s32.totalorder %s253, %s254
      %p266 = scmp.eq.s32.totalorder %s36, 1
      %p267 = por %p265, %p266
      %p269 = scmp.ne.s32.totalorder %s254, %s268
      %p270 = scmp.eq.s32.totalorder %s36, 0
      %p271 = por %p269, %p270
      %s273 = sadd.s32 %s272, 1
      %p276 = scmp.eq.s32.totalorder %s30, 1
      %p277 = scmp.ne.s32.totalorder %s272, %s274
      %p278 = scmp.eq.s32.totalorder %s30, 0
      %p279 = por %p277, %p278
      %p280 = scmp.ne.s32.totalorder %s272, %s274
      %p281 = scmp.eq.s32.totalorder %s35, 1
      %p282 = por %p280, %p281
      %p283 = scmp.ne.s32.totalorder %s274, %s275
      %p284 = scmp.eq.s32.totalorder %s35, 0
      %p285 = por %p283, %p284
      %p286 = scmp.ne.s32.totalorder %s274, %s275
      %p287 = scmp.eq.s32.totalorder %s36, 1
      %p288 = por %p286, %p287
      %p290 = scmp.ne.s32.totalorder %s275, %s289
      %p291 = scmp.eq.s32.totalorder %s36, 0
      %p292 = por %p290, %p291
      %s293 = ssub.s32 %s37, %s49
      %s294 = ssub.s32 %s38, %s45
      %s295 = sor.u32 %s293, %s294
      %p296 = scmp.eq.s32.totalorder %s295, 0
      %s298 = sadd.s32 %s297, 1
      %s299 = scalar_select %p296, %s297, %s298
      %p302 = pneg %p296
      %p303 = scmp.eq.s32.totalorder %s30, 1
      %p304 = por %p302, %p303
      %p305 = scmp.ne.s32.totalorder %s297, %s300
      %p306 = scmp.eq.s32.totalorder %s30, 0
      %p307 = por %p305, %p306
      %p308 = scmp.ne.s32.totalorder %s297, %s300
      %p309 = scmp.eq.s32.totalorder %s35, 1
      %p310 = por %p308, %p309
      %p311 = scmp.ne.s32.totalorder %s300, %s301
      %p312 = scmp.eq.s32.totalorder %s35, 0
      %p313 = por %p311, %p312
      %p314 = scmp.ne.s32.totalorder %s300, %s301
      %p315 = scmp.eq.s32.totalorder %s36, 1
      %p316 = por %p314, %p315
      %p318 = scmp.ne.s32.totalorder %s301, %s317
      %p319 = scmp.eq.s32.totalorder %s36, 0
      %p320 = por %p318, %p319
      %p321 = scmp.le.s32.totalorder 1, %s30
      %p322 = scmp.lt.s32.totalorder %s30, 3
      %p323 = pnand %p321, %p322
      %p324 = pneg %p323
      // Predicated region
      $region9: #{tpu_custom_call.1} parent=5 // pred_check
        _
      $region10: #{tpu_custom_call.1} parent=5 // pred_check_branch
        %326 = sbr.rel (%p323) target = $region12
      $region11: #{tpu_custom_call.1} parent=5 // pred_region
        %s327 = ssub.s32 %s30, 1
        // Predicated region
        $region13: #{tpu_custom_call.1} parent=11 // pred_check
          %p328 = pneg %p117
        $region14: #{tpu_custom_call.1} parent=11 // pred_check_branch
          %330 = sbr.rel (%p328) target = $region16
        $region15: #{tpu_custom_call.1} parent=11 // pred_region
          %s332 = ssub.s32 256, 256
          %333 = vsyncadd [#allocation6], %s332
          %s334 = sshll.u32 [#allocation7], 4
          %s335 = int_to_ptr.vmem [resolvable:$true] %s334
          %340 = dma.hbm_to_vmem [thread:$0]  %s2, 256, %s335, [#allocation6], 64, 64, 4
        $region16: #{tpu_custom_call.1} parent=11 // pred_fallthru
          _
        // Predicated region
        $region17: #{tpu_custom_call.1} parent=11 // pred_check
          %p341 = pneg %p138
        $region18: #{tpu_custom_call.1} parent=11 // pred_check_branch
          %343 = sbr.rel (%p341) target = $region20
        $region19: #{tpu_custom_call.1} parent=11 // pred_region
          %s345 = ssub.s32 256, 256
          %346 = vsyncadd [#allocation9], %s345
          %s347 = sshll.u32 [#allocation8], 4
          %s348 = int_to_ptr.vmem [resolvable:$true] %s347
          %353 = dma.hbm_to_vmem [thread:$0]  %s3, 256, %s348, [#allocation9], 64, 64, 4
        $region20: #{tpu_custom_call.1} parent=11 // pred_fallthru
          _
        // Predicated region
        $region21: #{tpu_custom_call.1} parent=11 // pred_check
          %p354 = pneg %p159
        $region22: #{tpu_custom_call.1} parent=11 // pred_check_branch
          %356 = sbr.rel (%p354) target = $region24
        $region23: #{tpu_custom_call.1} parent=11 // pred_region
          %s358 = ssub.s32 256, 256
          %359 = vsyncadd [#allocation9], %s358
          %s360 = sshll.u32 [#allocation10], 4
          %s361 = int_to_ptr.vmem [resolvable:$true] %s360
          %366 = dma.hbm_to_vmem [thread:$0]  %s4, 256, %s361, [#allocation9], 64, 64, 4
        $region24: #{tpu_custom_call.1} parent=11 // pred_fallthru
          _
        // Predicated region
        $region25: #{tpu_custom_call.1} parent=11 // pred_check
          %p367 = pneg %p180
        $region26: #{tpu_custom_call.1} parent=11 // pred_check_branch
          %369 = sbr.rel (%p367) target = $region28
        $region27: #{tpu_custom_call.1} parent=11 // pred_region
          %s371 = ssub.s32 16, 16
          %372 = vsyncadd [#allocation12], %s371
          %s374 = sshll.u32 [#allocation11], 4
          %s375 = int_to_ptr.vmem [resolvable:$true] %s374
          %377 = dma.hbm_to_vmem [thread:$0]  %s5, 16, %s375, [#allocation12]
        $region28: #{tpu_custom_call.1} parent=11 // pred_fallthru
          _
        // Predicated region
        $region29: #{tpu_custom_call.1} parent=11 // pred_check
          %p378 = pneg %p201
        $region30: #{tpu_custom_call.1} parent=11 // pred_check_branch
          %380 = sbr.rel (%p378) target = $region32
        $region31: #{tpu_custom_call.1} parent=11 // pred_region
          %s382 = ssub.s32 16, 16
          %383 = vsyncadd [#allocation12], %s382
          %s385 = sshll.u32 [#allocation13], 4
          %s386 = int_to_ptr.vmem [resolvable:$true] %s385
          %388 = dma.hbm_to_vmem [thread:$0]  %s6, 16, %s386, [#allocation12]
        $region32: #{tpu_custom_call.1} parent=11 // pred_fallthru
          _
        // Predicated region
        $region33: #{tpu_custom_call.1} parent=11 // pred_check
          %p389 = pneg %p222
        $region34: #{tpu_custom_call.1} parent=11 // pred_check_branch
          %391 = sbr.rel (%p389) target = $region36
        $region35: #{tpu_custom_call.1} parent=11 // pred_region
          %s393 = ssub.s32 256, 256
          %394 = vsyncadd [#allocation15], %s393
          %s395 = sshll.u32 [#allocation14], 4
          %s396 = int_to_ptr.vmem [resolvable:$true] %s395
          %401 = dma.hbm_to_vmem [thread:$0]  %s7, 256, %s396, [#allocation15], 64, 64, 4
        $region36: #{tpu_custom_call.1} parent=11 // pred_fallthru
          _
        // Predicated region
        $region37: #{tpu_custom_call.1} parent=11 // pred_check
          %p402 = pneg %p243
        $region38: #{tpu_custom_call.1} parent=11 // pred_check_branch
          %404 = sbr.rel (%p402) target = $region40
        $region39: #{tpu_custom_call.1} parent=11 // pred_region
          %s406 = ssub.s32 512, 512
          %407 = vsyncadd [#allocation15], %s406
          %s408 = sshll.u32 [#allocation16], 4
          %s409 = int_to_ptr.vmem [resolvable:$true] %s408
          %414 = dma.hbm_to_vmem [thread:$0]  %s8, 512, %s409, [#allocation15], 64, 64, 4
        $region40: #{tpu_custom_call.1} parent=11 // pred_fallthru
          _
        // Predicated region
        $region41: #{tpu_custom_call.1} parent=11 // pred_check
          %p415 = pneg %p264
        $region42: #{tpu_custom_call.1} parent=11 // pred_check_branch
          %417 = sbr.rel (%p415) target = $region44
        $region43: #{tpu_custom_call.1} parent=11 // pred_region
          %s419 = ssub.s32 128, 128
          %420 = vsyncadd [#allocation18], %s419
          %s422 = sshll.u32 [#allocation17], 4
          %s423 = int_to_ptr.vmem [resolvable:$true] %s422
          %425 = dma.hbm_to_vmem [thread:$0]  %s9, 128, %s423, [#allocation18]
        $region44: #{tpu_custom_call.1} parent=11 // pred_fallthru
          _
        // Predicated region
        $region45: #{tpu_custom_call.1} parent=11 // pred_check
          %p426 = pneg %p285
        $region46: #{tpu_custom_call.1} parent=11 // pred_check_branch
          %428 = sbr.rel (%p426) target = $region48
        $region47: #{tpu_custom_call.1} parent=11 // pred_region
          %s430 = ssub.s32 128, 128
          %431 = vsyncadd [#allocation18], %s430
          %s433 = sshll.u32 [#allocation19], 4
          %s434 = int_to_ptr.vmem [resolvable:$true] %s433
          %436 = dma.hbm_to_vmem [thread:$0]  %s10, 128, %s434, [#allocation18]
        $region48: #{tpu_custom_call.1} parent=11 // pred_fallthru
          _
      $region12: #{tpu_custom_call.1} parent=5 // pred_fallthru
        _
      %p437 = scmp.lt.s32.totalorder %s30, 2
      // Predicated region
      $region49: #{tpu_custom_call.1} parent=5 // pred_check
        %p438 = pneg %p437
      $region50: #{tpu_custom_call.1} parent=5 // pred_check_branch
        %440 = sbr.rel (%p438) target = $region52
      $region51: #{tpu_custom_call.1} parent=5 // pred_region
        // Predicated region
        $region53: #{tpu_custom_call.1} parent=51 // pred_check
          %p441 = pneg %p64
        $region54: #{tpu_custom_call.1} parent=51 // pred_check_branch
          %443 = sbr.rel (%p441) target = $region56
        $region55: #{tpu_custom_call.1} parent=51 // pred_region
          %s444 = sand.u32 %s54, 1
          %s445 = scalar_lea.sflag [#allocation3], %s444
          %s446 = sand.u32 %s54, 1
          %s447 = smul.addr %s446, 8
          %s448 = scalar_lea.vmem [#allocation2], %s447
          %s450 = ssub.s32 128, 128
          %451 = vsyncadd %s445, %s450
          %s452 = sadd.s32 %s38, %s37
          %s453 = smul.addr %s452, 128
          %s454 = scalar_lea.hbm %s0, %s453
          %s456 = sshll.u32 %s448, 4
          %s457 = int_to_ptr.vmem [resolvable:$true] %s456
          %459 = dma.hbm_to_vmem [thread:$0]  %s454, 128, %s457, %s445
        $region56: #{tpu_custom_call.1} parent=51 // pred_fallthru
          _
        // Predicated region
        $region57: #{tpu_custom_call.1} parent=51 // pred_check
          %p460 = pneg %p90
        $region58: #{tpu_custom_call.1} parent=51 // pred_check_branch
          %462 = sbr.rel (%p460) target = $region60
        $region59: #{tpu_custom_call.1} parent=51 // pred_region
          %s463 = sand.u32 %s30, 1
          %s464 = scalar_lea.sflag [#allocation6], %s463
          %s465 = sand.u32 %s80, 1
          %s466 = smul.addr %s465, 8
          %s467 = scalar_lea.vmem [#allocation5], %s466
          %s469 = ssub.s32 128, 128
          %470 = vsyncadd %s464, %s469
          %s471 = smul.addr %s37, 128
          %s472 = scalar_lea.hbm %s1, %s471
          %s474 = sshll.u32 %s467, 4
          %s475 = int_to_ptr.vmem [resolvable:$true] %s474
          %477 = dma.hbm_to_vmem [thread:$0]  %s472, 128, %s475, %s464
        $region60: #{tpu_custom_call.1} parent=51 // pred_fallthru
          _
      $region52: #{tpu_custom_call.1} parent=5 // pred_fallthru
        _
      %p478 = scmp.le.s32.totalorder 1, %s30
      %p479 = scmp.lt.s32.totalorder %s30, 3
      %p480 = pnand %p478, %p479
      %p481 = pneg %p480
      // Predicated region
      $region61: #{tpu_custom_call.1} parent=5 // pred_check
        _
      $region62: #{tpu_custom_call.1} parent=5 // pred_check_branch
        %483 = sbr.rel (%p480) target = $region64
      $region63: #{tpu_custom_call.1} parent=5 // pred_region
        %s484 = ssub.s32 %s30, 1
        %s485 = sand.u32 %s57, 1
        %s486 = scalar_lea.sflag [#allocation3], %s485
        %s487 = sand.u32 %s57, 1
        %s488 = smul.addr %s487, 8
        %s489 = scalar_lea.vmem [#allocation2], %s488
        // Predicated region
        $region65: #{tpu_custom_call.1} parent=63 // pred_check
          %p490 = pneg %p70
        $region66: #{tpu_custom_call.1} parent=63 // pred_check_branch
          %492 = sbr.rel (%p490) target = $region68
        $region67: #{tpu_custom_call.1} parent=63 // pred_region
          %493 = dma.done %s486, 128
        $region68: #{tpu_custom_call.1} parent=63 // pred_fallthru
          _
        %s494 = sand.u32 %s35, 1
        %s495 = scalar_lea.sflag [#allocation6], %s494
        %s496 = sand.u32 %s83, 1
        %s497 = smul.addr %s496, 8
        %s498 = scalar_lea.vmem [#allocation5], %s497
        // Predicated region
        $region69: #{tpu_custom_call.1} parent=63 // pred_check
          %p499 = pneg %p96
        $region70: #{tpu_custom_call.1} parent=63 // pred_check_branch
          %501 = sbr.rel (%p499) target = $region72
        $region71: #{tpu_custom_call.1} parent=63 // pred_region
          %502 = dma.done %s495, 128
        $region72: #{tpu_custom_call.1} parent=63 // pred_fallthru
          _
        // Predicated region
        $region73: #{tpu_custom_call.1} parent=63 // pred_check
          %p503 = pneg %p117
        $region74: #{tpu_custom_call.1} parent=63 // pred_check_branch
          %505 = sbr.rel (%p503) target = $region76
        $region75: #{tpu_custom_call.1} parent=63 // pred_region
          %506 = dma.done [#allocation6], 256
        $region76: #{tpu_custom_call.1} parent=63 // pred_fallthru
          _
        // Predicated region
        $region77: #{tpu_custom_call.1} parent=63 // pred_check
          %p507 = pneg %p138
        $region78: #{tpu_custom_call.1} parent=63 // pred_check_branch
          %509 = sbr.rel (%p507) target = $region80
        $region79: #{tpu_custom_call.1} parent=63 // pred_region
          %510 = dma.done [#allocation9], 256
        $region80: #{tpu_custom_call.1} parent=63 // pred_fallthru
          _
        // Predicated region
        $region81: #{tpu_custom_call.1} parent=63 // pred_check
          %p511 = pneg %p159
        $region82: #{tpu_custom_call.1} parent=63 // pred_check_branch
          %513 = sbr.rel (%p511) target = $region84
        $region83: #{tpu_custom_call.1} parent=63 // pred_region
          %514 = dma.done [#allocation9], 256
        $region84: #{tpu_custom_call.1} parent=63 // pred_fallthru
          _
        // Predicated region
        $region85: #{tpu_custom_call.1} parent=63 // pred_check
          %p515 = pneg %p180
        $region86: #{tpu_custom_call.1} parent=63 // pred_check_branch
          %517 = sbr.rel (%p515) target = $region88
        $region87: #{tpu_custom_call.1} parent=63 // pred_region
          %518 = dma.done [#allocation12], 16
        $region88: #{tpu_custom_call.1} parent=63 // pred_fallthru
          _
        // Predicated region
        $region89: #{tpu_custom_call.1} parent=63 // pred_check
          %p519 = pneg %p201
        $region90: #{tpu_custom_call.1} parent=63 // pred_check_branch
          %521 = sbr.rel (%p519) target = $region92
        $region91: #{tpu_custom_call.1} parent=63 // pred_region
          %522 = dma.done [#allocation12], 16
        $region92: #{tpu_custom_call.1} parent=63 // pred_fallthru
          _
        // Predicated region
        $region93: #{tpu_custom_call.1} parent=63 // pred_check
          %p523 = pneg %p222
        $region94: #{tpu_custom_call.1} parent=63 // pred_check_branch
          %525 = sbr.rel (%p523) target = $region96
        $region95: #{tpu_custom_call.1} parent=63 // pred_region
          %526 = dma.done [#allocation15], 256
        $region96: #{tpu_custom_call.1} parent=63 // pred_fallthru
          _
        // Predicated region
        $region97: #{tpu_custom_call.1} parent=63 // pred_check
          %p527 = pneg %p243
        $region98: #{tpu_custom_call.1} parent=63 // pred_check_branch
          %529 = sbr.rel (%p527) target = $region100
        $region99: #{tpu_custom_call.1} parent=63 // pred_region
          %530 = dma.done [#allocation15], 512
        $region100: #{tpu_custom_call.1} parent=63 // pred_fallthru
          _
        // Predicated region
        $region101: #{tpu_custom_call.1} parent=63 // pred_check
          %p531 = pneg %p264
        $region102: #{tpu_custom_call.1} parent=63 // pred_check_branch
          %533 = sbr.rel (%p531) target = $region104
        $region103: #{tpu_custom_call.1} parent=63 // pred_region
          %534 = dma.done [#allocation18], 128
        $region104: #{tpu_custom_call.1} parent=63 // pred_fallthru
          _
        // Predicated region
        $region105: #{tpu_custom_call.1} parent=63 // pred_check
          %p535 = pneg %p285
        $region106: #{tpu_custom_call.1} parent=63 // pred_check_branch
          %537 = sbr.rel (%p535) target = $region108
        $region107: #{tpu_custom_call.1} parent=63 // pred_region
          %538 = dma.done [#allocation18], 128
        $region108: #{tpu_custom_call.1} parent=63 // pred_fallthru
          _
        %s539 = sand.u32 %s57, 1
        %s540 = scalar_lea.sflag [#allocation3], %s539
        %s541 = sand.u32 %s57, 1
        %s542 = smul.addr %s541, 8
        %s543 = scalar_lea.vmem [#allocation2], %s542
        %p544 = pneg %p70
        %p545 = pneg %p67
        %s546 = sand.u32 %s35, 1
        %s547 = scalar_lea.sflag [#allocation6], %s546
        %s548 = sand.u32 %s83, 1
        %s549 = smul.addr %s548, 8
        %s550 = scalar_lea.vmem [#allocation5], %s549
        %p551 = pneg %p96
        %p552 = pneg %p93
        %p553 = pneg %p117
        %p554 = pneg %p114
        %p555 = pneg %p138
        %p556 = pneg %p135
        %p557 = pneg %p159
        %p558 = pneg %p156
        %p559 = pneg %p180
        %p560 = pneg %p177
        %p561 = pneg %p201
        %p562 = pneg %p198
        %p563 = pneg %p222
        %p564 = pneg %p219
        %p565 = pneg %p243
        %p566 = pneg %p240
        %p567 = pneg %p264
        %p568 = pneg %p261
        %p569 = pneg %p285
        %p570 = pneg %p282
        %p571 = pneg %p313
        %p572 = pneg %p310
        %s573 = sand.u32 %s300, 1
        %s574 = scalar_lea.sflag [#allocation4], %s573
        %s575 = sand.u32 %s300, 1
        %s576 = smul.addr %s575, 8
        %s577 = scalar_lea.vmem [#allocation20], %s576
        %s579 = smul.u32 %s40, 8
        %v580 = vld [vmem:[%s489] sm:$0xff]
        %v581 = vld [vmem:[#allocation11] sm:$0x1]
        %v582 = vmul.f32 %v580, %v580
        %vm583 = vcmask 261120
        %v584 = vsel %vm583, %v582, 0.0
        %585 = vadd.xlane.f32.xlu0 %v584
        %v586 = vpop.xlane.xlu0 %585
        %v587 = vrcp.pop 32.0
        %v588 = vmul.f32 %v586, %v587
        %v589 = vadd.f32 %v588, 1e-05
        %v590 = vrsqrt.pop %v589
        %v591 = vmul.f32 %v580, %v590
        %v593 = vlaneseq
        %v594 = vshrl.u32 %v593, 7
        %v595 = vsub.s32 0, %v594
        %v596 = vrot.slane %v581, %v595
        %v598 = vmul.f32 %v591, %v596
        %v599 = vpack.c.bf16 %v598, %v598
        %v600 = vld [vmem:[#allocation7] sm:$0xf]
        %v601 = vld [vmem:[#allocation7 + $0x4] sm:$0xf]
        %v602 = vld [vmem:[#allocation7 + $0x8] sm:$0xf]
        %v603 = vld [vmem:[#allocation7 + $0xc] sm:$0xf]
        %v608 = vunpack.c.l.b16 %v600
        %v609 = vunpack.c.l.b16 %v601
        %v610 = vunpack.c.l.b16 %v602
        %v611 = vunpack.c.l.b16 %v603
        %v612 = vpack.c.b16 %v609, %v608
        %v613 = vpack.c.b16 %v611, %v610
        %v617 = vsel %vm583, %v599, 0
        %619 = vmatprep.subr.bf16.mxu0 0
        %620 = vmatpush1.bf16.msra.mxu0 %v612
        %621 = vmatprep.subr.bf16.mxu0 0
        %622 = vmatpush1.bf16.msra.mxu0 %v613
        %623 = vmatprep.subr.bf16.mxu0 0
        %624 = vmatpush1.bf16.msra.mxu0 0
        %625 = vmatprep.subr.bf16.mxu0 0
        %626 = vmatpush1.bf16.msra.mxu0 0
        %627 = vmatprep.subr.bf16.mxu0 0
        %628 = vmatpush1.bf16.msra.mxu0 0
        %629 = vmatprep.subr.bf16.mxu0 0
        %630 = vmatpush1.bf16.msra.mxu0 0
        %631 = vmatprep.subr.bf16.mxu0 0
        %632 = vmatpush1.bf16.msra.mxu0 0
        %633 = vmatprep.subr.bf16.mxu0 0
        %634 = vmatpush1.bf16.msra.mxu0 0
        %635 = vmatprep.subr.bf16.mxu0 0
        %636 = vmatpush1.bf16.msra.mxu0 0
        %637 = vmatprep.subr.bf16.mxu0 0
        %638 = vmatpush1.bf16.msra.mxu0 0
        %639 = vmatprep.subr.bf16.mxu0 0
        %640 = vmatpush1.bf16.msra.mxu0 0
        %641 = vmatprep.subr.bf16.mxu0 0
        %642 = vmatpush1.bf16.msra.mxu0 0
        %643 = vmatprep.subr.bf16.mxu0 0
        %644 = vmatpush1.bf16.msra.mxu0 0
        %645 = vmatprep.subr.bf16.mxu0 0
        %646 = vmatpush1.bf16.msra.mxu0 0
        %647 = vmatprep.subr.bf16.mxu0 0
        %648 = vmatpush1.bf16.msra.mxu0 0
        %649 = vmatprep.subr.bf16.mxu0 0
        %650 = vmatpush1.bf16.msra.mxu0 0
        %651 = vmatprep.mubr.bf16.mxu0 0
        %652 = vmatmul.mubr.bf16.gmra.mrb[0].mxu0 %v617
        %v653 = vpop.f32.mrb[0].mxu0
        %v654 = vadd.f32 0.0, %v653
        %v655 = vpop.f32.mrb[0].mxu0
        %v656 = vpop.f32.mrb[0].mxu0
        %v657 = vpop.f32.mrb[0].mxu0
        %658 = vdwg.mxu0
        %660 = vrot.lane.b32.xlu0 %v654, 120
        %v661 = vpop.permute.xlu0 %660
        %663 = vrot.lane.b32.xlu0 %v654, 112
        %v664 = vpop.permute.xlu0 %663
        %666 = vrot.lane.b32.xlu0 %v654, 104
        %v667 = vpop.permute.xlu0 %666
        %v669 = vcombine.low %v654, %v664
        %v670 = vcombine.high %v654, %v664
        %v672 = vunpack.c.l.s4 1983009808
        %v673 = vunpack.c.0.s8 %v672
        %v674 = vlaneseq
        %v675 = vshrl.u32 %v674, 7
        %v676 = vsub.s32 %v673, %v675
        %v677 = vrot.slane %v669, %v676
        %v679 = vunpack.c.l.s4 1983009808
        %v680 = vunpack.c.0.s8 %v679
        %v681 = vlaneseq
        %v682 = vshrl.u32 %v681, 7
        %v683 = vsub.s32 %v680, %v682
        %v684 = vrot.slane %v670, %v683
        %v685 = vcombine.low %v661, %v667
        %v686 = vcombine.high %v661, %v667
        %v688 = vunpack.c.l.s4 1983009808
        %v689 = vunpack.c.0.s8 %v688
        %v690 = vlaneseq
        %v691 = vshrl.u32 %v690, 7
        %v692 = vsub.s32 %v689, %v691
        %v693 = vrot.slane %v685, %v692
        %v695 = vunpack.c.l.s4 1983009808
        %v696 = vunpack.c.0.s8 %v695
        %v697 = vlaneseq
        %v698 = vshrl.u32 %v697, 7
        %v699 = vsub.s32 %v696, %v698
        %v700 = vrot.slane %v686, %v699
        %v701 = vcombine.low %v677, %v693
        %v702 = vcombine.high %v677, %v693
        %v704 = vunpack.c.l.s4 1934713408
        %v705 = vunpack.c.0.s8 %v704
        %v706 = vlaneseq
        %v707 = vshrl.u32 %v706, 7
        %v708 = vsub.s32 %v705, %v707
        %v709 = vrot.slane %v701, %v708
        %v711 = vunpack.c.l.s4 1934713408
        %v712 = vunpack.c.0.s8 %v711
        %v713 = vlaneseq
        %v714 = vshrl.u32 %v713, 7
        %v715 = vsub.s32 %v712, %v714
        %v716 = vrot.slane %v702, %v715
        %v717 = vcombine.low %v684, %v700
        %v718 = vcombine.high %v684, %v700
        %v720 = vunpack.c.l.s4 1934713408
        %v721 = vunpack.c.0.s8 %v720
        %v722 = vlaneseq
        %v723 = vshrl.u32 %v722, 7
        %v724 = vsub.s32 %v721, %v723
        %v725 = vrot.slane %v717, %v724
        %v727 = vunpack.c.l.s4 1934713408
        %v728 = vunpack.c.0.s8 %v727
        %v729 = vlaneseq
        %v730 = vshrl.u32 %v729, 7
        %v731 = vsub.s32 %v728, %v730
        %v732 = vrot.slane %v718, %v731
        %v733 = vcombine.high %v709, 0.0
        %v734 = vcombine.high %v716, 0.0
        %v735 = vcombine.high %v725, 0.0
        %v736 = vcombine.high %v732, 0.0
        %v737 = vcombine.low %v709, %v716
        %v739 = vunpack.c.l.s4 1983009808
        %v740 = vunpack.c.0.s8 %v739
        %v741 = vlaneseq
        %v742 = vshrl.u32 %v741, 7
        %v743 = vsub.s32 %v740, %v742
        %v744 = vrot.slane %v737, %v743
        %v745 = vcombine.low %v733, %v734
        %v747 = vunpack.c.l.s4 1983009808
        %v748 = vunpack.c.0.s8 %v747
        %v749 = vlaneseq
        %v750 = vshrl.u32 %v749, 7
        %v751 = vsub.s32 %v748, %v750
        %v752 = vrot.slane %v745, %v751
        %v753 = vcombine.low %v725, %v732
        %v755 = vunpack.c.l.s4 1983009808
        %v756 = vunpack.c.0.s8 %v755
        %v757 = vlaneseq
        %v758 = vshrl.u32 %v757, 7
        %v759 = vsub.s32 %v756, %v758
        %v760 = vrot.slane %v753, %v759
        %v761 = vcombine.low %v735, %v736
        %v763 = vunpack.c.l.s4 1983009808
        %v764 = vunpack.c.0.s8 %v763
        %v765 = vlaneseq
        %v766 = vshrl.u32 %v765, 7
        %v767 = vsub.s32 %v764, %v766
        %v768 = vrot.slane %v761, %v767
        %v769 = vcombine.low %v744, %v752
        %v770 = vcombine.high %v744, %v752
        %v772 = vunpack.c.l.s4 1934713408
        %v773 = vunpack.c.0.s8 %v772
        %v774 = vlaneseq
        %v775 = vshrl.u32 %v774, 7
        %v776 = vsub.s32 %v773, %v775
        %v777 = vrot.slane %v769, %v776
        %v779 = vunpack.c.l.s4 1934713408
        %v780 = vunpack.c.0.s8 %v779
        %v781 = vlaneseq
        %v782 = vshrl.u32 %v781, 7
        %v783 = vsub.s32 %v780, %v782
        %v784 = vrot.slane %v770, %v783
        %v785 = vcombine.low %v760, %v768
        %v786 = vcombine.high %v760, %v768
        %v788 = vunpack.c.l.s4 1934713408
        %v789 = vunpack.c.0.s8 %v788
        %v790 = vlaneseq
        %v791 = vshrl.u32 %v790, 7
        %v792 = vsub.s32 %v789, %v791
        %v793 = vrot.slane %v785, %v792
        %v795 = vunpack.c.l.s4 1934713408
        %v796 = vunpack.c.0.s8 %v795
        %v797 = vlaneseq
        %v798 = vshrl.u32 %v797, 7
        %v799 = vsub.s32 %v796, %v798
        %v800 = vrot.slane %v786, %v799
        %v801 = vcombine.low %v777, %v793
        %v802 = vcombine.high %v777, %v793
        %v803 = vcombine.low %v784, %v800
        %v804 = vcombine.high %v784, %v800
        %s805 = scalar_lea.vmem [#allocation17], %s579
        %v806 = vld [vmem:[%s805] sm:$0xff]
        %s807 = scalar_lea.vmem [#allocation19], %s579
        %v808 = vld [vmem:[%s807] sm:$0xff]
        %v809 = vmul.f32 %v801, %v806
        %v810 = vmul.f32 %v802, %v806
        %v811 = vmul.f32 %v803, %v806
        %v812 = vmul.f32 %v804, %v806
        %814 = vrot.lane.b32.xlu0 %v808, 4
        %v815 = vpop.permute.xlu0 %814
        %v817 = vmul.f32 %v801, %v815
        %v818 = vmul.f32 %v802, %v815
        %v819 = vmul.f32 %v803, %v815
        %v820 = vmul.f32 %v804, %v815
        %825 = vrot.lane.b32.xlu0 %v817, 124
        %v826 = vpop.permute.xlu0 %825
        %827 = vrot.lane.b32.xlu0 %v818, 124
        %v828 = vpop.permute.xlu0 %827
        %829 = vrot.lane.b32.xlu0 %v819, 124
        %v830 = vpop.permute.xlu0 %829
        %831 = vrot.lane.b32.xlu0 %v820, 124
        %v832 = vpop.permute.xlu0 %831
        %v837 = vsub.f32 %v809, %v826
        %v838 = vsub.f32 %v810, %v828
        %v839 = vsub.f32 %v811, %v830
        %v840 = vsub.f32 %v812, %v832
        %842 = vrot.lane.b32.xlu0 %v806, 4
        %v843 = vpop.permute.xlu0 %842
        %v845 = vmul.f32 %v801, %v843
        %v846 = vmul.f32 %v802, %v843
        %v847 = vmul.f32 %v803, %v843
        %v848 = vmul.f32 %v804, %v843
        %v849 = vmul.f32 %v801, %v808
        %v850 = vmul.f32 %v802, %v808
        %v851 = vmul.f32 %v803, %v808
        %v852 = vmul.f32 %v804, %v808
        %857 = vrot.lane.b32.xlu0 %v849, 4
        %v858 = vpop.permute.xlu0 %857
        %859 = vrot.lane.b32.xlu0 %v850, 4
        %v860 = vpop.permute.xlu0 %859
        %861 = vrot.lane.b32.xlu0 %v851, 4
        %v862 = vpop.permute.xlu0 %861
        %863 = vrot.lane.b32.xlu0 %v852, 4
        %v864 = vpop.permute.xlu0 %863
        %v869 = vadd.f32 %v845, %v858
        %v870 = vadd.f32 %v846, %v860
        %v871 = vadd.f32 %v847, %v862
        %v872 = vadd.f32 %v848, %v864
        %vm873 = vcmask 31744
        %v874 = vsel %vm873, %v837, %v869
        %v875 = vsel %vm873, %v838, %v870
        %v876 = vsel %vm873, %v839, %v871
        %v877 = vsel %vm873, %v840, %v872
        %v878 = vpack.c.bf16 %v874, %v874
        %v879 = vpack.c.bf16 %v875, %v875
        %v880 = vpack.c.bf16 %v876, %v876
        %v881 = vpack.c.bf16 %v877, %v877
        %v882 = vlaneseq
        %v883 = vshrl.u32 %v882, 7
        %v884 = vstv %s579
        %v885 = vadd.s32 %v884, %v883
        %v886 = vld [vmem:[#allocation8] sm:$0xf]
        %v887 = vld [vmem:[#allocation8 + $0x4] sm:$0xf]
        %v888 = vld [vmem:[#allocation8 + $0x8] sm:$0xf]
        %v889 = vld [vmem:[#allocation8 + $0xc] sm:$0xf]
        %s890 = sadd.s32 %s40, 1
        // While loop
        $region109: #{tpu_custom_call.1} parent=63 // loop_pre_header
          _
        $region110: #{tpu_custom_call.1} parent=63 // loop_header
          %s892 = sphi 0, %s894
          %p893 = scmp.ge.s32.totalorder %s892, %s890
          %v897 = vphi -1e+30, %v1559
          %v898 = vphi -1e+30, %v1560
          %v899 = vphi -1e+30, %v1561
          %v900 = vphi -1e+30, %v1562
          %v901 = vphi 0.0, %v1603
          %v902 = vphi 0.0, %v1604
          %v903 = vphi 0.0, %v1605
          %v904 = vphi 0.0, %v1606
          %v905 = vphi 0.0, %v1800
          %v906 = vphi 0.0, %v1801
          %v907 = vphi 0.0, %v1802
          %v908 = vphi 0.0, %v1803
        $region111: #{tpu_custom_call.1} parent=63 // loop_header_branch
          %896 = sbr.rel (%p893) target = $region115
        $region112: #{tpu_custom_call.1} parent=63 // loop_body
          %s909 = smul.u32 %s892, 8
          %s910 = scalar_lea.vmem %s498, %s909 [#allocation5]
          %v911 = vld [vmem:[%s910] sm:$0xff]
          %v912 = vmul.f32 %v911, %v911
          %v913 = vsel %vm583, %v912, 0.0
          %914 = vadd.xlane.f32.xlu0 %v913
          %v915 = vpop.xlane.xlu0 %914
          %v916 = vmul.f32 %v915, %v587
          %v917 = vadd.f32 %v916, 1e-05
          %v918 = vrsqrt.pop %v917
          %v919 = vmul.f32 %v911, %v918
          %v920 = vmul.f32 %v919, %v596
          %v921 = vpack.c.bf16 %v920, %v920
          %v926 = vunpack.c.l.b16 %v886
          %v927 = vunpack.c.l.b16 %v887
          %v928 = vunpack.c.l.b16 %v888
          %v929 = vunpack.c.l.b16 %v889
          %v930 = vpack.c.b16 %v927, %v926
          %v931 = vpack.c.b16 %v929, %v928
          %v935 = vsel %vm583, %v921, 0
          %937 = vmatprep.subr.bf16.mxu0 0
          %938 = vmatpush1.bf16.msra.mxu0 %v930
          %939 = vmatprep.subr.bf16.mxu0 0
          %940 = vmatpush1.bf16.msra.mxu0 %v931
          %941 = vmatprep.subr.bf16.mxu0 0
          %942 = vmatpush1.bf16.msra.mxu0 0
          %943 = vmatprep.subr.bf16.mxu0 0
          %944 = vmatpush1.bf16.msra.mxu0 0
          %945 = vmatprep.subr.bf16.mxu0 0
          %946 = vmatpush1.bf16.msra.mxu0 0
          %947 = vmatprep.subr.bf16.mxu0 0
          %948 = vmatpush1.bf16.msra.mxu0 0
          %949 = vmatprep.subr.bf16.mxu0 0
          %950 = vmatpush1.bf16.msra.mxu0 0
          %951 = vmatprep.subr.bf16.mxu0 0
          %952 = vmatpush1.bf16.msra.mxu0 0
          %953 = vmatprep.subr.bf16.mxu0 0
          %954 = vmatpush1.bf16.msra.mxu0 0
          %955 = vmatprep.subr.bf16.mxu0 0
          %956 = vmatpush1.bf16.msra.mxu0 0
          %957 = vmatprep.subr.bf16.mxu0 0
          %958 = vmatpush1.bf16.msra.mxu0 0
          %959 = vmatprep.subr.bf16.mxu0 0
          %960 = vmatpush1.bf16.msra.mxu0 0
          %961 = vmatprep.subr.bf16.mxu0 0
          %962 = vmatpush1.bf16.msra.mxu0 0
          %963 = vmatprep.subr.bf16.mxu0 0
          %964 = vmatpush1.bf16.msra.mxu0 0
          %965 = vmatprep.subr.bf16.mxu0 0
          %966 = vmatpush1.bf16.msra.mxu0 0
          %967 = vmatprep.subr.bf16.mxu0 0
          %968 = vmatpush1.bf16.msra.mxu0 0
          %969 = vmatprep.mubr.bf16.mxu0 0
          %970 = vmatmul.mubr.bf16.gmra.mrb[0].mxu0 %v935
          %v971 = vpop.f32.mrb[0].mxu0
          %v972 = vadd.f32 0.0, %v971
          %v973 = vpop.f32.mrb[0].mxu0
          %v974 = vpop.f32.mrb[0].mxu0
          %v975 = vpop.f32.mrb[0].mxu0
          %976 = vdwg.mxu0
          %978 = vrot.lane.b32.xlu0 %v972, 120
          %v979 = vpop.permute.xlu0 %978
          %981 = vrot.lane.b32.xlu0 %v972, 112
          %v982 = vpop.permute.xlu0 %981
          %984 = vrot.lane.b32.xlu0 %v972, 104
          %v985 = vpop.permute.xlu0 %984
          %v987 = vcombine.low %v972, %v982
          %v988 = vcombine.high %v972, %v982
          %v990 = vunpack.c.l.s4 1983009808
          %v991 = vunpack.c.0.s8 %v990
          %v992 = vlaneseq
          %v993 = vshrl.u32 %v992, 7
          %v994 = vsub.s32 %v991, %v993
          %v995 = vrot.slane %v987, %v994
          %v997 = vunpack.c.l.s4 1983009808
          %v998 = vunpack.c.0.s8 %v997
          %v999 = vlaneseq
          %v1000 = vshrl.u32 %v999, 7
          %v1001 = vsub.s32 %v998, %v1000
          %v1002 = vrot.slane %v988, %v1001
          %v1003 = vcombine.low %v979, %v985
          %v1004 = vcombine.high %v979, %v985
          %v1006 = vunpack.c.l.s4 1983009808
          %v1007 = vunpack.c.0.s8 %v1006
          %v1008 = vlaneseq
          %v1009 = vshrl.u32 %v1008, 7
          %v1010 = vsub.s32 %v1007, %v1009
          %v1011 = vrot.slane %v1003, %v1010
          %v1013 = vunpack.c.l.s4 1983009808
          %v1014 = vunpack.c.0.s8 %v1013
          %v1015 = vlaneseq
          %v1016 = vshrl.u32 %v1015, 7
          %v1017 = vsub.s32 %v1014, %v1016
          %v1018 = vrot.slane %v1004, %v1017
          %v1019 = vcombine.low %v995, %v1011
          %v1020 = vcombine.high %v995, %v1011
          %v1022 = vunpack.c.l.s4 1934713408
          %v1023 = vunpack.c.0.s8 %v1022
          %v1024 = vlaneseq
          %v1025 = vshrl.u32 %v1024, 7
          %v1026 = vsub.s32 %v1023, %v1025
          %v1027 = vrot.slane %v1019, %v1026
          %v1029 = vunpack.c.l.s4 1934713408
          %v1030 = vunpack.c.0.s8 %v1029
          %v1031 = vlaneseq
          %v1032 = vshrl.u32 %v1031, 7
          %v1033 = vsub.s32 %v1030, %v1032
          %v1034 = vrot.slane %v1020, %v1033
          %v1035 = vcombine.low %v1002, %v1018
          %v1036 = vcombine.high %v1002, %v1018
          %v1038 = vunpack.c.l.s4 1934713408
          %v1039 = vunpack.c.0.s8 %v1038
          %v1040 = vlaneseq
          %v1041 = vshrl.u32 %v1040, 7
          %v1042 = vsub.s32 %v1039, %v1041
          %v1043 = vrot.slane %v1035, %v1042
          %v1045 = vunpack.c.l.s4 1934713408
          %v1046 = vunpack.c.0.s8 %v1045
          %v1047 = vlaneseq
          %v1048 = vshrl.u32 %v1047, 7
          %v1049 = vsub.s32 %v1046, %v1048
          %v1050 = vrot.slane %v1036, %v1049
          %v1051 = vcombine.high %v1027, 0.0
          %v1052 = vcombine.high %v1034, 0.0
          %v1053 = vcombine.high %v1043, 0.0
          %v1054 = vcombine.high %v1050, 0.0
          %v1055 = vcombine.low %v1027, %v1034
          %v1057 = vunpack.c.l.s4 1983009808
          %v1058 = vunpack.c.0.s8 %v1057
          %v1059 = vlaneseq
          %v1060 = vshrl.u32 %v1059, 7
          %v1061 = vsub.s32 %v1058, %v1060
          %v1062 = vrot.slane %v1055, %v1061
          %v1063 = vcombine.low %v1051, %v1052
          %v1065 = vunpack.c.l.s4 1983009808
          %v1066 = vunpack.c.0.s8 %v1065
          %v1067 = vlaneseq
          %v1068 = vshrl.u32 %v1067, 7
          %v1069 = vsub.s32 %v1066, %v1068
          %v1070 = vrot.slane %v1063, %v1069
          %v1071 = vcombine.low %v1043, %v1050
          %v1073 = vunpack.c.l.s4 1983009808
          %v1074 = vunpack.c.0.s8 %v1073
          %v1075 = vlaneseq
          %v1076 = vshrl.u32 %v1075, 7
          %v1077 = vsub.s32 %v1074, %v1076
          %v1078 = vrot.slane %v1071, %v1077
          %v1079 = vcombine.low %v1053, %v1054
          %v1081 = vunpack.c.l.s4 1983009808
          %v1082 = vunpack.c.0.s8 %v1081
          %v1083 = vlaneseq
          %v1084 = vshrl.u32 %v1083, 7
          %v1085 = vsub.s32 %v1082, %v1084
          %v1086 = vrot.slane %v1079, %v1085
          %v1087 = vcombine.low %v1062, %v1070
          %v1088 = vcombine.high %v1062, %v1070
          %v1090 = vunpack.c.l.s4 1934713408
          %v1091 = vunpack.c.0.s8 %v1090
          %v1092 = vlaneseq
          %v1093 = vshrl.u32 %v1092, 7
          %v1094 = vsub.s32 %v1091, %v1093
          %v1095 = vrot.slane %v1087, %v1094
          %v1097 = vunpack.c.l.s4 1934713408
          %v1098 = vunpack.c.0.s8 %v1097
          %v1099 = vlaneseq
          %v1100 = vshrl.u32 %v1099, 7
          %v1101 = vsub.s32 %v1098, %v1100
          %v1102 = vrot.slane %v1088, %v1101
          %v1103 = vcombine.low %v1078, %v1086
          %v1104 = vcombine.high %v1078, %v1086
          %v1106 = vunpack.c.l.s4 1934713408
          %v1107 = vunpack.c.0.s8 %v1106
          %v1108 = vlaneseq
          %v1109 = vshrl.u32 %v1108, 7
          %v1110 = vsub.s32 %v1107, %v1109
          %v1111 = vrot.slane %v1103, %v1110
          %v1113 = vunpack.c.l.s4 1934713408
          %v1114 = vunpack.c.0.s8 %v1113
          %v1115 = vlaneseq
          %v1116 = vshrl.u32 %v1115, 7
          %v1117 = vsub.s32 %v1114, %v1116
          %v1118 = vrot.slane %v1104, %v1117
          %v1119 = vcombine.low %v1095, %v1111
          %v1120 = vcombine.high %v1095, %v1111
          %v1121 = vcombine.low %v1102, %v1118
          %v1122 = vcombine.high %v1102, %v1118
          %1123 = vrot.lane.b32.xlu0 %v972, 96
          %v1124 = vpop.permute.xlu0 %1123
          %1125 = vrot.lane.b32.xlu0 %v979, 96
          %v1126 = vpop.permute.xlu0 %1125
          %1127 = vrot.lane.b32.xlu0 %v982, 96
          %v1128 = vpop.permute.xlu0 %1127
          %1129 = vrot.lane.b32.xlu0 %v985, 96
          %v1130 = vpop.permute.xlu0 %1129
          %v1135 = vcombine.low %v1124, %v1128
          %v1136 = vcombine.high %v1124, %v1128
          %v1138 = vunpack.c.l.s4 1983009808
          %v1139 = vunpack.c.0.s8 %v1138
          %v1140 = vlaneseq
          %v1141 = vshrl.u32 %v1140, 7
          %v1142 = vsub.s32 %v1139, %v1141
          %v1143 = vrot.slane %v1135, %v1142
          %v1145 = vunpack.c.l.s4 1983009808
          %v1146 = vunpack.c.0.s8 %v1145
          %v1147 = vlaneseq
          %v1148 = vshrl.u32 %v1147, 7
          %v1149 = vsub.s32 %v1146, %v1148
          %v1150 = vrot.slane %v1136, %v1149
          %v1151 = vcombine.low %v1126, %v1130
          %v1152 = vcombine.high %v1126, %v1130
          %v1154 = vunpack.c.l.s4 1983009808
          %v1155 = vunpack.c.0.s8 %v1154
          %v1156 = vlaneseq
          %v1157 = vshrl.u32 %v1156, 7
          %v1158 = vsub.s32 %v1155, %v1157
          %v1159 = vrot.slane %v1151, %v1158
          %v1161 = vunpack.c.l.s4 1983009808
          %v1162 = vunpack.c.0.s8 %v1161
          %v1163 = vlaneseq
          %v1164 = vshrl.u32 %v1163, 7
          %v1165 = vsub.s32 %v1162, %v1164
          %v1166 = vrot.slane %v1152, %v1165
          %v1167 = vcombine.low %v1143, %v1159
          %v1168 = vcombine.high %v1143, %v1159
          %v1170 = vunpack.c.l.s4 1934713408
          %v1171 = vunpack.c.0.s8 %v1170
          %v1172 = vlaneseq
          %v1173 = vshrl.u32 %v1172, 7
          %v1174 = vsub.s32 %v1171, %v1173
          %v1175 = vrot.slane %v1167, %v1174
          %v1177 = vunpack.c.l.s4 1934713408
          %v1178 = vunpack.c.0.s8 %v1177
          %v1179 = vlaneseq
          %v1180 = vshrl.u32 %v1179, 7
          %v1181 = vsub.s32 %v1178, %v1180
          %v1182 = vrot.slane %v1168, %v1181
          %v1183 = vcombine.low %v1150, %v1166
          %v1184 = vcombine.high %v1150, %v1166
          %v1186 = vunpack.c.l.s4 1934713408
          %v1187 = vunpack.c.0.s8 %v1186
          %v1188 = vlaneseq
          %v1189 = vshrl.u32 %v1188, 7
          %v1190 = vsub.s32 %v1187, %v1189
          %v1191 = vrot.slane %v1183, %v1190
          %v1193 = vunpack.c.l.s4 1934713408
          %v1194 = vunpack.c.0.s8 %v1193
          %v1195 = vlaneseq
          %v1196 = vshrl.u32 %v1195, 7
          %v1197 = vsub.s32 %v1194, %v1196
          %v1198 = vrot.slane %v1184, %v1197
          %v1199 = vcombine.high %v1175, 0.0
          %v1200 = vcombine.high %v1182, 0.0
          %v1201 = vcombine.high %v1191, 0.0
          %v1202 = vcombine.high %v1198, 0.0
          %v1203 = vcombine.low %v1175, %v1182
          %v1205 = vunpack.c.l.s4 1983009808
          %v1206 = vunpack.c.0.s8 %v1205
          %v1207 = vlaneseq
          %v1208 = vshrl.u32 %v1207, 7
          %v1209 = vsub.s32 %v1206, %v1208
          %v1210 = vrot.slane %v1203, %v1209
          %v1211 = vcombine.low %v1199, %v1200
          %v1213 = vunpack.c.l.s4 1983009808
          %v1214 = vunpack.c.0.s8 %v1213
          %v1215 = vlaneseq
          %v1216 = vshrl.u32 %v1215, 7
          %v1217 = vsub.s32 %v1214, %v1216
          %v1218 = vrot.slane %v1211, %v1217
          %v1219 = vcombine.low %v1191, %v1198
          %v1221 = vunpack.c.l.s4 1983009808
          %v1222 = vunpack.c.0.s8 %v1221
          %v1223 = vlaneseq
          %v1224 = vshrl.u32 %v1223, 7
          %v1225 = vsub.s32 %v1222, %v1224
          %v1226 = vrot.slane %v1219, %v1225
          %v1227 = vcombine.low %v1201, %v1202
          %v1229 = vunpack.c.l.s4 1983009808
          %v1230 = vunpack.c.0.s8 %v1229
          %v1231 = vlaneseq
          %v1232 = vshrl.u32 %v1231, 7
          %v1233 = vsub.s32 %v1230, %v1232
          %v1234 = vrot.slane %v1227, %v1233
          %v1235 = vcombine.low %v1210, %v1218
          %v1236 = vcombine.high %v1210, %v1218
          %v1238 = vunpack.c.l.s4 1934713408
          %v1239 = vunpack.c.0.s8 %v1238
          %v1240 = vlaneseq
          %v1241 = vshrl.u32 %v1240, 7
          %v1242 = vsub.s32 %v1239, %v1241
          %v1243 = vrot.slane %v1235, %v1242
          %v1245 = vunpack.c.l.s4 1934713408
          %v1246 = vunpack.c.0.s8 %v1245
          %v1247 = vlaneseq
          %v1248 = vshrl.u32 %v1247, 7
          %v1249 = vsub.s32 %v1246, %v1248
          %v1250 = vrot.slane %v1236, %v1249
          %v1251 = vcombine.low %v1226, %v1234
          %v1252 = vcombine.high %v1226, %v1234
          %v1254 = vunpack.c.l.s4 1934713408
          %v1255 = vunpack.c.0.s8 %v1254
          %v1256 = vlaneseq
          %v1257 = vshrl.u32 %v1256, 7
          %v1258 = vsub.s32 %v1255, %v1257
          %v1259 = vrot.slane %v1251, %v1258
          %v1261 = vunpack.c.l.s4 1934713408
          %v1262 = vunpack.c.0.s8 %v1261
          %v1263 = vlaneseq
          %v1264 = vshrl.u32 %v1263, 7
          %v1265 = vsub.s32 %v1262, %v1264
          %v1266 = vrot.slane %v1252, %v1265
          %v1267 = vcombine.low %v1243, %v1259
          %v1268 = vcombine.high %v1243, %v1259
          %v1269 = vcombine.low %v1250, %v1266
          %v1270 = vcombine.high %v1250, %v1266
          %v1271 = vpack.c.bf16 %v1267, %v1267
          %v1272 = vpack.c.bf16 %v1268, %v1268
          %v1273 = vpack.c.bf16 %v1269, %v1269
          %v1274 = vpack.c.bf16 %v1270, %v1270
          %s1275 = scalar_lea.vmem [#allocation17], %s909
          %v1276 = vld [vmem:[%s1275] sm:$0xff]
          %s1277 = scalar_lea.vmem [#allocation19], %s909
          %v1278 = vld [vmem:[%s1277] sm:$0xff]
          %v1279 = vmul.f32 %v1119, %v1276
          %v1280 = vmul.f32 %v1120, %v1276
          %v1281 = vmul.f32 %v1121, %v1276
          %v1282 = vmul.f32 %v1122, %v1276
          %1284 = vrot.lane.b32.xlu0 %v1278, 4
          %v1285 = vpop.permute.xlu0 %1284
          %v1287 = vmul.f32 %v1119, %v1285
          %v1288 = vmul.f32 %v1120, %v1285
          %v1289 = vmul.f32 %v1121, %v1285
          %v1290 = vmul.f32 %v1122, %v1285
          %1295 = vrot.lane.b32.xlu0 %v1287, 124
          %v1296 = vpop.permute.xlu0 %1295
          %1297 = vrot.lane.b32.xlu0 %v1288, 124
          %v1298 = vpop.permute.xlu0 %1297
          %1299 = vrot.lane.b32.xlu0 %v1289, 124
          %v1300 = vpop.permute.xlu0 %1299
          %1301 = vrot.lane.b32.xlu0 %v1290, 124
          %v1302 = vpop.permute.xlu0 %1301
          %v1307 = vsub.f32 %v1279, %v1296
          %v1308 = vsub.f32 %v1280, %v1298
          %v1309 = vsub.f32 %v1281, %v1300
          %v1310 = vsub.f32 %v1282, %v1302
          %1312 = vrot.lane.b32.xlu0 %v1276, 4
          %v1313 = vpop.permute.xlu0 %1312
          %v1315 = vmul.f32 %v1119, %v1313
          %v1316 = vmul.f32 %v1120, %v1313
          %v1317 = vmul.f32 %v1121, %v1313
          %v1318 = vmul.f32 %v1122, %v1313
          %v1319 = vmul.f32 %v1119, %v1278
          %v1320 = vmul.f32 %v1120, %v1278
          %v1321 = vmul.f32 %v1121, %v1278
          %v1322 = vmul.f32 %v1122, %v1278
          %1327 = vrot.lane.b32.xlu0 %v1319, 4
          %v1328 = vpop.permute.xlu0 %1327
          %1329 = vrot.lane.b32.xlu0 %v1320, 4
          %v1330 = vpop.permute.xlu0 %1329
          %1331 = vrot.lane.b32.xlu0 %v1321, 4
          %v1332 = vpop.permute.xlu0 %1331
          %1333 = vrot.lane.b32.xlu0 %v1322, 4
          %v1334 = vpop.permute.xlu0 %1333
          %v1339 = vadd.f32 %v1315, %v1328
          %v1340 = vadd.f32 %v1316, %v1330
          %v1341 = vadd.f32 %v1317, %v1332
          %v1342 = vadd.f32 %v1318, %v1334
          %v1343 = vsel %vm873, %v1307, %v1339
          %v1344 = vsel %vm873, %v1308, %v1340
          %v1345 = vsel %vm873, %v1309, %v1341
          %v1346 = vsel %vm873, %v1310, %v1342
          %v1347 = vpack.c.bf16 %v1343, %v1343
          %v1348 = vpack.c.bf16 %v1344, %v1344
          %v1349 = vpack.c.bf16 %v1345, %v1345
          %v1350 = vpack.c.bf16 %v1346, %v1346
          %vm1351 = vcmask 64512
          %v1353 = vsel %vm1351, %v878, 0
          %v1356 = vsel %vm1351, %v1347, 0
          %1358 = vmatprep.subr.bf16.mxu0 0
          %1359 = vmatpush1.bf16.xpose.msra.mxu0 %v1356
          %1360 = vmatprep.subr.bf16.mxu0 0
          %1361 = vmatpush1.bf16.xpose.msra.mxu0 0
          %1362 = vmatprep.subr.bf16.mxu0 0
          %1363 = vmatpush1.bf16.xpose.msra.mxu0 0
          %1364 = vmatprep.subr.bf16.mxu0 0
          %1365 = vmatpush1.bf16.xpose.msra.mxu0 0
          %1366 = vmatprep.subr.bf16.mxu0 0
          %1367 = vmatpush1.bf16.xpose.msra.mxu0 0
          %1368 = vmatprep.subr.bf16.mxu0 0
          %1369 = vmatpush1.bf16.xpose.msra.mxu0 0
          %1370 = vmatprep.subr.bf16.mxu0 0
          %1371 = vmatpush1.bf16.xpose.msra.mxu0 0
          %1372 = vmatprep.subr.bf16.mxu0 0
          %1373 = vmatpush1.bf16.xpose.msra.mxu0 0
          %1374 = vmatprep.subr.bf16.mxu0 0
          %1375 = vmatpush1.bf16.xpose.msra.mxu0 0
          %1376 = vmatprep.subr.bf16.mxu0 0
          %1377 = vmatpush1.bf16.xpose.msra.mxu0 0
          %1378 = vmatprep.subr.bf16.mxu0 0
          %1379 = vmatpush1.bf16.xpose.msra.mxu0 0
          %1380 = vmatprep.subr.bf16.mxu0 0
          %1381 = vmatpush1.bf16.xpose.msra.mxu0 0
          %1382 = vmatprep.subr.bf16.mxu0 0
          %1383 = vmatpush1.bf16.xpose.msra.mxu0 0
          %1384 = vmatprep.subr.bf16.mxu0 0
          %1385 = vmatpush1.bf16.xpose.msra.mxu0 0
          %1386 = vmatprep.subr.bf16.mxu0 0
          %1387 = vmatpush1.bf16.xpose.msra.mxu0 0
          %1388 = vmatprep.subr.bf16.mxu0 0
          %1389 = vmatpush1.bf16.xpose.msra.mxu0 0
          %1390 = vmatprep.mubr.bf16.mxu0 0
          %1391 = vmatmul.mubr.bf16.gmra.mrb[0].mxu0 %v1353
          %v1392 = vpop.f32.mrb[0].mxu0
          %v1393 = vadd.f32 0.0, %v1392
          %v1394 = vpop.f32.mrb[0].mxu0
          %v1395 = vpop.f32.mrb[0].mxu0
          %v1396 = vpop.f32.mrb[0].mxu0
          %1397 = vdwg.mxu0
          %v1399 = vsel %vm1351, %v879, 0
          %v1402 = vsel %vm1351, %v1348, 0
          %1404 = vmatprep.subr.bf16.mxu0 0
          %1405 = vmatpush1.bf16.xpose.msra.mxu0 %v1402
          %1406 = vmatprep.subr.bf16.mxu0 0
          %1407 = vmatpush1.bf16.xpose.msra.mxu0 0
          %1408 = vmatprep.subr.bf16.mxu0 0
          %1409 = vmatpush1.bf16.xpose.msra.mxu0 0
          %1410 = vmatprep.subr.bf16.mxu0 0
          %1411 = vmatpush1.bf16.xpose.msra.mxu0 0
          %1412 = vmatprep.subr.bf16.mxu0 0
          %1413 = vmatpush1.bf16.xpose.msra.mxu0 0
          %1414 = vmatprep.subr.bf16.mxu0 0
          %1415 = vmatpush1.bf16.xpose.msra.mxu0 0
          %1416 = vmatprep.subr.bf16.mxu0 0
          %1417 = vmatpush1.bf16.xpose.msra.mxu0 0
          %1418 = vmatprep.subr.bf16.mxu0 0
          %1419 = vmatpush1.bf16.xpose.msra.mxu0 0
          %1420 = vmatprep.subr.bf16.mxu0 0
          %1421 = vmatpush1.bf16.xpose.msra.mxu0 0
          %1422 = vmatprep.subr.bf16.mxu0 0
          %1423 = vmatpush1.bf16.xpose.msra.mxu0 0
          %1424 = vmatprep.subr.bf16.mxu0 0
          %1425 = vmatpush1.bf16.xpose.msra.mxu0 0
          %1426 = vmatprep.subr.bf16.mxu0 0
          %1427 = vmatpush1.bf16.xpose.msra.mxu0 0
          %1428 = vmatprep.subr.bf16.mxu0 0
          %1429 = vmatpush1.bf16.xpose.msra.mxu0 0
          %1430 = vmatprep.subr.bf16.mxu0 0
          %1431 = vmatpush1.bf16.xpose.msra.mxu0 0
          %1432 = vmatprep.subr.bf16.mxu0 0
          %1433 = vmatpush1.bf16.xpose.msra.mxu0 0
          %1434 = vmatprep.subr.bf16.mxu0 0
          %1435 = vmatpush1.bf16.xpose.msra.mxu0 0
          %1436 = vmatprep.mubr.bf16.mxu0 0
          %1437 = vmatmul.mubr.bf16.gmra.mrb[0].mxu0 %v1399
          %v1438 = vpop.f32.mrb[0].mxu0
          %v1439 = vadd.f32 0.0, %v1438
          %v1440 = vpop.f32.mrb[0].mxu0
          %v1441 = vpop.f32.mrb[0].mxu0
          %v1442 = vpop.f32.mrb[0].mxu0
          %1443 = vdwg.mxu0
          %v1445 = vsel %vm1351, %v880, 0
          %v1448 = vsel %vm1351, %v1349, 0
          %1450 = vmatprep.subr.bf16.mxu0 0
          %1451 = vmatpush1.bf16.xpose.msra.mxu0 %v1448
          %1452 = vmatprep.subr.bf16.mxu0 0
          %1453 = vmatpush1.bf16.xpose.msra.mxu0 0
          %1454 = vmatprep.subr.bf16.mxu0 0
          %1455 = vmatpush1.bf16.xpose.msra.mxu0 0
          %1456 = vmatprep.subr.bf16.mxu0 0
          %1457 = vmatpush1.bf16.xpose.msra.mxu0 0
          %1458 = vmatprep.subr.bf16.mxu0 0
          %1459 = vmatpush1.bf16.xpose.msra.mxu0 0
          %1460 = vmatprep.subr.bf16.mxu0 0
          %1461 = vmatpush1.bf16.xpose.msra.mxu0 0
          %1462 = vmatprep.subr.bf16.mxu0 0
          %1463 = vmatpush1.bf16.xpose.msra.mxu0 0
          %1464 = vmatprep.subr.bf16.mxu0 0
          %1465 = vmatpush1.bf16.xpose.msra.mxu0 0
          %1466 = vmatprep.subr.bf16.mxu0 0
          %1467 = vmatpush1.bf16.xpose.msra.mxu0 0
          %1468 = vmatprep.subr.bf16.mxu0 0
          %1469 = vmatpush1.bf16.xpose.msra.mxu0 0
          %1470 = vmatprep.subr.bf16.mxu0 0
          %1471 = vmatpush1.bf16.xpose.msra.mxu0 0
          %1472 = vmatprep.subr.bf16.mxu0 0
          %1473 = vmatpush1.bf16.xpose.msra.mxu0 0
          %1474 = vmatprep.subr.bf16.mxu0 0
          %1475 = vmatpush1.bf16.xpose.msra.mxu0 0
          %1476 = vmatprep.subr.bf16.mxu0 0
          %1477 = vmatpush1.bf16.xpose.msra.mxu0 0
          %1478 = vmatprep.subr.bf16.mxu0 0
          %1479 = vmatpush1.bf16.xpose.msra.mxu0 0
          %1480 = vmatprep.subr.bf16.mxu0 0
          %1481 = vmatpush1.bf16.xpose.msra.mxu0 0
          %1482 = vmatprep.mubr.bf16.mxu0 0
          %1483 = vmatmul.mubr.bf16.gmra.mrb[0].mxu0 %v1445
          %v1484 = vpop.f32.mrb[0].mxu0
          %v1485 = vadd.f32 0.0, %v1484
          %v1486 = vpop.f32.mrb[0].mxu0
          %v1487 = vpop.f32.mrb[0].mxu0
          %v1488 = vpop.f32.mrb[0].mxu0
          %1489 = vdwg.mxu0
          %v1491 = vsel %vm1351, %v881, 0
          %v1494 = vsel %vm1351, %v1350, 0
          %1496 = vmatprep.subr.bf16.mxu0 0
          %1497 = vmatpush1.bf16.xpose.msra.mxu0 %v1494
          %1498 = vmatprep.subr.bf16.mxu0 0
          %1499 = vmatpush1.bf16.xpose.msra.mxu0 0
          %1500 = vmatprep.subr.bf16.mxu0 0
          %1501 = vmatpush1.bf16.xpose.msra.mxu0 0
          %1502 = vmatprep.subr.bf16.mxu0 0
          %1503 = vmatpush1.bf16.xpose.msra.mxu0 0
          %1504 = vmatprep.subr.bf16.mxu0 0
          %1505 = vmatpush1.bf16.xpose.msra.mxu0 0
          %1506 = vmatprep.subr.bf16.mxu0 0
          %1507 = vmatpush1.bf16.xpose.msra.mxu0 0
          %1508 = vmatprep.subr.bf16.mxu0 0
          %1509 = vmatpush1.bf16.xpose.msra.mxu0 0
          %1510 = vmatprep.subr.bf16.mxu0 0
          %1511 = vmatpush1.bf16.xpose.msra.mxu0 0
          %1512 = vmatprep.subr.bf16.mxu0 0
          %1513 = vmatpush1.bf16.xpose.msra.mxu0 0
          %1514 = vmatprep.subr.bf16.mxu0 0
          %1515 = vmatpush1.bf16.xpose.msra.mxu0 0
          %1516 = vmatprep.subr.bf16.mxu0 0
          %1517 = vmatpush1.bf16.xpose.msra.mxu0 0
          %1518 = vmatprep.subr.bf16.mxu0 0
          %1519 = vmatpush1.bf16.xpose.msra.mxu0 0
          %1520 = vmatprep.subr.bf16.mxu0 0
          %1521 = vmatpush1.bf16.xpose.msra.mxu0 0
          %1522 = vmatprep.subr.bf16.mxu0 0
          %1523 = vmatpush1.bf16.xpose.msra.mxu0 0
          %1524 = vmatprep.subr.bf16.mxu0 0
          %1525 = vmatpush1.bf16.xpose.msra.mxu0 0
          %1526 = vmatprep.subr.bf16.mxu0 0
          %1527 = vmatpush1.bf16.xpose.msra.mxu0 0
          %1528 = vmatprep.mubr.bf16.mxu0 0
          %1529 = vmatmul.mubr.bf16.gmra.mrb[0].mxu0 %v1491
          %v1530 = vpop.f32.mrb[0].mxu0
          %v1531 = vadd.f32 0.0, %v1530
          %v1532 = vpop.f32.mrb[0].mxu0
          %v1533 = vpop.f32.mrb[0].mxu0
          %v1534 = vpop.f32.mrb[0].mxu0
          %1535 = vdwg.mxu0
          %v1536 = vlaneseq
          %v1537 = vand.u32 %v1536, 127
          %v1538 = vstv %s909
          %v1539 = vadd.s32 %v1538, %v1537
          %vm1540 = vcmp.ge.s32.totalorder %v885, %v1539
          %v1541 = vsel %vm1540, 1, 0
          %vm1542 = vcmp.eq.s32.totalorder %v1541, 1
          %v1543 = vsel %vm1542, %v1393, -1e+30
          %v1544 = vsel %vm1542, %v1439, -1e+30
          %v1545 = vsel %vm1542, %v1485, -1e+30
          %v1546 = vsel %vm1542, %v1531, -1e+30
          %v1547 = vsel %vm1351, %v1543, -inf
          %1548 = vmax.xlane.f32.xlu0 %v1547
          %v1549 = vpop.xlane.xlu0 %1548
          %v1550 = vsel %vm1351, %v1544, -inf
          %1551 = vmax.xlane.f32.xlu0 %v1550
          %v1552 = vpop.xlane.xlu0 %1551
          %v1553 = vsel %vm1351, %v1545, -inf
          %1554 = vmax.xlane.f32.xlu0 %v1553
          %v1555 = vpop.xlane.xlu0 %1554
          %v1556 = vsel %vm1351, %v1546, -inf
          %1557 = vmax.xlane.f32.xlu0 %v1556
          %v1558 = vpop.xlane.xlu0 %1557
          %v1559 = vmax.f32 %v897, %v1549
          %v1560 = vmax.f32 %v898, %v1552
          %v1561 = vmax.f32 %v899, %v1555
          %v1562 = vmax.f32 %v900, %v1558
          %v1563 = vsub.f32 %v897, %v1559
          %v1564 = vsub.f32 %v898, %v1560
          %v1565 = vsub.f32 %v899, %v1561
          %v1566 = vsub.f32 %v900, %v1562
          %v1567 = vmul.f32 %v1563, 1.442695
          %v1568 = vpow.pop %v1567
          %v1569 = vmul.f32 %v1564, 1.442695
          %v1570 = vpow.pop %v1569
          %v1571 = vmul.f32 %v1565, 1.442695
          %v1572 = vpow.pop %v1571
          %v1573 = vmul.f32 %v1566, 1.442695
          %v1574 = vpow.pop %v1573
          %v1575 = vsub.f32 %v1543, %v1559
          %v1576 = vsub.f32 %v1544, %v1560
          %v1577 = vsub.f32 %v1545, %v1561
          %v1578 = vsub.f32 %v1546, %v1562
          %v1579 = vmul.f32 %v1575, 1.442695
          %v1580 = vpow.pop %v1579
          %v1581 = vmul.f32 %v1576, 1.442695
          %v1582 = vpow.pop %v1581
          %v1583 = vmul.f32 %v1577, 1.442695
          %v1584 = vpow.pop %v1583
          %v1585 = vmul.f32 %v1578, 1.442695
          %v1586 = vpow.pop %v1585
          %v1587 = vmul.f32 %v1568, %v901
          %v1588 = vmul.f32 %v1570, %v902
          %v1589 = vmul.f32 %v1572, %v903
          %v1590 = vmul.f32 %v1574, %v904
          %v1591 = vsel %vm1351, %v1580, 0.0
          %1592 = vadd.xlane.f32.xlu0 %v1591
          %v1593 = vpop.xlane.xlu0 %1592
          %v1594 = vsel %vm1351, %v1582, 0.0
          %1595 = vadd.xlane.f32.xlu0 %v1594
          %v1596 = vpop.xlane.xlu0 %1595
          %v1597 = vsel %vm1351, %v1584, 0.0
          %1598 = vadd.xlane.f32.xlu0 %v1597
          %v1599 = vpop.xlane.xlu0 %1598
          %v1600 = vsel %vm1351, %v1586, 0.0
          %1601 = vadd.xlane.f32.xlu0 %v1600
          %v1602 = vpop.xlane.xlu0 %1601
          %v1603 = vadd.f32 %v1587, %v1593
          %v1604 = vadd.f32 %v1588, %v1596
          %v1605 = vadd.f32 %v1589, %v1599
          %v1606 = vadd.f32 %v1590, %v1602
          %v1607 = vmul.f32 %v1568, %v905
          %v1608 = vmul.f32 %v1570, %v906
          %v1609 = vmul.f32 %v1572, %v907
          %v1610 = vmul.f32 %v1574, %v908
          %v1611 = vpack.c.bf16 %v1580, %v1580
          %v1612 = vpack.c.bf16 %v1582, %v1582
          %v1613 = vpack.c.bf16 %v1584, %v1584
          %v1614 = vpack.c.bf16 %v1586, %v1586
          %v1616 = vsel %vm1351, %v1611, 0
          %vm1618 = vcmask 1043456
          %v1620 = vsel %vm1618, %v1271, 0
          %1622 = vmatprep.subr.bf16.mxu0 0
          %1623 = vmatpush1.bf16.msra.mxu0 %v1620
          %1624 = vmatprep.subr.bf16.mxu0 0
          %1625 = vmatpush1.bf16.msra.mxu0 0
          %1626 = vmatprep.subr.bf16.mxu0 0
          %1627 = vmatpush1.bf16.msra.mxu0 0
          %1628 = vmatprep.subr.bf16.mxu0 0
          %1629 = vmatpush1.bf16.msra.mxu0 0
          %1630 = vmatprep.subr.bf16.mxu0 0
          %1631 = vmatpush1.bf16.msra.mxu0 0
          %1632 = vmatprep.subr.bf16.mxu0 0
          %1633 = vmatpush1.bf16.msra.mxu0 0
          %1634 = vmatprep.subr.bf16.mxu0 0
          %1635 = vmatpush1.bf16.msra.mxu0 0
          %1636 = vmatprep.subr.bf16.mxu0 0
          %1637 = vmatpush1.bf16.msra.mxu0 0
          %1638 = vmatprep.subr.bf16.mxu0 0
          %1639 = vmatpush1.bf16.msra.mxu0 0
          %1640 = vmatprep.subr.bf16.mxu0 0
          %1641 = vmatpush1.bf16.msra.mxu0 0
          %1642 = vmatprep.subr.bf16.mxu0 0
          %1643 = vmatpush1.bf16.msra.mxu0 0
          %1644 = vmatprep.subr.bf16.mxu0 0
          %1645 = vmatpush1.bf16.msra.mxu0 0
          %1646 = vmatprep.subr.bf16.mxu0 0
          %1647 = vmatpush1.bf16.msra.mxu0 0
          %1648 = vmatprep.subr.bf16.mxu0 0
          %1649 = vmatpush1.bf16.msra.mxu0 0
          %1650 = vmatprep.subr.bf16.mxu0 0
          %1651 = vmatpush1.bf16.msra.mxu0 0
          %1652 = vmatprep.subr.bf16.mxu0 0
          %1653 = vmatpush1.bf16.msra.mxu0 0
          %1654 = vmatprep.mubr.bf16.mxu0 0
          %1655 = vmatmul.mubr.bf16.gmra.mrb[0].mxu0 %v1616
          %v1656 = vpop.f32.mrb[0].mxu0
          %v1657 = vadd.f32 0.0, %v1656
          %v1658 = vpop.f32.mrb[0].mxu0
          %v1659 = vpop.f32.mrb[0].mxu0
          %v1660 = vpop.f32.mrb[0].mxu0
          %1661 = vdwg.mxu0
          %v1663 = vsel %vm1351, %v1612, 0
          %v1666 = vsel %vm1618, %v1272, 0
          %1668 = vmatprep.subr.bf16.mxu0 0
          %1669 = vmatpush1.bf16.msra.mxu0 %v1666
          %1670 = vmatprep.subr.bf16.mxu0 0
          %1671 = vmatpush1.bf16.msra.mxu0 0
          %1672 = vmatprep.subr.bf16.mxu0 0
          %1673 = vmatpush1.bf16.msra.mxu0 0
          %1674 = vmatprep.subr.bf16.mxu0 0
          %1675 = vmatpush1.bf16.msra.mxu0 0
          %1676 = vmatprep.subr.bf16.mxu0 0
          %1677 = vmatpush1.bf16.msra.mxu0 0
          %1678 = vmatprep.subr.bf16.mxu0 0
          %1679 = vmatpush1.bf16.msra.mxu0 0
          %1680 = vmatprep.subr.bf16.mxu0 0
          %1681 = vmatpush1.bf16.msra.mxu0 0
          %1682 = vmatprep.subr.bf16.mxu0 0
          %1683 = vmatpush1.bf16.msra.mxu0 0
          %1684 = vmatprep.subr.bf16.mxu0 0
          %1685 = vmatpush1.bf16.msra.mxu0 0
          %1686 = vmatprep.subr.bf16.mxu0 0
          %1687 = vmatpush1.bf16.msra.mxu0 0
          %1688 = vmatprep.subr.bf16.mxu0 0
          %1689 = vmatpush1.bf16.msra.mxu0 0
          %1690 = vmatprep.subr.bf16.mxu0 0
          %1691 = vmatpush1.bf16.msra.mxu0 0
          %1692 = vmatprep.subr.bf16.mxu0 0
          %1693 = vmatpush1.bf16.msra.mxu0 0
          %1694 = vmatprep.subr.bf16.mxu0 0
          %1695 = vmatpush1.bf16.msra.mxu0 0
          %1696 = vmatprep.subr.bf16.mxu0 0
          %1697 = vmatpush1.bf16.msra.mxu0 0
          %1698 = vmatprep.subr.bf16.mxu0 0
          %1699 = vmatpush1.bf16.msra.mxu0 0
          %1700 = vmatprep.mubr.bf16.mxu0 0
          %1701 = vmatmul.mubr.bf16.gmra.mrb[0].mxu0 %v1663
          %v1702 = vpop.f32.mrb[0].mxu0
          %v1703 = vadd.f32 0.0, %v1702
          %v1704 = vpop.f32.mrb[0].mxu0
          %v1705 = vpop.f32.mrb[0].mxu0
          %v1706 = vpop.f32.mrb[0].mxu0
          %1707 = vdwg.mxu0
          %v1709 = vsel %vm1351, %v1613, 0
          %v1712 = vsel %vm1618, %v1273, 0
          %1714 = vmatprep.subr.bf16.mxu0 0
          %1715 = vmatpush1.bf16.msra.mxu0 %v1712
          %1716 = vmatprep.subr.bf16.mxu0 0
          %1717 = vmatpush1.bf16.msra.mxu0 0
          %1718 = vmatprep.subr.bf16.mxu0 0
          %1719 = vmatpush1.bf16.msra.mxu0 0
          %1720 = vmatprep.subr.bf16.mxu0 0
          %1721 = vmatpush1.bf16.msra.mxu0 0
          %1722 = vmatprep.subr.bf16.mxu0 0
          %1723 = vmatpush1.bf16.msra.mxu0 0
          %1724 = vmatprep.subr.bf16.mxu0 0
          %1725 = vmatpush1.bf16.msra.mxu0 0
          %1726 = vmatprep.subr.bf16.mxu0 0
          %1727 = vmatpush1.bf16.msra.mxu0 0
          %1728 = vmatprep.subr.bf16.mxu0 0
          %1729 = vmatpush1.bf16.msra.mxu0 0
          %1730 = vmatprep.subr.bf16.mxu0 0
          %1731 = vmatpush1.bf16.msra.mxu0 0
          %1732 = vmatprep.subr.bf16.mxu0 0
          %1733 = vmatpush1.bf16.msra.mxu0 0
          %1734 = vmatprep.subr.bf16.mxu0 0
          %1735 = vmatpush1.bf16.msra.mxu0 0
          %1736 = vmatprep.subr.bf16.mxu0 0
          %1737 = vmatpush1.bf16.msra.mxu0 0
          %1738 = vmatprep.subr.bf16.mxu0 0
          %1739 = vmatpush1.bf16.msra.mxu0 0
          %1740 = vmatprep.subr.bf16.mxu0 0
          %1741 = vmatpush1.bf16.msra.mxu0 0
          %1742 = vmatprep.subr.bf16.mxu0 0
          %1743 = vmatpush1.bf16.msra.mxu0 0
          %1744 = vmatprep.subr.bf16.mxu0 0
          %1745 = vmatpush1.bf16.msra.mxu0 0
          %1746 = vmatprep.mubr.bf16.mxu0 0
          %1747 = vmatmul.mubr.bf16.gmra.mrb[0].mxu0 %v1709
          %v1748 = vpop.f32.mrb[0].mxu0
          %v1749 = vadd.f32 0.0, %v1748
          %v1750 = vpop.f32.mrb[0].mxu0
          %v1751 = vpop.f32.mrb[0].mxu0
          %v1752 = vpop.f32.mrb[0].mxu0
          %1753 = vdwg.mxu0
          %v1755 = vsel %vm1351, %v1614, 0
          %v1758 = vsel %vm1618, %v1274, 0
          %1760 = vmatprep.subr.bf16.mxu0 0
          %1761 = vmatpush1.bf16.msra.mxu0 %v1758
          %1762 = vmatprep.subr.bf16.mxu0 0
          %1763 = vmatpush1.bf16.msra.mxu0 0
          %1764 = vmatprep.subr.bf16.mxu0 0
          %1765 = vmatpush1.bf16.msra.mxu0 0
          %1766 = vmatprep.subr.bf16.mxu0 0
          %1767 = vmatpush1.bf16.msra.mxu0 0
          %1768 = vmatprep.subr.bf16.mxu0 0
          %1769 = vmatpush1.bf16.msra.mxu0 0
          %1770 = vmatprep.subr.bf16.mxu0 0
          %1771 = vmatpush1.bf16.msra.mxu0 0
          %1772 = vmatprep.subr.bf16.mxu0 0
          %1773 = vmatpush1.bf16.msra.mxu0 0
          %1774 = vmatprep.subr.bf16.mxu0 0
          %1775 = vmatpush1.bf16.msra.mxu0 0
          %1776 = vmatprep.subr.bf16.mxu0 0
          %1777 = vmatpush1.bf16.msra.mxu0 0
          %1778 = vmatprep.subr.bf16.mxu0 0
          %1779 = vmatpush1.bf16.msra.mxu0 0
          %1780 = vmatprep.subr.bf16.mxu0 0
          %1781 = vmatpush1.bf16.msra.mxu0 0
          %1782 = vmatprep.subr.bf16.mxu0 0
          %1783 = vmatpush1.bf16.msra.mxu0 0
          %1784 = vmatprep.subr.bf16.mxu0 0
          %1785 = vmatpush1.bf16.msra.mxu0 0
          %1786 = vmatprep.subr.bf16.mxu0 0
          %1787 = vmatpush1.bf16.msra.mxu0 0
          %1788 = vmatprep.subr.bf16.mxu0 0
          %1789 = vmatpush1.bf16.msra.mxu0 0
          %1790 = vmatprep.subr.bf16.mxu0 0
          %1791 = vmatpush1.bf16.msra.mxu0 0
          %1792 = vmatprep.mubr.bf16.mxu0 0
          %1793 = vmatmul.mubr.bf16.gmra.mrb[0].mxu0 %v1755
          %v1794 = vpop.f32.mrb[0].mxu0
          %v1795 = vadd.f32 0.0, %v1794
          %v1796 = vpop.f32.mrb[0].mxu0
          %v1797 = vpop.f32.mrb[0].mxu0
          %v1798 = vpop.f32.mrb[0].mxu0
          %1799 = vdwg.mxu0
          %v1800 = vadd.f32 %v1607, %v1657
          %v1801 = vadd.f32 %v1608, %v1703
          %v1802 = vadd.f32 %v1609, %v1749
          %v1803 = vadd.f32 %v1610, %v1795
        $region113: #{tpu_custom_call.1} parent=63 // loop_footer
          %s894 = sadd.s32 %s892, 1
        $region114: #{tpu_custom_call.1} parent=63 // loop_footer_branch
          %891 = sbr.rel target = $region110
        $region115: #{tpu_custom_call.1} parent=63 // loop_exit
          _
        %v1804 = vrcp.pop %v901
        %v1805 = vrcp.pop %v902
        %v1806 = vrcp.pop %v903
        %v1807 = vrcp.pop %v904
        %v1808 = vmul.f32 %v905, %v1804
        %v1809 = vmul.f32 %v906, %v1805
        %v1810 = vmul.f32 %v907, %v1806
        %v1811 = vmul.f32 %v908, %v1807
        %v1812 = vcombine.low %v1808, %v1810
        %v1813 = vcombine.high %v1808, %v1810
        %v1815 = vunpack.c.l.s4 1983009808
        %v1816 = vunpack.c.0.s8 %v1815
        %v1817 = vlaneseq
        %v1818 = vshrl.u32 %v1817, 7
        %v1819 = vsub.s32 %v1816, %v1818
        %v1820 = vrot.slane %v1812, %v1819
        %v1822 = vunpack.c.l.s4 1983009808
        %v1823 = vunpack.c.0.s8 %v1822
        %v1824 = vlaneseq
        %v1825 = vshrl.u32 %v1824, 7
        %v1826 = vsub.s32 %v1823, %v1825
        %v1827 = vrot.slane %v1813, %v1826
        %v1828 = vcombine.low %v1809, %v1811
        %v1829 = vcombine.high %v1809, %v1811
        %v1831 = vunpack.c.l.s4 1983009808
        %v1832 = vunpack.c.0.s8 %v1831
        %v1833 = vlaneseq
        %v1834 = vshrl.u32 %v1833, 7
        %v1835 = vsub.s32 %v1832, %v1834
        %v1836 = vrot.slane %v1828, %v1835
        %v1838 = vunpack.c.l.s4 1983009808
        %v1839 = vunpack.c.0.s8 %v1838
        %v1840 = vlaneseq
        %v1841 = vshrl.u32 %v1840, 7
        %v1842 = vsub.s32 %v1839, %v1841
        %v1843 = vrot.slane %v1829, %v1842
        %v1844 = vcombine.low %v1820, %v1836
        %v1845 = vcombine.high %v1820, %v1836
        %v1847 = vunpack.c.l.s4 1934713408
        %v1848 = vunpack.c.0.s8 %v1847
        %v1849 = vlaneseq
        %v1850 = vshrl.u32 %v1849, 7
        %v1851 = vsub.s32 %v1848, %v1850
        %v1852 = vrot.slane %v1844, %v1851
        %v1854 = vunpack.c.l.s4 1934713408
        %v1855 = vunpack.c.0.s8 %v1854
        %v1856 = vlaneseq
        %v1857 = vshrl.u32 %v1856, 7
        %v1858 = vsub.s32 %v1855, %v1857
        %v1859 = vrot.slane %v1845, %v1858
        %v1860 = vcombine.low %v1827, %v1843
        %v1861 = vcombine.high %v1827, %v1843
        %v1863 = vunpack.c.l.s4 1934713408
        %v1864 = vunpack.c.0.s8 %v1863
        %v1865 = vlaneseq
        %v1866 = vshrl.u32 %v1865, 7
        %v1867 = vsub.s32 %v1864, %v1866
        %v1868 = vrot.slane %v1860, %v1867
        %v1870 = vunpack.c.l.s4 1934713408
        %v1871 = vunpack.c.0.s8 %v1870
        %v1872 = vlaneseq
        %v1873 = vshrl.u32 %v1872, 7
        %v1874 = vsub.s32 %v1871, %v1873
        %v1875 = vrot.slane %v1861, %v1874
        %v1876 = vcombine.high %v1852, 0.0
        %v1877 = vcombine.high %v1859, 0.0
        %v1878 = vcombine.high %v1868, 0.0
        %v1879 = vcombine.high %v1875, 0.0
        %v1880 = vcombine.low %v1852, %v1859
        %v1882 = vunpack.c.l.s4 1983009808
        %v1883 = vunpack.c.0.s8 %v1882
        %v1884 = vlaneseq
        %v1885 = vshrl.u32 %v1884, 7
        %v1886 = vsub.s32 %v1883, %v1885
        %v1887 = vrot.slane %v1880, %v1886
        %v1888 = vcombine.low %v1876, %v1877
        %v1890 = vunpack.c.l.s4 1983009808
        %v1891 = vunpack.c.0.s8 %v1890
        %v1892 = vlaneseq
        %v1893 = vshrl.u32 %v1892, 7
        %v1894 = vsub.s32 %v1891, %v1893
        %v1895 = vrot.slane %v1888, %v1894
        %v1896 = vcombine.low %v1868, %v1875
        %v1898 = vunpack.c.l.s4 1983009808
        %v1899 = vunpack.c.0.s8 %v1898
        %v1900 = vlaneseq
        %v1901 = vshrl.u32 %v1900, 7
        %v1902 = vsub.s32 %v1899, %v1901
        %v1903 = vrot.slane %v1896, %v1902
        %v1904 = vcombine.low %v1878, %v1879
        %v1906 = vunpack.c.l.s4 1983009808
        %v1907 = vunpack.c.0.s8 %v1906
        %v1908 = vlaneseq
        %v1909 = vshrl.u32 %v1908, 7
        %v1910 = vsub.s32 %v1907, %v1909
        %v1911 = vrot.slane %v1904, %v1910
        %v1912 = vcombine.low %v1887, %v1895
        %v1913 = vcombine.high %v1887, %v1895
        %v1915 = vunpack.c.l.s4 1934713408
        %v1916 = vunpack.c.0.s8 %v1915
        %v1917 = vlaneseq
        %v1918 = vshrl.u32 %v1917, 7
        %v1919 = vsub.s32 %v1916, %v1918
        %v1920 = vrot.slane %v1912, %v1919
        %v1922 = vunpack.c.l.s4 1934713408
        %v1923 = vunpack.c.0.s8 %v1922
        %v1924 = vlaneseq
        %v1925 = vshrl.u32 %v1924, 7
        %v1926 = vsub.s32 %v1923, %v1925
        %v1927 = vrot.slane %v1913, %v1926
        %v1928 = vcombine.low %v1903, %v1911
        %v1929 = vcombine.high %v1903, %v1911
        %v1931 = vunpack.c.l.s4 1934713408
        %v1932 = vunpack.c.0.s8 %v1931
        %v1933 = vlaneseq
        %v1934 = vshrl.u32 %v1933, 7
        %v1935 = vsub.s32 %v1932, %v1934
        %v1936 = vrot.slane %v1928, %v1935
        %v1938 = vunpack.c.l.s4 1934713408
        %v1939 = vunpack.c.0.s8 %v1938
        %v1940 = vlaneseq
        %v1941 = vshrl.u32 %v1940, 7
        %v1942 = vsub.s32 %v1939, %v1941
        %v1943 = vrot.slane %v1929, %v1942
        %v1944 = vcombine.low %v1920, %v1936
        %v1945 = vcombine.high %v1920, %v1936
        %v1946 = vcombine.low %v1927, %v1943
        %v1947 = vcombine.high %v1927, %v1943
        %1949 = vrot.lane.b32.xlu0 %v1945, 8
        %v1950 = vpop.permute.xlu0 %1949
        %1953 = vrot.lane.b32.xlu0 %v1946, 16
        %v1954 = vpop.permute.xlu0 %1953
        %1957 = vrot.lane.b32.xlu0 %v1947, 24
        %v1958 = vpop.permute.xlu0 %1957
        %vm1960 = vcmask 64512
        %v1961 = vsel %vm1960, %v1944, %v1950
        %vm1962 = vcmask 130048
        %v1963 = vsel %vm1962, %v1961, %v1954
        %vm1964 = vcmask 195584
        %v1965 = vsel %vm1964, %v1963, %v1958
        %v1966 = vpack.c.bf16 %v1965, %v1965
        %v1967 = vld [vmem:[#allocation10] sm:$0xf]
        %v1968 = vld [vmem:[#allocation10 + $0x4] sm:$0xf]
        %v1969 = vld [vmem:[#allocation10 + $0x8] sm:$0xf]
        %v1970 = vld [vmem:[#allocation10 + $0xc] sm:$0xf]
        %v1975 = vunpack.c.l.b16 %v1967
        %v1976 = vunpack.c.l.b16 %v1968
        %v1977 = vunpack.c.l.b16 %v1969
        %v1978 = vunpack.c.l.b16 %v1970
        %v1979 = vpack.c.b16 %v1976, %v1975
        %v1980 = vpack.c.b16 %v1978, %v1977
        %v1984 = vsel %vm583, %v1966, 0
        %1986 = vmatprep.subr.bf16.mxu0 0
        %1987 = vmatpush1.bf16.msra.mxu0 %v1979
        %1988 = vmatprep.subr.bf16.mxu0 0
        %1989 = vmatpush1.bf16.msra.mxu0 %v1980
        %1990 = vmatprep.subr.bf16.mxu0 0
        %1991 = vmatpush1.bf16.msra.mxu0 0
        %1992 = vmatprep.subr.bf16.mxu0 0
        %1993 = vmatpush1.bf16.msra.mxu0 0
        %1994 = vmatprep.subr.bf16.mxu0 0
        %1995 = vmatpush1.bf16.msra.mxu0 0
        %1996 = vmatprep.subr.bf16.mxu0 0
        %1997 = vmatpush1.bf16.msra.mxu0 0
        %1998 = vmatprep.subr.bf16.mxu0 0
        %1999 = vmatpush1.bf16.msra.mxu0 0
        %2000 = vmatprep.subr.bf16.mxu0 0
        %2001 = vmatpush1.bf16.msra.mxu0 0
        %2002 = vmatprep.subr.bf16.mxu0 0
        %2003 = vmatpush1.bf16.msra.mxu0 0
        %2004 = vmatprep.subr.bf16.mxu0 0
        %2005 = vmatpush1.bf16.msra.mxu0 0
        %2006 = vmatprep.subr.bf16.mxu0 0
        %2007 = vmatpush1.bf16.msra.mxu0 0
        %2008 = vmatprep.subr.bf16.mxu0 0
        %2009 = vmatpush1.bf16.msra.mxu0 0
        %2010 = vmatprep.subr.bf16.mxu0 0
        %2011 = vmatpush1.bf16.msra.mxu0 0
        %2012 = vmatprep.subr.bf16.mxu0 0
        %2013 = vmatpush1.bf16.msra.mxu0 0
        %2014 = vmatprep.subr.bf16.mxu0 0
        %2015 = vmatpush1.bf16.msra.mxu0 0
        %2016 = vmatprep.subr.bf16.mxu0 0
        %2017 = vmatpush1.bf16.msra.mxu0 0
        %2018 = vmatprep.mubr.bf16.mxu0 0
        %2019 = vmatmul.mubr.bf16.gmra.mrb[0].mxu0 %v1984
        %v2020 = vpop.f32.mrb[0].mxu0
        %v2021 = vadd.f32 0.0, %v2020
        %v2022 = vpop.f32.mrb[0].mxu0
        %v2023 = vpop.f32.mrb[0].mxu0
        %v2024 = vpop.f32.mrb[0].mxu0
        %2025 = vdwg.mxu0
        %v2026 = vadd.f32 %v580, %v2021
        %v2027 = vld [vmem:[#allocation13] sm:$0x1]
        %v2028 = vmul.f32 %v2026, %v2026
        %v2029 = vsel %vm583, %v2028, 0.0
        %2030 = vadd.xlane.f32.xlu0 %v2029
        %v2031 = vpop.xlane.xlu0 %2030
        %v2032 = vmul.f32 %v2031, %v587
        %v2033 = vadd.f32 %v2032, 1e-05
        %v2034 = vrsqrt.pop %v2033
        %v2035 = vmul.f32 %v2026, %v2034
        %v2037 = vlaneseq
        %v2038 = vshrl.u32 %v2037, 7
        %v2039 = vsub.s32 0, %v2038
        %v2040 = vrot.slane %v2027, %v2039
        %v2042 = vmul.f32 %v2035, %v2040
        %v2043 = vpack.c.bf16 %v2042, %v2042
        %v2044 = vld [vmem:[#allocation14] sm:$0xf]
        %v2045 = vld [vmem:[#allocation14 + $0x4] sm:$0xf]
        %v2046 = vld [vmem:[#allocation14 + $0x8] sm:$0xf]
        %v2047 = vld [vmem:[#allocation14 + $0xc] sm:$0xf]
        %v2052 = vunpack.c.l.b16 %v2044
        %v2053 = vunpack.c.l.b16 %v2045
        %v2054 = vunpack.c.l.b16 %v2046
        %v2055 = vunpack.c.l.b16 %v2047
        %v2056 = vpack.c.b16 %v2053, %v2052
        %v2057 = vpack.c.b16 %v2055, %v2054
        %v2061 = vsel %vm583, %v2043, 0
        %2063 = vmatprep.subr.bf16.mxu0 0
        %2064 = vmatpush1.bf16.msra.mxu0 %v2056
        %2065 = vmatprep.subr.bf16.mxu0 0
        %2066 = vmatpush1.bf16.msra.mxu0 %v2057
        %2067 = vmatprep.subr.bf16.mxu0 0
        %2068 = vmatpush1.bf16.msra.mxu0 0
        %2069 = vmatprep.subr.bf16.mxu0 0
        %2070 = vmatpush1.bf16.msra.mxu0 0
        %2071 = vmatprep.subr.bf16.mxu0 0
        %2072 = vmatpush1.bf16.msra.mxu0 0
        %2073 = vmatprep.subr.bf16.mxu0 0
        %2074 = vmatpush1.bf16.msra.mxu0 0
        %2075 = vmatprep.subr.bf16.mxu0 0
        %2076 = vmatpush1.bf16.msra.mxu0 0
        %2077 = vmatprep.subr.bf16.mxu0 0
        %2078 = vmatpush1.bf16.msra.mxu0 0
        %2079 = vmatprep.subr.bf16.mxu0 0
        %2080 = vmatpush1.bf16.msra.mxu0 0
        %2081 = vmatprep.subr.bf16.mxu0 0
        %2082 = vmatpush1.bf16.msra.mxu0 0
        %2083 = vmatprep.subr.bf16.mxu0 0
        %2084 = vmatpush1.bf16.msra.mxu0 0
        %2085 = vmatprep.subr.bf16.mxu0 0
        %2086 = vmatpush1.bf16.msra.mxu0 0
        %2087 = vmatprep.subr.bf16.mxu0 0
        %2088 = vmatpush1.bf16.msra.mxu0 0
        %2089 = vmatprep.subr.bf16.mxu0 0
        %2090 = vmatpush1.bf16.msra.mxu0 0
        %2091 = vmatprep.subr.bf16.mxu0 0
        %2092 = vmatpush1.bf16.msra.mxu0 0
        %2093 = vmatprep.subr.bf16.mxu0 0
        %2094 = vmatpush1.bf16.msra.mxu0 0
        %2095 = vmatprep.mubr.bf16.mxu0 0
        %2096 = vmatmul.mubr.bf16.gmra.mrb[0].mxu0 %v2061
        %v2097 = vpop.f32.mrb[0].mxu0
        %v2098 = vadd.f32 0.0, %v2097
        %v2099 = vpop.f32.mrb[0].mxu0
        %v2100 = vpop.f32.mrb[0].mxu0
        %v2101 = vpop.f32.mrb[0].mxu0
        %2102 = vdwg.mxu0
        %v2103 = vxor.u32 %v2098, 2147483648
        %v2104 = vmul.f32 %v2103, 1.442695
        %v2105 = vpow.pop %v2104
        %v2106 = vadd.f32 %v2105, 1.0
        %v2107 = vrcp.pop %v2106
        %v2108 = vmul.f32 1.0, %v2107
        %v2109 = vmul.f32 %v2098, %v2108
        %2111 = vrot.lane.b32.xlu0 %v2098, 64
        %v2112 = vpop.permute.xlu0 %2111
        %v2114 = vmul.f32 %v2109, %v2112
        %v2115 = vpack.c.bf16 %v2114, %v2114
        %v2116 = vld [vmem:[#allocation16] sm:$0xf]
        %v2117 = vld [vmem:[#allocation16 + $0x4] sm:$0xf]
        %v2118 = vld [vmem:[#allocation16 + $0x8] sm:$0xf]
        %v2119 = vld [vmem:[#allocation16 + $0xc] sm:$0xf]
        %v2120 = vld [vmem:[#allocation16 + $0x10] sm:$0xf]
        %v2121 = vld [vmem:[#allocation16 + $0x14] sm:$0xf]
        %v2122 = vld [vmem:[#allocation16 + $0x18] sm:$0xf]
        %v2123 = vld [vmem:[#allocation16 + $0x1c] sm:$0xf]
        %v2132 = vunpack.c.l.b16 %v2116
        %v2133 = vunpack.c.l.b16 %v2117
        %v2134 = vunpack.c.l.b16 %v2118
        %v2135 = vunpack.c.l.b16 %v2119
        %v2136 = vunpack.c.l.b16 %v2120
        %v2137 = vunpack.c.l.b16 %v2121
        %v2138 = vunpack.c.l.b16 %v2122
        %v2139 = vunpack.c.l.b16 %v2123
        %v2140 = vpack.c.b16 %v2133, %v2132
        %v2141 = vpack.c.b16 %v2135, %v2134
        %v2142 = vpack.c.b16 %v2137, %v2136
        %v2143 = vpack.c.b16 %v2139, %v2138
        %vm2148 = vcmask 523264
        %v2150 = vsel %vm2148, %v2115, 0
        %2152 = vmatprep.subr.bf16.mxu0 0
        %2153 = vmatpush1.bf16.msra.mxu0 %v2140
        %2154 = vmatprep.subr.bf16.mxu0 0
        %2155 = vmatpush1.bf16.msra.mxu0 %v2141
        %2156 = vmatprep.subr.bf16.mxu0 0
        %2157 = vmatpush1.bf16.msra.mxu0 %v2142
        %2158 = vmatprep.subr.bf16.mxu0 0
        %2159 = vmatpush1.bf16.msra.mxu0 %v2143
        %2160 = vmatprep.subr.bf16.mxu0 0
        %2161 = vmatpush1.bf16.msra.mxu0 0
        %2162 = vmatprep.subr.bf16.mxu0 0
        %2163 = vmatpush1.bf16.msra.mxu0 0
        %2164 = vmatprep.subr.bf16.mxu0 0
        %2165 = vmatpush1.bf16.msra.mxu0 0
        %2166 = vmatprep.subr.bf16.mxu0 0
        %2167 = vmatpush1.bf16.msra.mxu0 0
        %2168 = vmatprep.subr.bf16.mxu0 0
        %2169 = vmatpush1.bf16.msra.mxu0 0
        %2170 = vmatprep.subr.bf16.mxu0 0
        %2171 = vmatpush1.bf16.msra.mxu0 0
        %2172 = vmatprep.subr.bf16.mxu0 0
        %2173 = vmatpush1.bf16.msra.mxu0 0
        %2174 = vmatprep.subr.bf16.mxu0 0
        %2175 = vmatpush1.bf16.msra.mxu0 0
        %2176 = vmatprep.subr.bf16.mxu0 0
        %2177 = vmatpush1.bf16.msra.mxu0 0
        %2178 = vmatprep.subr.bf16.mxu0 0
        %2179 = vmatpush1.bf16.msra.mxu0 0
        %2180 = vmatprep.subr.bf16.mxu0 0
        %2181 = vmatpush1.bf16.msra.mxu0 0
        %2182 = vmatprep.subr.bf16.mxu0 0
        %2183 = vmatpush1.bf16.msra.mxu0 0
        %2184 = vmatprep.mubr.bf16.mxu0 0
        %2185 = vmatmul.mubr.bf16.gmra.mrb[0].mxu0 %v2150
        %v2186 = vpop.f32.mrb[0].mxu0
        %v2187 = vadd.f32 0.0, %v2186
        %v2188 = vpop.f32.mrb[0].mxu0
        %v2189 = vpop.f32.mrb[0].mxu0
        %v2190 = vpop.f32.mrb[0].mxu0
        %2191 = vdwg.mxu0
        %v2192 = vadd.f32 %v2026, %v2187
        %2193 = vst.msk [vmem:[%s577] sm:$0xff] %vm583, %v2192
        %s2194 = sand.u32 %s300, 1
        %s2195 = scalar_lea.sflag [#allocation4], %s2194
        %s2196 = sand.u32 %s300, 1
        %s2197 = smul.addr %s2196, 8
        %s2198 = scalar_lea.vmem [#allocation20], %s2197
        // Predicated region
        $region116: #{tpu_custom_call.1} parent=63 // pred_check
          %p2199 = pneg %p310
        $region117: #{tpu_custom_call.1} parent=63 // pred_check_branch
          %2201 = sbr.rel (%p2199) target = $region119
        $region118: #{tpu_custom_call.1} parent=63 // pred_region
          %s2203 = ssub.s32 128, 128
          %2204 = vsyncadd %s2195, %s2203
          %s2205 = sadd.s32 %s40, %s39
          %s2206 = smul.addr %s2205, 128
          %s2207 = scalar_lea.hbm %s11, %s2206
          %s2209 = sshll.u32 %s2198, 4
          %s2210 = int_to_ptr.vmem [resolvable:$true] %s2209
          %2212 = dma.vmem_to_hbm [thread:$0]  %s2210, 128, %s2207, %s2195
        $region119: #{tpu_custom_call.1} parent=63 // pred_fallthru
          _
      $region64: #{tpu_custom_call.1} parent=5 // pred_fallthru
        _
      %p2213 = scmp.le.s32.totalorder 2, %s30
      // Predicated region
      $region120: #{tpu_custom_call.1} parent=5 // pred_check
        %p2214 = pneg %p2213
      $region121: #{tpu_custom_call.1} parent=5 // pred_check_branch
        %2216 = sbr.rel (%p2214) target = $region123
      $region122: #{tpu_custom_call.1} parent=5 // pred_region
        %s2217 = ssub.s32 %s30, 2
        // Predicated region
        $region124: #{tpu_custom_call.1} parent=122 // pred_check
          %p2218 = pneg %p316
        $region125: #{tpu_custom_call.1} parent=122 // pred_check_branch
          %2220 = sbr.rel (%p2218) target = $region127
        $region126: #{tpu_custom_call.1} parent=122 // pred_region
          %s2221 = sand.u32 %s301, 1
          %s2222 = scalar_lea.sflag [#allocation4], %s2221
          %s2223 = sand.u32 %s301, 1
          %s2224 = smul.addr %s2223, 8
          %s2225 = scalar_lea.vmem [#allocation20], %s2224
          %2226 = dma.done %s2222, 128
        $region127: #{tpu_custom_call.1} parent=122 // pred_fallthru
          _
      $region123: #{tpu_custom_call.1} parent=5 // pred_fallthru
        _
    $region6: #{tpu_custom_call.1} parent=1 // loop_footer
      %s34 = sadd.s32 1, %s30
    $region7: #{tpu_custom_call.1} parent=1 // loop_footer_branch
      %29 = sbr.rel target = $region3
    $region8: #{tpu_custom_call.1} parent=1 // loop_exit
      _
    %2227 = vsyncpa [#allocation3], 1
    %s2228 = scalar_lea.sflag [#allocation3], 1
    %2229 = vsyncpa %s2228, 1
    %2230 = vsyncpa [#allocation6], 1
    %s2231 = scalar_lea.sflag [#allocation6], 1
    %2232 = vsyncpa %s2231, 1
    %2233 = vsyncpa [#allocation9], 1
    %2234 = vsyncpa [#allocation12], 1
    %2235 = vsyncpa [#allocation15], 1
    %2236 = vsyncpa [#allocation18], 1
    %2237 = vsyncpa [#allocation4], 1
    %s2238 = scalar_lea.sflag [#allocation4], 1
    %2239 = vsyncpa %s2238, 1

// kernel: tpu_custom_call.1
$region0: #{tpu_custom_call.1}
  #allocation0 [shape = 'u32[]', space=smem, size = 0x4, offset = 0x4, fixed_abs, tag = 'smem constant byte address 0x4 - core index']
  #allocation1 [shape = 'u32[144,128]{1,0:T(1,128)}', space=vmem, size = 0x12000, scoped, tag = 'internal scratch']
  %s0 = inlined_call_operand.hbm [shape: f32[2,8,32], index: 0, kind: input, shape index: {}]
  %s1 = inlined_call_operand.hbm [shape: f32[2,8,32], index: 1, kind: input, shape index: {}]
  %s2 = inlined_call_operand.hbm [shape: bf16[32,32], index: 2, kind: input, shape index: {}]
  %s3 = inlined_call_operand.hbm [shape: bf16[32,64], index: 3, kind: input, shape index: {}]
  %s4 = inlined_call_operand.hbm [shape: bf16[32,32], index: 4, kind: input, shape index: {}]
  %s5 = inlined_call_operand.hbm [shape: f32[1,32], index: 5, kind: input, shape index: {}]
  %s6 = inlined_call_operand.hbm [shape: f32[1,32], index: 6, kind: input, shape index: {}]
  %s7 = inlined_call_operand.hbm [shape: bf16[32,128], index: 7, kind: input, shape index: {}]
  %s8 = inlined_call_operand.hbm [shape: bf16[64,32], index: 8, kind: input, shape index: {}]
  %s9 = inlined_call_operand.hbm [shape: f32[8,4], index: 9, kind: input, shape index: {}]
  %s10 = inlined_call_operand.hbm [shape: f32[8,4], index: 10, kind: input, shape index: {}]
  %s11 = inlined_call_operand.hbm [shape: f32[2,8,32], index: 11, kind: output, shape index: {}]
  %s12 = sld [smem:[#allocation0]]
  $region128: #{tpu_custom_call.1} parent=0
    _
  %s14 = ssub.s32 1, %s12
  %s15 = scalar_select 0, %s14, %s12
  $region1: #{tpu_custom_call.1} parent=0
    #allocation2 [shape = 'u8[8192]{0}', space=vmem, size = 0x2000, scoped, tag = 'input window, operand 0']
    #allocation3 [shape = 's32[2]{0}', space=sflag, size = 0x8, scoped, tag = 'scoped memory for tpu_custom_call.1']
    #allocation4 [shape = 's32[2]{0}', space=sflag, size = 0x8, scoped, tag = 'scoped memory for tpu_custom_call.1']
    #allocation5 [shape = 'u8[8192]{0}', space=vmem, size = 0x2000, scoped, tag = 'input window, operand 1']
    #allocation6 [shape = 's32[2]{0}', space=sflag, size = 0x8, scoped, tag = 'scoped memory for tpu_custom_call.1']
    #allocation7 [shape = 'u8[8192]{0}', space=vmem, size = 0x2000, scoped, tag = 'input window, operand 2, single buffered']
    #allocation8 [shape = 'u8[8192]{0}', space=vmem, size = 0x2000, scoped, tag = 'input window, operand 3, single buffered']
    #allocation9 [shape = 's32[1]{0}', space=sflag, size = 0x4, scoped, tag = 'scoped memory for tpu_custom_call.1']
    #allocation10 [shape = 'u8[8192]{0}', space=vmem, size = 0x2000, scoped, tag = 'input window, operand 4, single buffered']
    #allocation11 [shape = 'u8[512]{0}', space=vmem, size = 0x400, scoped, tag = 'input window, operand 5, single buffered']
    #allocation12 [shape = 's32[1]{0}', space=sflag, size = 0x4, scoped, tag = 'scoped memory for tpu_custom_call.1']
    #allocation13 [shape = 'u8[512]{0}', space=vmem, size = 0x400, scoped, tag = 'input window, operand 6, single buffered']
    #allocation14 [shape = 'u8[8192]{0}', space=vmem, size = 0x2000, scoped, tag = 'input window, operand 7, single buffered']
    #allocation15 [shape = 's32[1]{0}', space=sflag, size = 0x4, scoped, tag = 'scoped memory for tpu_custom_call.1']
    #allocation16 [shape = 'u8[16384]{0}', space=vmem, size = 0x4000, scoped, tag = 'input window, operand 8, single buffered']
    #allocation17 [shape = 'u8[4096]{0}', space=vmem, size = 0x1000, scoped, tag = 'input window, operand 9, single buffered']
    #allocation18 [shape = 's32[1]{0}', space=sflag, size = 0x4, scoped, tag = 'scoped memory for tpu_custom_call.1']
    #allocation19 [shape = 'u8[4096]{0}', space=vmem, size = 0x1000, scoped, tag = 'input window, operand 10, single buffered']
    #allocation20 [shape = 'u8[8192]{0}', space=vmem, size = 0x2000, scoped, tag = 'output window, operand 0']
    %16 = vsyncpa [#allocation3], 0
    %s17 = scalar_lea.sflag [#allocation3], 1
    %18 = vsyncpa %s17, 0
    %19 = vsyncpa [#allocation6], 0
    %s20 = scalar_lea.sflag [#allocation6], 1
    %21 = vsyncpa %s20, 0
    %22 = vsyncpa [#allocation9], 0
    %23 = vsyncpa [#allocation12], 0
    %24 = vsyncpa [#allocation15], 0
    %25 = vsyncpa [#allocation18], 0
    %26 = vsyncpa [#allocation4], 0
    %s27 = scalar_lea.sflag [#allocation4], 1
    %28 = vsyncpa %s27, 0
    loop: start=0, step=1, limit=4
    $region2: #{tpu_custom_call.1} parent=1 // loop_pre_header
      _
    $region3: #{tpu_custom_call.1} parent=1 // loop_header
      %s30 = sphi 0, %s34
      %p31 = scmp.ge.s32.totalorder %s30, 4
      %s37 = sphi 0, %s49
      %s38 = sphi 0, %s45
      %s39 = sphi 0, %s37
      %s40 = sphi 0, %s38
      %s41 = sphi 0, %s39
      %s42 = sphi 0, %s40
      %s54 = sphi 0, %s56
      %s57 = sphi 0, %s54
      %s58 = sphi 0, %s57
      %s74 = sphi 0, %s58
      %s80 = sphi 0, %s82
      %s83 = sphi 0, %s80
      %s84 = sphi 0, %s83
      %s100 = sphi 0, %s84
      %s104 = sphi 0, %s104
      %s106 = sphi 0, %s104
      %s107 = sphi 0, %s106
      %s121 = sphi 0, %s107
      %s125 = sphi 0, %s125
      %s127 = sphi 0, %s125
      %s128 = sphi 0, %s127
      %s142 = sphi 0, %s128
      %s146 = sphi 0, %s146
      %s148 = sphi 0, %s146
      %s149 = sphi 0, %s148
      %s163 = sphi 0, %s149
      %s167 = sphi 0, %s167
      %s169 = sphi 0, %s167
      %s170 = sphi 0, %s169
      %s184 = sphi 0, %s170
      %s188 = sphi 0, %s188
      %s190 = sphi 0, %s188
      %s191 = sphi 0, %s190
      %s205 = sphi 0, %s191
      %s209 = sphi 0, %s209
      %s211 = sphi 0, %s209
      %s212 = sphi 0, %s211
      %s226 = sphi 0, %s212
      %s230 = sphi 0, %s230
      %s232 = sphi 0, %s230
      %s233 = sphi 0, %s232
      %s247 = sphi 0, %s233
      %s251 = sphi 0, %s251
      %s253 = sphi 0, %s251
      %s254 = sphi 0, %s253
      %s268 = sphi 0, %s254
      %s272 = sphi 0, %s272
      %s274 = sphi 0, %s272
      %s275 = sphi 0, %s274
      %s289 = sphi 0, %s275
      %s297 = sphi 0, %s299
      %s300 = sphi 0, %s297
      %s301 = sphi 0, %s300
      %s317 = sphi 0, %s301
    $region4: #{tpu_custom_call.1} parent=1 // loop_header_branch
      %33 = sbr.rel (%p31) target = $region8
    $region5: #{tpu_custom_call.1} parent=1 // loop_body
      %s35 = ssub.s32 %s30, 1
      %s36 = ssub.s32 %s30, 2
      %s43 = sadd.s32 1, %s38
      %p44 = scmp.ge.s32.totalorder %s43, 1
      %s45 = scalar_select %p44, 0, %s43
      %s46 = sadd.s32 1, %s37
      %s47 = scalar_select %p44, %s46, %s37
      %p48 = scmp.ge.s32.totalorder %s47, 2
      %s49 = scalar_select %p48, 0, %s47
      %s50 = ssub.s32 %s37, %s49
      %s51 = ssub.s32 %s38, %s45
      %s52 = sor.u32 %s50, %s51
      %p53 = scmp.eq.s32.totalorder %s52, 0
      %s55 = sadd.s32 %s54, 1
      %s56 = scalar_select %p53, %s54, %s55
      %p59 = pneg %p53
      %p60 = scmp.eq.s32.totalorder %s30, 1
      %p61 = por %p59, %p60
      %p62 = scmp.ne.s32.totalorder %s54, %s57
      %p63 = scmp.eq.s32.totalorder %s30, 0
      %p64 = por %p62, %p63
      %p65 = scmp.ne.s32.totalorder %s54, %s57
      %p66 = scmp.eq.s32.totalorder %s35, 1
      %p67 = por %p65, %p66
      %p68 = scmp.ne.s32.totalorder %s57, %s58
      %p69 = scmp.eq.s32.totalorder %s35, 0
      %p70 = por %p68, %p69
      %p71 = scmp.ne.s32.totalorder %s57, %s58
      %p72 = scmp.eq.s32.totalorder %s36, 1
      %p73 = por %p71, %p72
      %p75 = scmp.ne.s32.totalorder %s58, %s74
      %p76 = scmp.eq.s32.totalorder %s36, 0
      %p77 = por %p75, %p76
      %s78 = ssub.s32 %s37, %s49
      %p79 = scmp.eq.s32.totalorder %s78, 0
      %s81 = sadd.s32 %s80, 1
      %s82 = scalar_select %p79, %s80, %s81
      %p85 = pneg %p79
      %p86 = scmp.eq.s32.totalorder %s30, 1
      %p87 = por %p85, %p86
      %p88 = scmp.ne.s32.totalorder %s80, %s83
      %p89 = scmp.eq.s32.totalorder %s30, 0
      %p90 = por %p88, %p89
      %p91 = scmp.ne.s32.totalorder %s80, %s83
      %p92 = scmp.eq.s32.totalorder %s35, 1
      %p93 = por %p91, %p92
      %p94 = scmp.ne.s32.totalorder %s83, %s84
      %p95 = scmp.eq.s32.totalorder %s35, 0
      %p96 = por %p94, %p95
      %p97 = scmp.ne.s32.totalorder %s83, %s84
      %p98 = scmp.eq.s32.totalorder %s36, 1
      %p99 = por %p97, %p98
      %p101 = scmp.ne.s32.totalorder %s84, %s100
      %p102 = scmp.eq.s32.totalorder %s36, 0
      %p103 = por %p101, %p102
      %s105 = sadd.s32 %s104, 1
      %p108 = scmp.eq.s32.totalorder %s30, 1
      %p109 = scmp.ne.s32.totalorder %s104, %s106
      %p110 = scmp.eq.s32.totalorder %s30, 0
      %p111 = por %p109, %p110
      %p112 = scmp.ne.s32.totalorder %s104, %s106
      %p113 = scmp.eq.s32.totalorder %s35, 1
      %p114 = por %p112, %p113
      %p115 = scmp.ne.s32.totalorder %s106, %s107
      %p116 = scmp.eq.s32.totalorder %s35, 0
      %p117 = por %p115, %p116
      %p118 = scmp.ne.s32.totalorder %s106, %s107
      %p119 = scmp.eq.s32.totalorder %s36, 1
      %p120 = por %p118, %p119
      %p122 = scmp.ne.s32.totalorder %s107, %s121
      %p123 = scmp.eq.s32.totalorder %s36, 0
      %p124 = por %p122, %p123
      %s126 = sadd.s32 %s125, 1
      %p129 = scmp.eq.s32.totalorder %s30, 1
      %p130 = scmp.ne.s32.totalorder %s125, %s127
      %p131 = scmp.eq.s32.totalorder %s30, 0
      %p132 = por %p130, %p131
      %p133 = scmp.ne.s32.totalorder %s125, %s127
      %p134 = scmp.eq.s32.totalorder %s35, 1
      %p135 = por %p133, %p134
      %p136 = scmp.ne.s32.totalorder %s127, %s128
      %p137 = scmp.eq.s32.totalorder %s35, 0
      %p138 = por %p136, %p137
      %p139 = scmp.ne.s32.totalorder %s127, %s128
      %p140 = scmp.eq.s32.totalorder %s36, 1
      %p141 = por %p139, %p140
      %p143 = scmp.ne.s32.totalorder %s128, %s142
      %p144 = scmp.eq.s32.totalorder %s36, 0
      %p145 = por %p143, %p144
      %s147 = sadd.s32 %s146, 1
      %p150 = scmp.eq.s32.totalorder %s30, 1
      %p151 = scmp.ne.s32.totalorder %s146, %s148
      %p152 = scmp.eq.s32.totalorder %s30, 0
      %p153 = por %p151, %p152
      %p154 = scmp.ne.s32.totalorder %s146, %s148
      %p155 = scmp.eq.s32.totalorder %s35, 1
      %p156 = por %p154, %p155
      %p157 = scmp.ne.s32.totalorder %s148, %s149
      %p158 = scmp.eq.s32.totalorder %s35, 0
      %p159 = por %p157, %p158
      %p160 = scmp.ne.s32.totalorder %s148, %s149
      %p161 = scmp.eq.s32.totalorder %s36, 1
      %p162 = por %p160, %p161
      %p164 = scmp.ne.s32.totalorder %s149, %s163
      %p165 = scmp.eq.s32.totalorder %s36, 0
      %p166 = por %p164, %p165
      %s168 = sadd.s32 %s167, 1
      %p171 = scmp.eq.s32.totalorder %s30, 1
      %p172 = scmp.ne.s32.totalorder %s167, %s169
      %p173 = scmp.eq.s32.totalorder %s30, 0
      %p174 = por %p172, %p173
      %p175 = scmp.ne.s32.totalorder %s167, %s169
      %p176 = scmp.eq.s32.totalorder %s35, 1
      %p177 = por %p175, %p176
      %p178 = scmp.ne.s32.totalorder %s169, %s170
      %p179 = scmp.eq.s32.totalorder %s35, 0
      %p180 = por %p178, %p179
      %p181 = scmp.ne.s32.totalorder %s169, %s170
      %p182 = scmp.eq.s32.totalorder %s36, 1
      %p183 = por %p181, %p182
      %p185 = scmp.ne.s32.totalorder %s170, %s184
      %p186 = scmp.eq.s32.totalorder %s36, 0
      %p187 = por %p185, %p186
      %s189 = sadd.s32 %s188, 1
      %p192 = scmp.eq.s32.totalorder %s30, 1
      %p193 = scmp.ne.s32.totalorder %s188, %s190
      %p194 = scmp.eq.s32.totalorder %s30, 0
      %p195 = por %p193, %p194
      %p196 = scmp.ne.s32.totalorder %s188, %s190
      %p197 = scmp.eq.s32.totalorder %s35, 1
      %p198 = por %p196, %p197
      %p199 = scmp.ne.s32.totalorder %s190, %s191
      %p200 = scmp.eq.s32.totalorder %s35, 0
      %p201 = por %p199, %p200
      %p202 = scmp.ne.s32.totalorder %s190, %s191
      %p203 = scmp.eq.s32.totalorder %s36, 1
      %p204 = por %p202, %p203
      %p206 = scmp.ne.s32.totalorder %s191, %s205
      %p207 = scmp.eq.s32.totalorder %s36, 0
      %p208 = por %p206, %p207
      %s210 = sadd.s32 %s209, 1
      %p213 = scmp.eq.s32.totalorder %s30, 1
      %p214 = scmp.ne.s32.totalorder %s209, %s211
      %p215 = scmp.eq.s32.totalorder %s30, 0
      %p216 = por %p214, %p215
      %p217 = scmp.ne.s32.totalorder %s209, %s211
      %p218 = scmp.eq.s32.totalorder %s35, 1
      %p219 = por %p217, %p218
      %p220 = scmp.ne.s32.totalorder %s211, %s212
      %p221 = scmp.eq.s32.totalorder %s35, 0
      %p222 = por %p220, %p221
      %p223 = scmp.ne.s32.totalorder %s211, %s212
      %p224 = scmp.eq.s32.totalorder %s36, 1
      %p225 = por %p223, %p224
      %p227 = scmp.ne.s32.totalorder %s212, %s226
      %p228 = scmp.eq.s32.totalorder %s36, 0
      %p229 = por %p227, %p228
      %s231 = sadd.s32 %s230, 1
      %p234 = scmp.eq.s32.totalorder %s30, 1
      %p235 = scmp.ne.s32.totalorder %s230, %s232
      %p236 = scmp.eq.s32.totalorder %s30, 0
      %p237 = por %p235, %p236
      %p238 = scmp.ne.s32.totalorder %s230, %s232
      %p239 = scmp.eq.s32.totalorder %s35, 1
      %p240 = por %p238, %p239
      %p241 = scmp.ne.s32.totalorder %s232, %s233
      %p242 = scmp.eq.s32.totalorder %s35, 0
      %p243 = por %p241, %p242
      %p244 = scmp.ne.s32.totalorder %s232, %s233
      %p245 = scmp.eq.s32.totalorder %s36, 1
      %p246 = por %p244, %p245
      %p248 = scmp.ne.s32.totalorder %s233, %s247
      %p249 = scmp.eq.s32.totalorder %s36, 0
      %p250 = por %p248, %p249
      %s252 = sadd.s32 %s251, 1
      %p255 = scmp.eq.s32.totalorder %s30, 1
      %p256 = scmp.ne.s32.totalorder %s251, %s253
      %p257 = scmp.eq.s32.totalorder %s30, 0
      %p258 = por %p256, %p257
      %p259 = scmp.ne.s32.totalorder %s251, %s253
      %p260 = scmp.eq.s32.totalorder %s35, 1
      %p261 = por %p259, %p260
      %p262 = scmp.ne.s32.totalorder %s253, %s254
      %p263 = scmp.eq.s32.totalorder %s35, 0
      %p264 = por %p262, %p263
      %p265 = scmp.ne.s32.totalorder %s253, %s254
      %p266 = scmp.eq.s32.totalorder %s36, 1
      %p267 = por %p265, %p266
      %p269 = scmp.ne.s32.totalorder %s254, %s268
      %p270 = scmp.eq.s32.totalorder %s36, 0
      %p271 = por %p269, %p270
      %s273 = sadd.s32 %s272, 1
      %p276 = scmp.eq.s32.totalorder %s30, 1
      %p277 = scmp.ne.s32.totalorder %s272, %s274
      %p278 = scmp.eq.s32.totalorder %s30, 0
      %p279 = por %p277, %p278
      %p280 = scmp.ne.s32.totalorder %s272, %s274
      %p281 = scmp.eq.s32.totalorder %s35, 1
      %p282 = por %p280, %p281
      %p283 = scmp.ne.s32.totalorder %s274, %s275
      %p284 = scmp.eq.s32.totalorder %s35, 0
      %p285 = por %p283, %p284
      %p286 = scmp.ne.s32.totalorder %s274, %s275
      %p287 = scmp.eq.s32.totalorder %s36, 1
      %p288 = por %p286, %p287
      %p290 = scmp.ne.s32.totalorder %s275, %s289
      %p291 = scmp.eq.s32.totalorder %s36, 0
      %p292 = por %p290, %p291
      %s293 = ssub.s32 %s37, %s49
      %s294 = ssub.s32 %s38, %s45
      %s295 = sor.u32 %s293, %s294
      %p296 = scmp.eq.s32.totalorder %s295, 0
      %s298 = sadd.s32 %s297, 1
      %s299 = scalar_select %p296, %s297, %s298
      %p302 = pneg %p296
      %p303 = scmp.eq.s32.totalorder %s30, 1
      %p304 = por %p302, %p303
      %p305 = scmp.ne.s32.totalorder %s297, %s300
      %p306 = scmp.eq.s32.totalorder %s30, 0
      %p307 = por %p305, %p306
      %p308 = scmp.ne.s32.totalorder %s297, %s300
      %p309 = scmp.eq.s32.totalorder %s35, 1
      %p310 = por %p308, %p309
      %p311 = scmp.ne.s32.totalorder %s300, %s301
      %p312 = scmp.eq.s32.totalorder %s35, 0
      %p313 = por %p311, %p312
      %p314 = scmp.ne.s32.totalorder %s300, %s301
      %p315 = scmp.eq.s32.totalorder %s36, 1
      %p316 = por %p314, %p315
      %p318 = scmp.ne.s32.totalorder %s301, %s317
      %p319 = scmp.eq.s32.totalorder %s36, 0
      %p320 = por %p318, %p319
      %p321 = scmp.le.s32.totalorder 1, %s30
      %p322 = scmp.lt.s32.totalorder %s30, 3
      %p323 = pnand %p321, %p322
      %p324 = pneg %p323
      // Predicated region
      $region9: #{tpu_custom_call.1} parent=5 // pred_check
        _
      $region10: #{tpu_custom_call.1} parent=5 // pred_check_branch
        %326 = sbr.rel (%p323) target = $region12
      $region11: #{tpu_custom_call.1} parent=5 // pred_region
        %s327 = ssub.s32 %s30, 1
        // Predicated region
        $region13: #{tpu_custom_call.1} parent=11 // pred_check
          %p328 = pneg %p117
        $region14: #{tpu_custom_call.1} parent=11 // pred_check_branch
          %330 = sbr.rel (%p328) target = $region16
        $region15: #{tpu_custom_call.1} parent=11 // pred_region
          %s332 = ssub.s32 256, 256
          %333 = vsyncadd [#allocation6], %s332
          %s334 = sshll.u32 [#allocation7], 4
          %s335 = int_to_ptr.vmem [resolvable:$true] %s334
          %340 = dma.hbm_to_vmem [thread:$0]  %s2, 256, %s335, [#allocation6], 64, 64, 4
        $region16: #{tpu_custom_call.1} parent=11 // pred_fallthru
          _
        // Predicated region
        $region17: #{tpu_custom_call.1} parent=11 // pred_check
          %p341 = pneg %p138
        $region18: #{tpu_custom_call.1} parent=11 // pred_check_branch
          %343 = sbr.rel (%p341) target = $region20
        $region19: #{tpu_custom_call.1} parent=11 // pred_region
          %s345 = ssub.s32 256, 256
          %346 = vsyncadd [#allocation9], %s345
          %s347 = sshll.u32 [#allocation8], 4
          %s348 = int_to_ptr.vmem [resolvable:$true] %s347
          %353 = dma.hbm_to_vmem [thread:$0]  %s3, 256, %s348, [#allocation9], 64, 64, 4
        $region20: #{tpu_custom_call.1} parent=11 // pred_fallthru
          _
        // Predicated region
        $region21: #{tpu_custom_call.1} parent=11 // pred_check
          %p354 = pneg %p159
        $region22: #{tpu_custom_call.1} parent=11 // pred_check_branch
          %356 = sbr.rel (%p354) target = $region24
        $region23: #{tpu_custom_call.1} parent=11 // pred_region
          %s358 = ssub.s32 256, 256
          %359 = vsyncadd [#allocation9], %s358
          %s360 = sshll.u32 [#allocation10], 4
          %s361 = int_to_ptr.vmem [resolvable:$true] %s360
          %366 = dma.hbm_to_vmem [thread:$0]  %s4, 256, %s361, [#allocation9], 64, 64, 4
        $region24: #{tpu_custom_call.1} parent=11 // pred_fallthru
          _
        // Predicated region
        $region25: #{tpu_custom_call.1} parent=11 // pred_check
          %p367 = pneg %p180
        $region26: #{tpu_custom_call.1} parent=11 // pred_check_branch
          %369 = sbr.rel (%p367) target = $region28
        $region27: #{tpu_custom_call.1} parent=11 // pred_region
          %s371 = ssub.s32 16, 16
          %372 = vsyncadd [#allocation12], %s371
          %s374 = sshll.u32 [#allocation11], 4
          %s375 = int_to_ptr.vmem [resolvable:$true] %s374
          %377 = dma.hbm_to_vmem [thread:$0]  %s5, 16, %s375, [#allocation12]
        $region28: #{tpu_custom_call.1} parent=11 // pred_fallthru
          _
        // Predicated region
        $region29: #{tpu_custom_call.1} parent=11 // pred_check
          %p378 = pneg %p201
        $region30: #{tpu_custom_call.1} parent=11 // pred_check_branch
          %380 = sbr.rel (%p378) target = $region32
        $region31: #{tpu_custom_call.1} parent=11 // pred_region
          %s382 = ssub.s32 16, 16
          %383 = vsyncadd [#allocation12], %s382
          %s385 = sshll.u32 [#allocation13], 4
          %s386 = int_to_ptr.vmem [resolvable:$true] %s385
          %388 = dma.hbm_to_vmem [thread:$0]  %s6, 16, %s386, [#allocation12]
        $region32: #{tpu_custom_call.1} parent=11 // pred_fallthru
          _
        // Predicated region
        $region33: #{tpu_custom_call.1} parent=11 // pred_check
          %p389 = pneg %p222
        $region34: #{tpu_custom_call.1} parent=11 // pred_check_branch
          %391 = sbr.rel (%p389) target = $region36
        $region35: #{tpu_custom_call.1} parent=11 // pred_region
          %s393 = ssub.s32 256, 256
          %394 = vsyncadd [#allocation15], %s393
          %s395 = sshll.u32 [#allocation14], 4
          %s396 = int_to_ptr.vmem [resolvable:$true] %s395
          %401 = dma.hbm_to_vmem [thread:$0]  %s7, 256, %s396, [#allocation15], 64, 64, 4
        $region36: #{tpu_custom_call.1} parent=11 // pred_fallthru
          _
        // Predicated region
        $region37: #{tpu_custom_call.1} parent=11 // pred_check
          %p402 = pneg %p243
        $region38: #{tpu_custom_call.1} parent=11 // pred_check_branch
          %404 = sbr.rel (%p402) target = $region40
        $region39: #{tpu_custom_call.1} parent=11 // pred_region
          %s406 = ssub.s32 512, 512
          %407 = vsyncadd [#allocation15], %s406
          %s408 = sshll.u32 [#allocation16], 4
          %s409 = int_to_ptr.vmem [resolvable:$true] %s408
          %414 = dma.hbm_to_vmem [thread:$0]  %s8, 512, %s409, [#allocation15], 64, 64, 4
        $region40: #{tpu_custom_call.1} parent=11 // pred_fallthru
          _
        // Predicated region
        $region41: #{tpu_custom_call.1} parent=11 // pred_check
          %p415 = pneg %p264
        $region42: #{tpu_custom_call.1} parent=11 // pred_check_branch
          %417 = sbr.rel (%p415) target = $region44
        $region43: #{tpu_custom_call.1} parent=11 // pred_region
          %s419 = ssub.s32 128, 128
          %420 = vsyncadd [#allocation18], %s419
          %s422 = sshll.u32 [#allocation17], 4
          %s423 = int_to_ptr.vmem [resolvable:$true] %s422
          %425 = dma.hbm_to_vmem [thread:$0]  %s9, 128, %s423, [#allocation18]
        $region44: #{tpu_custom_call.1} parent=11 // pred_fallthru
          _
        // Predicated region
        $region45: #{tpu_custom_call.1} parent=11 // pred_check
          %p426 = pneg %p285
        $region46: #{tpu_custom_call.1} parent=11 // pred_check_branch
          %428 = sbr.rel (%p426) target = $region48
        $region47: #{tpu_custom_call.1} parent=11 // pred_region
          %s430 = ssub.s32 128, 128
          %431 = vsyncadd [#allocation18], %s430
          %s433 = sshll.u32 [#allocation19], 4
          %s434 = int_to_ptr.vmem [resolvable:$true] %s433
          %436 = dma.hbm_to_vmem [thread:$0]  %s10, 128, %s434, [#allocation18]
        $region48: #{tpu_custom_call.1} parent=11 // pred_fallthru
          _
      $region12: #{tpu_custom_call.1} parent=5 // pred_fallthru
        _
      %p437 = scmp.lt.s32.totalorder %s30, 2
      // Predicated region
      $region49: #{tpu_custom_call.1} parent=5 // pred_check
        %p438 = pneg %p437
      $region50: #{tpu_custom_call.1} parent=5 // pred_check_branch
        %440 = sbr.rel (%p438) target = $region52
      $region51: #{tpu_custom_call.1} parent=5 // pred_region
        // Predicated region
        $region53: #{tpu_custom_call.1} parent=51 // pred_check
          %p441 = pneg %p64
        $region54: #{tpu_custom_call.1} parent=51 // pred_check_branch
          %443 = sbr.rel (%p441) target = $region56
        $region55: #{tpu_custom_call.1} parent=51 // pred_region
          %s444 = sand.u32 %s54, 1
          %s445 = scalar_lea.sflag [#allocation3], %s444
          %s446 = sand.u32 %s54, 1
          %s447 = smul.addr %s446, 8
          %s448 = scalar_lea.vmem [#allocation2], %s447
          %s450 = ssub.s32 128, 128
          %451 = vsyncadd %s445, %s450
          %s452 = sadd.s32 %s38, %s37
          %s453 = smul.addr %s452, 128
          %s454 = scalar_lea.hbm %s0, %s453
          %s456 = sshll.u32 %s448, 4
          %s457 = int_to_ptr.vmem [resolvable:$true] %s456
          %459 = dma.hbm_to_vmem [thread:$0]  %s454, 128, %s457, %s445
        $region56: #{tpu_custom_call.1} parent=51 // pred_fallthru
          _
        // Predicated region
        $region57: #{tpu_custom_call.1} parent=51 // pred_check
          %p460 = pneg %p90
        $region58: #{tpu_custom_call.1} parent=51 // pred_check_branch
          %462 = sbr.rel (%p460) target = $region60
        $region59: #{tpu_custom_call.1} parent=51 // pred_region
          %s463 = sand.u32 %s30, 1
          %s464 = scalar_lea.sflag [#allocation6], %s463
          %s465 = sand.u32 %s80, 1
          %s466 = smul.addr %s465, 8
          %s467 = scalar_lea.vmem [#allocation5], %s466
          %s469 = ssub.s32 128, 128
          %470 = vsyncadd %s464, %s469
          %s471 = smul.addr %s37, 128
          %s472 = scalar_lea.hbm %s1, %s471
          %s474 = sshll.u32 %s467, 4
          %s475 = int_to_ptr.vmem [resolvable:$true] %s474
          %477 = dma.hbm_to_vmem [thread:$0]  %s472, 128, %s475, %s464
        $region60: #{tpu_custom_call.1} parent=51 // pred_fallthru
          _
      $region52: #{tpu_custom_call.1} parent=5 // pred_fallthru
        _
      %p478 = scmp.le.s32.totalorder 1, %s30
      %p479 = scmp.lt.s32.totalorder %s30, 3
      %p480 = pnand %p478, %p479
      %p481 = pneg %p480
      // Predicated region
      $region61: #{tpu_custom_call.1} parent=5 // pred_check
        _
      $region62: #{tpu_custom_call.1} parent=5 // pred_check_branch
        %483 = sbr.rel (%p480) target = $region64
      $region63: #{tpu_custom_call.1} parent=5 // pred_region
        %s484 = ssub.s32 %s30, 1
        %s485 = sand.u32 %s57, 1
        %s486 = scalar_lea.sflag [#allocation3], %s485
        %s487 = sand.u32 %s57, 1
        %s488 = smul.addr %s487, 8
        %s489 = scalar_lea.vmem [#allocation2], %s488
        // Predicated region
        $region65: #{tpu_custom_call.1} parent=63 // pred_check
          %p490 = pneg %p70
        $region66: #{tpu_custom_call.1} parent=63 // pred_check_branch
          %492 = sbr.rel (%p490) target = $region68
        $region67: #{tpu_custom_call.1} parent=63 // pred_region
          %493 = dma.done %s486, 128
        $region68: #{tpu_custom_call.1} parent=63 // pred_fallthru
          _
        %s494 = sand.u32 %s35, 1
        %s495 = scalar_lea.sflag [#allocation6], %s494
        %s496 = sand.u32 %s83, 1
        %s497 = smul.addr %s496, 8
        %s498 = scalar_lea.vmem [#allocation5], %s497
        // Predicated region
        $region69: #{tpu_custom_call.1} parent=63 // pred_check
          %p499 = pneg %p96
        $region70: #{tpu_custom_call.1} parent=63 // pred_check_branch
          %501 = sbr.rel (%p499) target = $region72
        $region71: #{tpu_custom_call.1} parent=63 // pred_region
          %502 = dma.done %s495, 128
        $region72: #{tpu_custom_call.1} parent=63 // pred_fallthru
          _
        // Predicated region
        $region73: #{tpu_custom_call.1} parent=63 // pred_check
          %p503 = pneg %p117
        $region74: #{tpu_custom_call.1} parent=63 // pred_check_branch
          %505 = sbr.rel (%p503) target = $region76
        $region75: #{tpu_custom_call.1} parent=63 // pred_region
          %506 = dma.done [#allocation6], 256
        $region76: #{tpu_custom_call.1} parent=63 // pred_fallthru
          _
        // Predicated region
        $region77: #{tpu_custom_call.1} parent=63 // pred_check
          %p507 = pneg %p138
        $region78: #{tpu_custom_call.1} parent=63 // pred_check_branch
          %509 = sbr.rel (%p507) target = $region80
        $region79: #{tpu_custom_call.1} parent=63 // pred_region
          %510 = dma.done [#allocation9], 256
        $region80: #{tpu_custom_call.1} parent=63 // pred_fallthru
          _
        // Predicated region
        $region81: #{tpu_custom_call.1} parent=63 // pred_check
          %p511 = pneg %p159
        $region82: #{tpu_custom_call.1} parent=63 // pred_check_branch
          %513 = sbr.rel (%p511) target = $region84
        $region83: #{tpu_custom_call.1} parent=63 // pred_region
          %514 = dma.done [#allocation9], 256
        $region84: #{tpu_custom_call.1} parent=63 // pred_fallthru
          _
        // Predicated region
        $region85: #{tpu_custom_call.1} parent=63 // pred_check
          %p515 = pneg %p180
        $region86: #{tpu_custom_call.1} parent=63 // pred_check_branch
          %517 = sbr.rel (%p515) target = $region88
        $region87: #{tpu_custom_call.1} parent=63 // pred_region
          %518 = dma.done [#allocation12], 16
        $region88: #{tpu_custom_call.1} parent=63 // pred_fallthru
          _
        // Predicated region
        $region89: #{tpu_custom_call.1} parent=63 // pred_check
          %p519 = pneg %p201
        $region90: #{tpu_custom_call.1} parent=63 // pred_check_branch
          %521 = sbr.rel (%p519) target = $region92
        $region91: #{tpu_custom_call.1} parent=63 // pred_region
          %522 = dma.done [#allocation12], 16
        $region92: #{tpu_custom_call.1} parent=63 // pred_fallthru
          _
        // Predicated region
        $region93: #{tpu_custom_call.1} parent=63 // pred_check
          %p523 = pneg %p222
        $region94: #{tpu_custom_call.1} parent=63 // pred_check_branch
          %525 = sbr.rel (%p523) target = $region96
        $region95: #{tpu_custom_call.1} parent=63 // pred_region
          %526 = dma.done [#allocation15], 256
        $region96: #{tpu_custom_call.1} parent=63 // pred_fallthru
          _
        // Predicated region
        $region97: #{tpu_custom_call.1} parent=63 // pred_check
          %p527 = pneg %p243
        $region98: #{tpu_custom_call.1} parent=63 // pred_check_branch
          %529 = sbr.rel (%p527) target = $region100
        $region99: #{tpu_custom_call.1} parent=63 // pred_region
          %530 = dma.done [#allocation15], 512
        $region100: #{tpu_custom_call.1} parent=63 // pred_fallthru
          _
        // Predicated region
        $region101: #{tpu_custom_call.1} parent=63 // pred_check
          %p531 = pneg %p264
        $region102: #{tpu_custom_call.1} parent=63 // pred_check_branch
          %533 = sbr.rel (%p531) target = $region104
        $region103: #{tpu_custom_call.1} parent=63 // pred_region
          %534 = dma.done [#allocation18], 128
        $region104: #{tpu_custom_call.1} parent=63 // pred_fallthru
          _
        // Predicated region
        $region105: #{tpu_custom_call.1} parent=63 // pred_check
          %p535 = pneg %p285
        $region106: #{tpu_custom_call.1} parent=63 // pred_check_branch
          %537 = sbr.rel (%p535) target = $region108
        $region107: #{tpu_custom_call.1} parent=63 // pred_region
          %538 = dma.done [#allocation18], 128
        $region108: #{tpu_custom_call.1} parent=63 // pred_fallthru
          _
        %s539 = sand.u32 %s57, 1
        %s540 = scalar_lea.sflag [#allocation3], %s539
        %s541 = sand.u32 %s57, 1
        %s542 = smul.addr %s541, 8
        %s543 = scalar_lea.vmem [#allocation2], %s542
        %p544 = pneg %p70
        %p545 = pneg %p67
        %s546 = sand.u32 %s35, 1
        %s547 = scalar_lea.sflag [#allocation6], %s546
        %s548 = sand.u32 %s83, 1
        %s549 = smul.addr %s548, 8
        %s550 = scalar_lea.vmem [#allocation5], %s549
        %p551 = pneg %p96
        %p552 = pneg %p93
        %p553 = pneg %p117
        %p554 = pneg %p114
        %p555 = pneg %p138
        %p556 = pneg %p135
        %p557 = pneg %p159
        %p558 = pneg %p156
        %p559 = pneg %p180
        %p560 = pneg %p177
        %p561 = pneg %p201
        %p562 = pneg %p198
        %p563 = pneg %p222
        %p564 = pneg %p219
        %p565 = pneg %p243
        %p566 = pneg %p240
        %p567 = pneg %p264
        %p568 = pneg %p261
        %p569 = pneg %p285
        %p570 = pneg %p282
        %p571 = pneg %p313
        %p572 = pneg %p310
        %s573 = sand.u32 %s300, 1
        %s574 = scalar_lea.sflag [#allocation4], %s573
        %s575 = sand.u32 %s300, 1
        %s576 = smul.addr %s575, 8
        %s577 = scalar_lea.vmem [#allocation20], %s576
        %s579 = smul.u32 %s40, 8
        %v580 = vld [vmem:[%s489] sm:$0xff]
        %v581 = vld [vmem:[#allocation11] sm:$0x1]
        %v582 = vmul.f32 %v580, %v580
        %vm583 = vcmask 261120
        %v584 = vsel %vm583, %v582, 0.0
        %585 = vadd.xlane.f32.xlu0 %v584
        %v586 = vpop.xlane.xlu0 %585
        %v587 = vrcp.pop 32.0
        %v588 = vmul.f32 %v586, %v587
        %v589 = vadd.f32 %v588, 1e-05
        %v590 = vrsqrt.pop %v589
        %v591 = vmul.f32 %v580, %v590
        %v593 = vlaneseq
        %v594 = vshrl.u32 %v593, 7
        %v595 = vsub.s32 0, %v594
        %v596 = vrot.slane %v581, %v595
        %v598 = vmul.f32 %v591, %v596
        %v599 = vpack.c.bf16 %v598, %v598
        %v600 = vld [vmem:[#allocation7] sm:$0xf]
        %v601 = vld [vmem:[#allocation7 + $0x4] sm:$0xf]
        %v602 = vld [vmem:[#allocation7 + $0x8] sm:$0xf]
        %v603 = vld [vmem:[#allocation7 + $0xc] sm:$0xf]
        %v608 = vunpack.c.l.b16 %v600
        %v609 = vunpack.c.l.b16 %v601
        %v610 = vunpack.c.l.b16 %v602
        %v611 = vunpack.c.l.b16 %v603
        %v612 = vpack.c.b16 %v609, %v608
        %v613 = vpack.c.b16 %v611, %v610
        %v617 = vsel %vm583, %v599, 0
        %619 = vmatprep.subr.bf16.mxu0 0
        %620 = vmatpush1.bf16.msra.mxu0 %v612
        %621 = vmatprep.subr.bf16.mxu0 0
        %622 = vmatpush1.bf16.msra.mxu0 %v613
        %623 = vmatprep.subr.bf16.mxu0 0
        %624 = vmatpush1.bf16.msra.mxu0 0
        %625 = vmatprep.subr.bf16.mxu0 0
        %626 = vmatpush1.bf16.msra.mxu0 0
        %627 = vmatprep.subr.bf16.mxu0 0
        %628 = vmatpush1.bf16.msra.mxu0 0
        %629 = vmatprep.subr.bf16.mxu0 0
        %630 = vmatpush1.bf16.msra.mxu0 0
        %631 = vmatprep.subr.bf16.mxu0 0
        %632 = vmatpush1.bf16.msra.mxu0 0
        %633 = vmatprep.subr.bf16.mxu0 0
        %634 = vmatpush1.bf16.msra.mxu0 0
        %635 = vmatprep.subr.bf16.mxu0 0
        %636 = vmatpush1.bf16.msra.mxu0 0
        %637 = vmatprep.subr.bf16.mxu0 0
        %638 = vmatpush1.bf16.msra.mxu0 0
        %639 = vmatprep.subr.bf16.mxu0 0
        %640 = vmatpush1.bf16.msra.mxu0 0
        %641 = vmatprep.subr.bf16.mxu0 0
        %642 = vmatpush1.bf16.msra.mxu0 0
        %643 = vmatprep.subr.bf16.mxu0 0
        %644 = vmatpush1.bf16.msra.mxu0 0
        %645 = vmatprep.subr.bf16.mxu0 0
        %646 = vmatpush1.bf16.msra.mxu0 0
        %647 = vmatprep.subr.bf16.mxu0 0
        %648 = vmatpush1.bf16.msra.mxu0 0
        %649 = vmatprep.subr.bf16.mxu0 0
        %650 = vmatpush1.bf16.msra.mxu0 0
        %651 = vmatprep.mubr.bf16.mxu0 0
        %652 = vmatmul.mubr.bf16.gmra.mrb[0].mxu0 %v617
        %v653 = vpop.f32.mrb[0].mxu0
        %v654 = vadd.f32 0.0, %v653
        %v655 = vpop.f32.mrb[0].mxu0
        %v656 = vpop.f32.mrb[0].mxu0
        %v657 = vpop.f32.mrb[0].mxu0
        %658 = vdwg.mxu0
        %660 = vrot.lane.b32.xlu0 %v654, 120
        %v661 = vpop.permute.xlu0 %660
        %663 = vrot.lane.b32.xlu0 %v654, 112
        %v664 = vpop.permute.xlu0 %663
        %666 = vrot.lane.b32.xlu0 %v654, 104
        %v667 = vpop.permute.xlu0 %666
        %v669 = vcombine.low %v654, %v664
        %v670 = vcombine.high %v654, %v664
        %v672 = vunpack.c.l.s4 1983009808
        %v673 = vunpack.c.0.s8 %v672
        %v674 = vlaneseq
        %v675 = vshrl.u32 %v674, 7
        %v676 = vsub.s32 %v673, %v675
        %v677 = vrot.slane %v669, %v676
        %v679 = vunpack.c.l.s4 1983009808
        %v680 = vunpack.c.0.s8 %v679
        %v681 = vlaneseq
        %v682 = vshrl.u32 %v681, 7
        %v683 = vsub.s32 %v680, %v682
        %v684 = vrot.slane %v670, %v683
        %v685 = vcombine.low %v661, %v667
        %v686 = vcombine.high %v661, %v667
        %v688 = vunpack.c.l.s4 1983009808
        %v689 = vunpack.c.0.s8 %v688
        %v690 = vlaneseq
        %v691 = vshrl.u32 %v690, 7
        %v692 = vsub.s32 %v689, %v691
        %v693 = vrot.slane %v685, %v692
        %v695 = vunpack.c.l.s4 1983009808
        %v696 = vunpack.c.0.s8 %v695
        %v697 = vlaneseq
        %v698 = vshrl.u32 %v697, 7
        %v699 = vsub.s32 %v696, %v698
        %v700 = vrot.slane %v686, %v699
        %v701 = vcombine.low %v677, %v693
        %v702 = vcombine.high %v677, %v693
        %v704 = vunpack.c.l.s4 1934713408
        %v705 = vunpack.c.0.s8 %v704
        %v706 = vlaneseq
        %v707 = vshrl.u32 %v706, 7
        %v708 = vsub.s32 %v705, %v707
        %v709 = vrot.slane %v701, %v708
        %v711 = vunpack.c.l.s4 1934713408
        %v712 = vunpack.c.0.s8 %v711
        %v713 = vlaneseq
        %v714 = vshrl.u32 %v713, 7
        %v715 = vsub.s32 %v712, %v714
        %v716 = vrot.slane %v702, %v715
        %v717 = vcombine.low %v684, %v700
        %v718 = vcombine.high %v684, %v700
        %v720 = vunpack.c.l.s4 1934713408
        %v721 = vunpack.c.0.s8 %v720
        %v722 = vlaneseq
        %v723 = vshrl.u32 %v722, 7
        %v724 = vsub.s32 %v721, %v723
        %v725 = vrot.slane %v717, %v724
        %v727 = vunpack.c.l.s4 1934713408
        %v728 = vunpack.c.0.s8 %v727
        %v729 = vlaneseq
        %v730 = vshrl.u32 %v729, 7
        %v731 = vsub.s32 %v728, %v730
        %v732 = vrot.slane %v718, %v731
        %v733 = vcombine.high %v709, 0.0
        %v734 = vcombine.high %v716, 0.0
        %v735 = vcombine.high %v725, 0.0
        %v736 = vcombine.high %v732, 0.0
        %v737 = vcombine.low %v709, %v716
        %v739 = vunpack.c.l.s4 1983009808
        %v740 = vunpack.c.0.s8 %v739
        %v741 = vlaneseq
        %v742 = vshrl.u32 %v741, 7
        %v743 = vsub.s32 %v740, %v742
        %v744 = vrot.slane %v737, %v743
        %v745 = vcombine.low %v733, %v734
        %v747 = vunpack.c.l.s4 1983009808
        %v748 = vunpack.c.0.s8 %v747
        %v749 = vlaneseq
        %v750 = vshrl.u32 %v749, 7
        %v751 = vsub.s32 %v748, %v750
        %v752 = vrot.slane %v745, %v751
        %v753 = vcombine.low %v725, %v732
        %v755 = vunpack.c.l.s4 1983009808
        %v756 = vunpack.c.0.s8 %v755
        %v757 = vlaneseq
        %v758 = vshrl.u32 %v757, 7
        %v759 = vsub.s32 %v756, %v758
        %v760 = vrot.slane %v753, %v759
        %v761 = vcombine.low %v735, %v736
        %v763 = vunpack.c.l.s4 1983009808
        %v764 = vunpack.c.0.s8 %v763
        %v765 = vlaneseq
        %v766 = vshrl.u32 %v765, 7
        %v767 = vsub.s32 %v764, %v766
        %v768 = vrot.slane %v761, %v767
        %v769 = vcombine.low %v744, %v752
        %v770 = vcombine.high %v744, %v752
        %v772 = vunpack.c.l.s4 1934713408
        %v773 = vunpack.c.0.s8 %v772
        %v774 = vlaneseq
        %v775 = vshrl.u32 %v774, 7
        %v776 = vsub.s32 %v773, %v775
        %v777 = vrot.slane %v769, %v776
        %v779 = vunpack.c.l.s4 1934713408
        %v780 = vunpack.c.0.s8 %v779
        %v781 = vlaneseq
        %v782 = vshrl.u32 %v781, 7
        %v783 = vsub.s32 %v780, %v782
        %v784 = vrot.slane %v770, %v783
        %v785 = vcombine.low %v760, %v768
        %v786 = vcombine.high %v760, %v768
        %v788 = vunpack.c.l.s4 1934713408
        %v789 = vunpack.c.0.s8 %v788
        %v790 = vlaneseq
        %v791 = vshrl.u32 %v790, 7
        %v792 = vsub.s32 %v789, %v791
        %v793 = vrot.slane %v785, %v792
        %v795 = vunpack.c.l.s4 1934713408
        %v796 = vunpack.c.0.s8 %v795
        %v797 = vlaneseq
        %v798 = vshrl.u32 %v797, 7
        %v799 = vsub.s32 %v796, %v798
        %v800 = vrot.slane %v786, %v799
        %v801 = vcombine.low %v777, %v793
        %v802 = vcombine.high %v777, %v793
        %v803 = vcombine.low %v784, %v800
        %v804 = vcombine.high %v784, %v800
        %s805 = scalar_lea.vmem [#allocation17], %s579
        %v806 = vld [vmem:[%s805] sm:$0xff]
        %s807 = scalar_lea.vmem [#allocation19], %s579
        %v808 = vld [vmem:[%s807] sm:$0xff]
        %v809 = vmul.f32 %v801, %v806
        %v810 = vmul.f32 %v802, %v806
        %v811 = vmul.f32 %v803, %v806
        %v812 = vmul.f32 %v804, %v806
        %814 = vrot.lane.b32.xlu0 %v808, 4
        %v815 = vpop.permute.xlu0 %814
        %v817 = vmul.f32 %v801, %v815
        %v818 = vmul.f32 %v802, %v815
        %v819 = vmul.f32 %v803, %v815
        %v820 = vmul.f32 %v804, %v815
        %825 = vrot.lane.b32.xlu0 %v817, 124
        %v826 = vpop.permute.xlu0 %825
        %827 = vrot.lane.b32.xlu0 %v818, 124
        %v828 = vpop.permute.xlu0 %827
        %829 = vrot.lane.b32.xlu0 %v819, 124
        %v830 = vpop.permute.xlu0 %829
        %831 = vrot.lane.b32.xlu0 %v820, 124
        %v832 = vpop.permute.xlu0 %831
        %v837 = vsub.f32 %v809, %v826
        %v838 = vsub.f32 %v810, %v828
        %v839 = vsub.f32 %v811, %v830
        %v840 = vsub.f32 %v812, %v832
        %842 = vrot.lane.b32.xlu0 %v806, 4
        %v843 = vpop.permute.xlu0 %842
        %v845 = vmul.f32 %v801, %v843
        %v846 = vmul.f32 %v802, %v843
        %v847 = vmul.f32 %v803, %v843
        %v848 = vmul.f32 %v804, %v843
        %v849 = vmul.f32 %v801, %v808
        %v850 = vmul.f32 %v802, %v808
        %v851 = vmul.f32 %v803, %v808
        %v852 = vmul.f32 %v804, %v808
        %857 = vrot.lane.b32.xlu0 %v849, 4
        %v858 = vpop.permute.xlu0 %857
        %859 = vrot.lane.b32.xlu0 %v850, 4
        %v860 = vpop.permute.xlu0 %859
        %861 = vrot.lane.b32.xlu0 %v851, 4
        %v862 = vpop.permute.xlu0 %861
        %863 = vrot.lane.b32.xlu0 %v852, 4
        %v864 = vpop.permute.xlu0 %863
        %v869 = vadd.f32 %v845, %v858
        %v870 = vadd.f32 %v846, %v860
        %v871 = vadd.f32 %v847, %v862
        %v872 = vadd.f32 %v848, %v864
        %vm873 = vcmask 31744
        %v874 = vsel %vm873, %v837, %v869
        %v875 = vsel %vm873, %v838, %v870
        %v876 = vsel %vm873, %v839, %v871
        %v877 = vsel %vm873, %v840, %v872
        %v878 = vpack.c.bf16 %v874, %v874
        %v879 = vpack.c.bf16 %v875, %v875
        %v880 = vpack.c.bf16 %v876, %v876
        %v881 = vpack.c.bf16 %v877, %v877
        %v882 = vlaneseq
        %v883 = vshrl.u32 %v882, 7
        %v884 = vstv %s579
        %v885 = vadd.s32 %v884, %v883
        %v886 = vld [vmem:[#allocation8] sm:$0xf]
        %v887 = vld [vmem:[#allocation8 + $0x4] sm:$0xf]
        %v888 = vld [vmem:[#allocation8 + $0x8] sm:$0xf]
        %v889 = vld [vmem:[#allocation8 + $0xc] sm:$0xf]
        %s890 = sadd.s32 %s40, 1
        // While loop
        $region109: #{tpu_custom_call.1} parent=63 // loop_pre_header
          _
        $region110: #{tpu_custom_call.1} parent=63 // loop_header
          %s892 = sphi 0, %s894
          %p893 = scmp.ge.s32.totalorder %s892, %s890
          %v897 = vphi -1e+30, %v1559
          %v898 = vphi -1e+30, %v1560
          %v899 = vphi -1e+30, %v1561
          %v900 = vphi -1e+30, %v1562
          %v901 = vphi 0.0, %v1603
          %v902 = vphi 0.0, %v1604
          %v903 = vphi 0.0, %v1605
          %v904 = vphi 0.0, %v1606
          %v905 = vphi 0.0, %v1800
          %v906 = vphi 0.0, %v1801
          %v907 = vphi 0.0, %v1802
          %v908 = vphi 0.0, %v1803
        $region111: #{tpu_custom_call.1} parent=63 // loop_header_branch
          %896 = sbr.rel (%p893) target = $region115
        $region112: #{tpu_custom_call.1} parent=63 // loop_body
          %s909 = smul.u32 %s892, 8
          %s910 = scalar_lea.vmem %s498, %s909 [#allocation5]
          %v911 = vld [vmem:[%s910] sm:$0xff]
          %v912 = vmul.f32 %v911, %v911
          %v913 = vsel %vm583, %v912, 0.0
          %914 = vadd.xlane.f32.xlu0 %v913
          %v915 = vpop.xlane.xlu0 %914
          %v916 = vmul.f32 %v915, %v587
          %v917 = vadd.f32 %v916, 1e-05
          %v918 = vrsqrt.pop %v917
          %v919 = vmul.f32 %v911, %v918
          %v920 = vmul.f32 %v919, %v596
          %v921 = vpack.c.bf16 %v920, %v920
          %v926 = vunpack.c.l.b16 %v886
          %v927 = vunpack.c.l.b16 %v887
          %v928 = vunpack.c.l.b16 %v888
          %v929 = vunpack.c.l.b16 %v889
          %v930 = vpack.c.b16 %v927, %v926
          %v931 = vpack.c.b16 %v929, %v928
          %v935 = vsel %vm583, %v921, 0
          %937 = vmatprep.subr.bf16.mxu0 0
          %938 = vmatpush1.bf16.msra.mxu0 %v930
          %939 = vmatprep.subr.bf16.mxu0 0
          %940 = vmatpush1.bf16.msra.mxu0 %v931
          %941 = vmatprep.subr.bf16.mxu0 0
          %942 = vmatpush1.bf16.msra.mxu0 0
          %943 = vmatprep.subr.bf16.mxu0 0
          %944 = vmatpush1.bf16.msra.mxu0 0
          %945 = vmatprep.subr.bf16.mxu0 0
          %946 = vmatpush1.bf16.msra.mxu0 0
          %947 = vmatprep.subr.bf16.mxu0 0
          %948 = vmatpush1.bf16.msra.mxu0 0
          %949 = vmatprep.subr.bf16.mxu0 0
          %950 = vmatpush1.bf16.msra.mxu0 0
          %951 = vmatprep.subr.bf16.mxu0 0
          %952 = vmatpush1.bf16.msra.mxu0 0
          %953 = vmatprep.subr.bf16.mxu0 0
          %954 = vmatpush1.bf16.msra.mxu0 0
          %955 = vmatprep.subr.bf16.mxu0 0
          %956 = vmatpush1.bf16.msra.mxu0 0
          %957 = vmatprep.subr.bf16.mxu0 0
          %958 = vmatpush1.bf16.msra.mxu0 0
          %959 = vmatprep.subr.bf16.mxu0 0
          %960 = vmatpush1.bf16.msra.mxu0 0
          %961 = vmatprep.subr.bf16.mxu0 0
          %962 = vmatpush1.bf16.msra.mxu0 0
          %963 = vmatprep.subr.bf16.mxu0 0
          %964 = vmatpush1.bf16.msra.mxu0 0
          %965 = vmatprep.subr.bf16.mxu0 0
          %966 = vmatpush1.bf16.msra.mxu0 0
          %967 = vmatprep.subr.bf16.mxu0 0
          %968 = vmatpush1.bf16.msra.mxu0 0
          %969 = vmatprep.mubr.bf16.mxu0 0
          %970 = vmatmul.mubr.bf16.gmra.mrb[0].mxu0 %v935
          %v971 = vpop.f32.mrb[0].mxu0
          %v972 = vadd.f32 0.0, %v971
          %v973 = vpop.f32.mrb[0].mxu0
          %v974 = vpop.f32.mrb[0].mxu0
          %v975 = vpop.f32.mrb[0].mxu0
          %976 = vdwg.mxu0
          %978 = vrot.lane.b32.xlu0 %v972, 120
          %v979 = vpop.permute.xlu0 %978
          %981 = vrot.lane.b32.xlu0 %v972, 112
          %v982 = vpop.permute.xlu0 %981
          %984 = vrot.lane.b32.xlu0 %v972, 104
          %v985 = vpop.permute.xlu0 %984
          %v987 = vcombine.low %v972, %v982
          %v988 = vcombine.high %v972, %v982
          %v990 = vunpack.c.l.s4 1983009808
          %v991 = vunpack.c.0.s8 %v990
          %v992 = vlaneseq
          %v993 = vshrl.u32 %v992, 7
          %v994 = vsub.s32 %v991, %v993
          %v995 = vrot.slane %v987, %v994
          %v997 = vunpack.c.l.s4 1983009808
          %v998 = vunpack.c.0.s8 %v997
          %v999 = vlaneseq
          %v1000 = vshrl.u32 %v999, 7
          %v1001 = vsub.s32 %v998, %v1000
          %v1002 = vrot.slane %v988, %v1001
          %v1003 = vcombine.low %v979, %v985
          %v1004 = vcombine.high %v979, %v985
          %v1006 = vunpack.c.l.s4 1983009808
          %v1007 = vunpack.c.0.s8 %v1006
          %v1008 = vlaneseq
          %v1009 = vshrl.u32 %v1008, 7
          %v1010 = vsub.s32 %v1007, %v1009
          %v1011 = vrot.slane %v1003, %v1010
          %v1013 = vunpack.c.l.s4 1983009808
          %v1014 = vunpack.c.0.s8 %v1013
          %v1015 = vlaneseq
          %v1016 = vshrl.u32 %v1015, 7
          %v1017 = vsub.s32 %v1014, %v1016
          %v1018 = vrot.slane %v1004, %v1017
          %v1019 = vcombine.low %v995, %v1011
          %v1020 = vcombine.high %v995, %v1011
          %v1022 = vunpack.c.l.s4 1934713408
          %v1023 = vunpack.c.0.s8 %v1022
          %v1024 = vlaneseq
          %v1025 = vshrl.u32 %v1024, 7
          %v1026 = vsub.s32 %v1023, %v1025
          %v1027 = vrot.slane %v1019, %v1026
          %v1029 = vunpack.c.l.s4 1934713408
          %v1030 = vunpack.c.0.s8 %v1029
          %v1031 = vlaneseq
          %v1032 = vshrl.u32 %v1031, 7
          %v1033 = vsub.s32 %v1030, %v1032
          %v1034 = vrot.slane %v1020, %v1033
          %v1035 = vcombine.low %v1002, %v1018
          %v1036 = vcombine.high %v1002, %v1018
          %v1038 = vunpack.c.l.s4 1934713408
          %v1039 = vunpack.c.0.s8 %v1038
          %v1040 = vlaneseq
          %v1041 = vshrl.u32 %v1040, 7
          %v1042 = vsub.s32 %v1039, %v1041
          %v1043 = vrot.slane %v1035, %v1042
          %v1045 = vunpack.c.l.s4 1934713408
          %v1046 = vunpack.c.0.s8 %v1045
          %v1047 = vlaneseq
          %v1048 = vshrl.u32 %v1047, 7
          %v1049 = vsub.s32 %v1046, %v1048
          %v1050 = vrot.slane %v1036, %v1049
          %v1051 = vcombine.high %v1027, 0.0
          %v1052 = vcombine.high %v1034, 0.0
          %v1053 = vcombine.high %v1043, 0.0
          %v1054 = vcombine.high %v1050, 0.0
          %v1055 = vcombine.low %v1027, %v1034
          %v1057 = vunpack.c.l.s4 1983009808
          %v1058 = vunpack.c.0.s8 %v1057
          %v1059 = vlaneseq
          %v1060 = vshrl.u32 %v1059, 7
          %v1061 = vsub.s32 %v1058, %v1060
          %v1062 = vrot.slane %v1055, %v1061
          %v1063 = vcombine.low %v1051, %v1052
          %v1065 = vunpack.c.l.s4 1983009808
          %v1066 = vunpack.c.0.s8 %v1065
          %v1067 = vlaneseq
          %v1068 = vshrl.u32 %v1067, 7
          %v1069 = vsub.s32 %v1066, %v1068
          %v1070 = vrot.slane %v1063, %v1069
          %v1071 = vcombine.low %v1043, %v1050
          %v1073 = vunpack.c.l.s4 1983009808
          %v1074 = vunpack.c.0.s8 %v1073
          %v1075 = vlaneseq
          %v1076 = vshrl.u32 %v1075, 7
          %v1077 = vsub.s32 %v1074, %v1076
          %v1078 = vrot.slane %v1071, %v1077
          %v1079 = vcombine.low %v1053, %v1054
          %v1081 = vunpack.c.l.s4 1983009808
          %v1082 = vunpack.c.0.s8 %v1081
          %v1083 = vlaneseq
          %v1084 = vshrl.u32 %v1083, 7
          %v1085 = vsub.s32 %v1082, %v1084
          %v1086 = vrot.slane %v1079, %v1085
          %v1087 = vcombine.low %v1062, %v1070
          %v1088 = vcombine.high %v1062, %v1070
          %v1090 = vunpack.c.l.s4 1934713408
          %v1091 = vunpack.c.0.s8 %v1090
          %v1092 = vlaneseq
          %v1093 = vshrl.u32 %v1092, 7
          %v1094 = vsub.s32 %v1091, %v1093
          %v1095 = vrot.slane %v1087, %v1094
          %v1097 = vunpack.c.l.s4 1934713408
          %v1098 = vunpack.c.0.s8 %v1097
          %v1099 = vlaneseq
          %v1100 = vshrl.u32 %v1099, 7
          %v1101 = vsub.s32 %v1098, %v1100
          %v1102 = vrot.slane %v1088, %v1101
          %v1103 = vcombine.low %v1078, %v1086
          %v1104 = vcombine.high %v1078, %v1086
          %v1106 = vunpack.c.l.s4 1934713408
          %v1107 = vunpack.c.0.s8 %v1106
          %v1108 = vlaneseq
          %v1109 = vshrl.u32 %v1108, 7
          %v1110 = vsub.s32 %v1107, %v1109
          %v1111 = vrot.slane %v1103, %v1110
          %v1113 = vunpack.c.l.s4 1934713408
          %v1114 = vunpack.c.0.s8 %v1113
          %v1115 = vlaneseq
          %v1116 = vshrl.u32 %v1115, 7
          %v1117 = vsub.s32 %v1114, %v1116
          %v1118 = vrot.slane %v1104, %v1117
          %v1119 = vcombine.low %v1095, %v1111
          %v1120 = vcombine.high %v1095, %v1111
          %v1121 = vcombine.low %v1102, %v1118
          %v1122 = vcombine.high %v1102, %v1118
          %1123 = vrot.lane.b32.xlu0 %v972, 96
          %v1124 = vpop.permute.xlu0 %1123
          %1125 = vrot.lane.b32.xlu0 %v979, 96
          %v1126 = vpop.permute.xlu0 %1125
          %1127 = vrot.lane.b32.xlu0 %v982, 96
          %v1128 = vpop.permute.xlu0 %1127
          %1129 = vrot.lane.b32.xlu0 %v985, 96
          %v1130 = vpop.permute.xlu0 %1129
          %v1135 = vcombine.low %v1124, %v1128
          %v1136 = vcombine.high %v1124, %v1128
          %v1138 = vunpack.c.l.s4 1983009808
          %v1139 = vunpack.c.0.s8 %v1138
          %v1140 = vlaneseq
          %v1141 = vshrl.u32 %v1140, 7
          %v1142 = vsub.s32 %v1139, %v1141
          %v1143 = vrot.slane %v1135, %v1142
          %v1145 = vunpack.c.l.s4 1983009808
          %v1146 = vunpack.c.0.s8 %v1145
          %v1147 = vlaneseq
          %v1148 = vshrl.u32 %v1147, 7
          %v1149 = vsub.s32 %v1146, %v1148
          %v1150 = vrot.slane %v1136, %v1149
          %v1151 = vcombine.low %v1126, %v1130
          %v1152 = vcombine.high %v1126, %v1130
          %v1154 = vunpack.c.l.s4 1983009808
          %v1155 = vunpack.c.0.s8 %v1154
          %v1156 = vlaneseq
          %v1157 = vshrl.u32 %v1156, 7
          %v1158 = vsub.s32 %v1155, %v1157
          %v1159 = vrot.slane %v1151, %v1158
          %v1161 = vunpack.c.l.s4 1983009808
          %v1162 = vunpack.c.0.s8 %v1161
          %v1163 = vlaneseq
          %v1164 = vshrl.u32 %v1163, 7
          %v1165 = vsub.s32 %v1162, %v1164
          %v1166 = vrot.slane %v1152, %v1165
          %v1167 = vcombine.low %v1143, %v1159
          %v1168 = vcombine.high %v1143, %v1159
          %v1170 = vunpack.c.l.s4 1934713408
          %v1171 = vunpack.c.0.s8 %v1170
          %v1172 = vlaneseq
          %v1173 = vshrl.u32 %v1172, 7
          %v1174 = vsub.s32 %v1171, %v1173
          %v1175 = vrot.slane %v1167, %v1174
          %v1177 = vunpack.c.l.s4 1934713408
          %v1178 = vunpack.c.0.s8 %v1177
          %v1179 = vlaneseq
          %v1180 = vshrl.u32 %v1179, 7
          %v1181 = vsub.s32 %v1178, %v1180
          %v1182 = vrot.slane %v1168, %v1181
          %v1183 = vcombine.low %v1150, %v1166
          %v1184 = vcombine.high %v1150, %v1166
          %v1186 = vunpack.c.l.s4 1934713408
          %v1187 = vunpack.c.0.s8 %v1186
          %v1188 = vlaneseq
          %v1189 = vshrl.u32 %v1188, 7
          %v1190 = vsub.s32 %v1187, %v1189
          %v1191 = vrot.slane %v1183, %v1190
          %v1193 = vunpack.c.l.s4 1934713408
          %v1194 = vunpack.c.0.s8 %v1193
          %v1195 = vlaneseq
          %v1196 = vshrl.u32 %v1195, 7
          %v1197 = vsub.s32 %v1194, %v1196
          %v1198 = vrot.slane %v1184, %v1197
          %v1199 = vcombine.high %v1175, 0.0
          %v1200 = vcombine.high %v1182, 0.0
          %v1201 = vcombine.high %v1191, 0.0
          %v1202 = vcombine.high %v1198, 0.0
          %v1203 = vcombine.low %v1175, %v1182
          %v1205 = vunpack.c.l.s4 1983009808
          %v1206 = vunpack.c.0.s8 %v1205
          %v1207 = vlaneseq
          %v1208 = vshrl.u32 %v1207, 7
          %v1209 = vsub.s32 %v1206, %v1208
          %v1210 = vrot.slane %v1203, %v1209
          %v1211 = vcombine.low %v1199, %v1200
          %v1213 = vunpack.c.l.s4 1983009808
          %v1214 = vunpack.c.0.s8 %v1213
          %v1215 = vlaneseq
          %v1216 = vshrl.u32 %v1215, 7
          %v1217 = vsub.s32 %v1214, %v1216
          %v1218 = vrot.slane %v1211, %v1217
          %v1219 = vcombine.low %v1191, %v1198
          %v1221 = vunpack.c.l.s4 1983009808
          %v1222 = vunpack.c.0.s8 %v1221
          %v1223 = vlaneseq
          %v1224 = vshrl.u32 %v1223, 7
          %v1225 = vsub.s32 %v1222, %v1224
          %v1226 = vrot.slane %v1219, %v1225
          %v1227 = vcombine.low %v1201, %v1202
          %v1229 = vunpack.c.l.s4 1983009808
          %v1230 = vunpack.c.0.s8 %v1229
          %v1231 = vlaneseq
          %v1232 = vshrl.u32 %v1231, 7
          %v1233 = vsub.s32 %v1230, %v1232
          %v1234 = vrot.slane %v1227, %v1233
          %v1235 = vcombine.low %v1210, %v1218
          %v1236 = vcombine.high %v1210, %v1218
          %v1238 = vunpack.c.l.s4 1934713408
          %v1239 = vunpack.c.0.s8 %v1238
          %v1240 = vlaneseq
          %v1241 = vshrl.u32 %v1240, 7
          %v1242 = vsub.s32 %v1239, %v1241
          %v1243 = vrot.slane %v1235, %v1242
          %v1245 = vunpack.c.l.s4 1934713408
          %v1246 = vunpack.c.0.s8 %v1245
          %v1247 = vlaneseq
          %v1248 = vshrl.u32 %v1247, 7
          %v1249 = vsub.s32 %v1246, %v1248
          %v1250 = vrot.slane %v1236, %v1249
          %v1251 = vcombine.low %v1226, %v1234
          %v1252 = vcombine.high %v1226, %v1234
          %v1254 = vunpack.c.l.s4 1934713408
          %v1255 = vunpack.c.0.s8 %v1254
          %v1256 = vlaneseq
          %v1257 = vshrl.u32 %v1256, 7
          %v1258 = vsub.s32 %v1255, %v1257
          %v1259 = vrot.slane %v1251, %v1258
          %v1261 = vunpack.c.l.s4 1934713408
          %v1262 = vunpack.c.0.s8 %v1261
          %v1263 = vlaneseq
          %v1264 = vshrl.u32 %v1263, 7
          %v1265 = vsub.s32 %v1262, %v1264
          %v1266 = vrot.slane %v1252, %v1265
          %v1267 = vcombine.low %v1243, %v1259
          %v1268 = vcombine.high %v1243, %v1259
          %v1269 = vcombine.low %v1250, %v1266
          %v1270 = vcombine.high %v1250, %v1266
          %v1271 = vpack.c.bf16 %v1267, %v1267
          %v1272 = vpack.c.bf16 %v1268, %v1268
          %v1273 = vpack.c.bf16 %v1269, %v1269
          %v1274 = vpack.c.bf16 %v1270, %v1270
          %s1275 = scalar_lea.vmem [#allocation17], %s909
          %v1276 = vld [vmem:[%s1275] sm:$0xff]
          %s1277 = scalar_lea.vmem [#allocation19], %s909
          %v1278 = vld [vmem:[%s1277] sm:$0xff]
          %v1279 = vmul.f32 %v1119, %v1276
          %v1280 = vmul.f32 %v1120, %v1276
          %v1281 = vmul.f32 %v1121, %v1276
          %v1282 = vmul.f32 %v1122, %v1276
          %1284 = vrot.lane.b32.xlu0 %v1278, 4
          %v1285 = vpop.permute.xlu0 %1284
          %v1287 = vmul.f32 %v1119, %v1285
          %v1288 = vmul.f32 %v1120, %v1285
          %v1289 = vmul.f32 %v1121, %v1285
          %v1290 = vmul.f32 %v1122, %v1285
          %1295 = vrot.lane.b32.xlu0 %v1287, 124
          %v1296 = vpop.permute.xlu0 %1295
          %1297 = vrot.lane.b32.xlu0 %v1288, 124
          %v1298 = vpop.permute.xlu0 %1297
          %1299 = vrot.lane.b32.xlu0 %v1289, 124
          %v1300 = vpop.permute.xlu0 %1299
          %1301 = vrot.lane.b32.xlu0 %v1290, 124
          %v1302 = vpop.permute.xlu0 %1301
          %v1307 = vsub.f32 %v1279, %v1296
          %v1308 = vsub.f32 %v1280, %v1298
          %v1309 = vsub.f32 %v1281, %v1300
          %v1310 = vsub.f32 %v1282, %v1302
          %1312 = vrot.lane.b32.xlu0 %v1276, 4
          %v1313 = vpop.permute.xlu0 %1312
          %v1315 = vmul.f32 %v1119, %v1313
          %v1316 = vmul.f32 %v1120, %v1313
          %v1317 = vmul.f32 %v1121, %v1313
          %v1318 = vmul.f32 %v1122, %v1313
          %v1319 = vmul.f32 %v1119, %v1278
          %v1320 = vmul.f32 %v1120, %v1278
          %v1321 = vmul.f32 %v1121, %v1278
          %v1322 = vmul.f32 %v1122, %v1278
          %1327 = vrot.lane.b32.xlu0 %v1319, 4
          %v1328 = vpop.permute.xlu0 %1327
          %1329 = vrot.lane.b32.xlu0 %v1320, 4
          %v1330 = vpop.permute.xlu0 %1329
          %1331 = vrot.lane.b32.xlu0 %v1321, 4
          %v1332 = vpop.permute.xlu0 %1331
          %1333 = vrot.lane.b32.xlu0 %v1322, 4
          %v1334 = vpop.permute.xlu0 %1333
          %v1339 = vadd.f32 %v1315, %v1328
          %v1340 = vadd.f32 %v1316, %v1330
          %v1341 = vadd.f32 %v1317, %v1332
          %v1342 = vadd.f32 %v1318, %v1334
          %v1343 = vsel %vm873, %v1307, %v1339
          %v1344 = vsel %vm873, %v1308, %v1340
          %v1345 = vsel %vm873, %v1309, %v1341
          %v1346 = vsel %vm873, %v1310, %v1342
          %v1347 = vpack.c.bf16 %v1343, %v1343
          %v1348 = vpack.c.bf16 %v1344, %v1344
          %v1349 = vpack.c.bf16 %v1345, %v1345
          %v1350 = vpack.c.bf16 %v1346, %v1346
          %vm1351 = vcmask 64512
          %v1353 = vsel %vm1351, %v878, 0
          %v1356 = vsel %vm1351, %v1347, 0
          %1358 = vmatprep.subr.bf16.mxu0 0
          %1359 = vmatpush1.bf16.xpose.msra.mxu0 %v1356
          %1360 = vmatprep.subr.bf16.mxu0 0
          %1361 = vmatpush1.bf16.xpose.msra.mxu0 0
          %1362 = vmatprep.subr.bf16.mxu0 0
          %1363 = vmatpush1.bf16.xpose.msra.mxu0 0
          %1364 = vmatprep.subr.bf16.mxu0 0
          %1365 = vmatpush1.bf16.xpose.msra.mxu0 0
          %1366 = vmatprep.subr.bf16.mxu0 0
          %1367 = vmatpush1.bf16.xpose.msra.mxu0 0
          %1368 = vmatprep.subr.bf16.mxu0 0
          %1369 = vmatpush1.bf16.xpose.msra.mxu0 0
          %1370 = vmatprep.subr.bf16.mxu0 0
          %1371 = vmatpush1.bf16.xpose.msra.mxu0 0
          %1372 = vmatprep.subr.bf16.mxu0 0
          %1373 = vmatpush1.bf16.xpose.msra.mxu0 0
          %1374 = vmatprep.subr.bf16.mxu0 0
          %1375 = vmatpush1.bf16.xpose.msra.mxu0 0
          %1376 = vmatprep.subr.bf16.mxu0 0
          %1377 = vmatpush1.bf16.xpose.msra.mxu0 0
          %1378 = vmatprep.subr.bf16.mxu0 0
          %1379 = vmatpush1.bf16.xpose.msra.mxu0 0
          %1380 = vmatprep.subr.bf16.mxu0 0
          %1381 = vmatpush1.bf16.xpose.msra.mxu0 0
          %1382 = vmatprep.subr.bf16.mxu0 0
          %1383 = vmatpush1.bf16.xpose.msra.mxu0 0
          %1384 = vmatprep.subr.bf16.mxu0 0
          %1385 = vmatpush1.bf16.xpose.msra.mxu0 0
          %1386 = vmatprep.subr.bf16.mxu0 0
          %1387 = vmatpush1.bf16.xpose.msra.mxu0 0
          %1388 = vmatprep.subr.bf16.mxu0 0
          %1389 = vmatpush1.bf16.xpose.msra.mxu0 0
          %1390 = vmatprep.mubr.bf16.mxu0 0
          %1391 = vmatmul.mubr.bf16.gmra.mrb[0].mxu0 %v1353
          %v1392 = vpop.f32.mrb[0].mxu0
          %v1393 = vadd.f32 0.0, %v1392
          %v1394 = vpop.f32.mrb[0].mxu0
          %v1395 = vpop.f32.mrb[0].mxu0
          %v1396 = vpop.f32.mrb[0].mxu0
          %1397 = vdwg.mxu0
          %v1399 = vsel %vm1351, %v879, 0
          %v1402 = vsel %vm1351, %v1348, 0
          %1404 = vmatprep.subr.bf16.mxu0 0
          %1405 = vmatpush1.bf16.xpose.msra.mxu0 %v1402
          %1406 = vmatprep.subr.bf16.mxu0 0
          %1407 = vmatpush1.bf16.xpose.msra.mxu0 0
          %1408 = vmatprep.subr.bf16.mxu0 0
          %1409 = vmatpush1.bf16.xpose.msra.mxu0 0
          %1410 = vmatprep.subr.bf16.mxu0 0
          %1411 = vmatpush1.bf16.xpose.msra.mxu0 0
          %1412 = vmatprep.subr.bf16.mxu0 0
          %1413 = vmatpush1.bf16.xpose.msra.mxu0 0
          %1414 = vmatprep.subr.bf16.mxu0 0
          %1415 = vmatpush1.bf16.xpose.msra.mxu0 0
          %1416 = vmatprep.subr.bf16.mxu0 0
          %1417 = vmatpush1.bf16.xpose.msra.mxu0 0
          %1418 = vmatprep.subr.bf16.mxu0 0
          %1419 = vmatpush1.bf16.xpose.msra.mxu0 0
          %1420 = vmatprep.subr.bf16.mxu0 0
          %1421 = vmatpush1.bf16.xpose.msra.mxu0 0
          %1422 = vmatprep.subr.bf16.mxu0 0
          %1423 = vmatpush1.bf16.xpose.msra.mxu0 0
          %1424 = vmatprep.subr.bf16.mxu0 0
          %1425 = vmatpush1.bf16.xpose.msra.mxu0 0
          %1426 = vmatprep.subr.bf16.mxu0 0
          %1427 = vmatpush1.bf16.xpose.msra.mxu0 0
          %1428 = vmatprep.subr.bf16.mxu0 0
          %1429 = vmatpush1.bf16.xpose.msra.mxu0 0
          %1430 = vmatprep.subr.bf16.mxu0 0
          %1431 = vmatpush1.bf16.xpose.msra.mxu0 0
          %1432 = vmatprep.subr.bf16.mxu0 0
          %1433 = vmatpush1.bf16.xpose.msra.mxu0 0
          %1434 = vmatprep.subr.bf16.mxu0 0
          %1435 = vmatpush1.bf16.xpose.msra.mxu0 0
          %1436 = vmatprep.mubr.bf16.mxu0 0
          %1437 = vmatmul.mubr.bf16.gmra.mrb[0].mxu0 %v1399
          %v1438 = vpop.f32.mrb[0].mxu0
          %v1439 = vadd.f32 0.0, %v1438
          %v1440 = vpop.f32.mrb[0].mxu0
          %v1441 = vpop.f32.mrb[0].mxu0
          %v1442 = vpop.f32.mrb[0].mxu0
          %1443 = vdwg.mxu0
          %v1445 = vsel %vm1351, %v880, 0
          %v1448 = vsel %vm1351, %v1349, 0
          %1450 = vmatprep.subr.bf16.mxu0 0
          %1451 = vmatpush1.bf16.xpose.msra.mxu0 %v1448
          %1452 = vmatprep.subr.bf16.mxu0 0
          %1453 = vmatpush1.bf16.xpose.msra.mxu0 0
          %1454 = vmatprep.subr.bf16.mxu0 0
          %1455 = vmatpush1.bf16.xpose.msra.mxu0 0
          %1456 = vmatprep.subr.bf16.mxu0 0
          %1457 = vmatpush1.bf16.xpose.msra.mxu0 0
          %1458 = vmatprep.subr.bf16.mxu0 0
          %1459 = vmatpush1.bf16.xpose.msra.mxu0 0
          %1460 = vmatprep.subr.bf16.mxu0 0
          %1461 = vmatpush1.bf16.xpose.msra.mxu0 0
          %1462 = vmatprep.subr.bf16.mxu0 0
          %1463 = vmatpush1.bf16.xpose.msra.mxu0 0
          %1464 = vmatprep.subr.bf16.mxu0 0
          %1465 = vmatpush1.bf16.xpose.msra.mxu0 0
          %1466 = vmatprep.subr.bf16.mxu0 0
          %1467 = vmatpush1.bf16.xpose.msra.mxu0 0
          %1468 = vmatprep.subr.bf16.mxu0 0
          %1469 = vmatpush1.bf16.xpose.msra.mxu0 0
          %1470 = vmatprep.subr.bf16.mxu0 0
          %1471 = vmatpush1.bf16.xpose.msra.mxu0 0
          %1472 = vmatprep.subr.bf16.mxu0 0
          %1473 = vmatpush1.bf16.xpose.msra.mxu0 0
          %1474 = vmatprep.subr.bf16.mxu0 0
          %1475 = vmatpush1.bf16.xpose.msra.mxu0 0
          %1476 = vmatprep.subr.bf16.mxu0 0
          %1477 = vmatpush1.bf16.xpose.msra.mxu0 0
          %1478 = vmatprep.subr.bf16.mxu0 0
          %1479 = vmatpush1.bf16.xpose.msra.mxu0 0
          %1480 = vmatprep.subr.bf16.mxu0 0
          %1481 = vmatpush1.bf16.xpose.msra.mxu0 0
          %1482 = vmatprep.mubr.bf16.mxu0 0
          %1483 = vmatmul.mubr.bf16.gmra.mrb[0].mxu0 %v1445
          %v1484 = vpop.f32.mrb[0].mxu0
          %v1485 = vadd.f32 0.0, %v1484
          %v1486 = vpop.f32.mrb[0].mxu0
          %v1487 = vpop.f32.mrb[0].mxu0
          %v1488 = vpop.f32.mrb[0].mxu0
          %1489 = vdwg.mxu0
          %v1491 = vsel %vm1351, %v881, 0
          %v1494 = vsel %vm1351, %v1350, 0
          %1496 = vmatprep.subr.bf16.mxu0 0
          %1497 = vmatpush1.bf16.xpose.msra.mxu0 %v1494
          %1498 = vmatprep.subr.bf16.mxu0 0
          %1499 = vmatpush1.bf16.xpose.msra.mxu0 0
          %1500 = vmatprep.subr.bf16.mxu0 0
          %1501 = vmatpush1.bf16.xpose.msra.mxu0 0
          %1502 = vmatprep.subr.bf16.mxu0 0
          %1503 = vmatpush1.bf16.xpose.msra.mxu0 0
          %1504 = vmatprep.subr.bf16.mxu0 0
          %1505 = vmatpush1.bf16.xpose.msra.mxu0 0
          %1506 = vmatprep.subr.bf16.mxu0 0
          %1507 = vmatpush1.bf16.xpose.msra.mxu0 0
          %1508 = vmatprep.subr.bf16.mxu0 0
          %1509 = vmatpush1.bf16.xpose.msra.mxu0 0
          %1510 = vmatprep.subr.bf16.mxu0 0
          %1511 = vmatpush1.bf16.xpose.msra.mxu0 0
          %1512 = vmatprep.subr.bf16.mxu0 0
          %1513 = vmatpush1.bf16.xpose.msra.mxu0 0
          %1514 = vmatprep.subr.bf16.mxu0 0
          %1515 = vmatpush1.bf16.xpose.msra.mxu0 0
          %1516 = vmatprep.subr.bf16.mxu0 0
          %1517 = vmatpush1.bf16.xpose.msra.mxu0 0
          %1518 = vmatprep.subr.bf16.mxu0 0
          %1519 = vmatpush1.bf16.xpose.msra.mxu0 0
          %1520 = vmatprep.subr.bf16.mxu0 0
          %1521 = vmatpush1.bf16.xpose.msra.mxu0 0
          %1522 = vmatprep.subr.bf16.mxu0 0
          %1523 = vmatpush1.bf16.xpose.msra.mxu0 0
          %1524 = vmatprep.subr.bf16.mxu0 0
          %1525 = vmatpush1.bf16.xpose.msra.mxu0 0
          %1526 = vmatprep.subr.bf16.mxu0 0
          %1527 = vmatpush1.bf16.xpose.msra.mxu0 0
          %1528 = vmatprep.mubr.bf16.mxu0 0
          %1529 = vmatmul.mubr.bf16.gmra.mrb[0].mxu0 %v1491
          %v1530 = vpop.f32.mrb[0].mxu0
          %v1531 = vadd.f32 0.0, %v1530
          %v1532 = vpop.f32.mrb[0].mxu0
          %v1533 = vpop.f32.mrb[0].mxu0
          %v1534 = vpop.f32.mrb[0].mxu0
          %1535 = vdwg.mxu0
          %v1536 = vlaneseq
          %v1537 = vand.u32 %v1536, 127
          %v1538 = vstv %s909
          %v1539 = vadd.s32 %v1538, %v1537
          %vm1540 = vcmp.ge.s32.totalorder %v885, %v1539
          %v1541 = vsel %vm1540, 1, 0
          %vm1542 = vcmp.eq.s32.totalorder %v1541, 1
          %v1543 = vsel %vm1542, %v1393, -1e+30
          %v1544 = vsel %vm1542, %v1439, -1e+30
          %v1545 = vsel %vm1542, %v1485, -1e+30
          %v1546 = vsel %vm1542, %v1531, -1e+30
          %v1547 = vsel %vm1351, %v1543, -inf
          %1548 = vmax.xlane.f32.xlu0 %v1547
          %v1549 = vpop.xlane.xlu0 %1548
          %v1550 = vsel %vm1351, %v1544, -inf
          %1551 = vmax.xlane.f32.xlu0 %v1550
          %v1552 = vpop.xlane.xlu0 %1551
          %v1553 = vsel %vm1351, %v1545, -inf
          %1554 = vmax.xlane.f32.xlu0 %v1553
          %v1555 = vpop.xlane.xlu0 %1554
          %v1556 = vsel %vm1351, %v1546, -inf
          %1557 = vmax.xlane.f32.xlu0 %v1556
          %v1558 = vpop.xlane.xlu0 %1557
          %v1559 = vmax.f32 %v897, %v1549
          %v1560 = vmax.f32 %v898, %v1552
          %v1561 = vmax.f32 %v899, %v1555
          %v1562 = vmax.f32 %v900, %v1558
          %v1563 = vsub.f32 %v897, %v1559
          %v1564 = vsub.f32 %v898, %v1560
          %v1565 = vsub.f32 %v899, %v1561
          %v1566 = vsub.f32 %v900, %v1562
          %v1567 = vmul.f32 %v1563, 1.442695
          %v1568 = vpow.pop %v1567
          %v1569 = vmul.f32 %v1564, 1.442695
          %v1570 = vpow.pop %v1569
          %v1571 = vmul.f32 %v1565, 1.442695
          %v1572 = vpow.pop %v1571
          %v1573 = vmul.f32 %v1566, 1.442695
          %v1574 = vpow.pop %v1573
          %v1575 = vsub.f32 %v1543, %v1559
          %v1576 = vsub.f32 %v1544, %v1560
          %v1577 = vsub.f32 %v1545, %v1561
          %v1578 = vsub.f32 %v1546, %v1562
          %v1579 = vmul.f32 %v1575, 1.442695
          %v1580 = vpow.pop %v1579
          %v1581 = vmul.f32 %v1576, 1.442695
          %v1582 = vpow.pop %v1581
          %v1583 = vmul.f32 %v1577, 1.442695
          %v1584 = vpow.pop %v1583
          %v1585 = vmul.f32 %v1578, 1.442695
          %v1586 = vpow.pop %v1585
          %v1587 = vmul.f32 %v1568, %v901
          %v1588 = vmul.f32 %v1570, %v902
          %v1589 = vmul.f32 %v1572, %v903
          %v1590 = vmul.f32 %v1574, %v904
          %v1591 = vsel %vm1351, %v1580, 0.0
          %1592 = vadd.xlane.f32.xlu0 %v1591
          %v1593 = vpop.xlane.xlu0 %1592
          %v1594 = vsel %vm1351, %v1582, 0.0
          %1595 = vadd.xlane.f32.xlu0 %v1594
          %v1596 = vpop.xlane.xlu0 %1595
          %v1597 = vsel %vm1351, %v1584, 0.0
          %1598 = vadd.xlane.f32.xlu0 %v1597
          %v1599 = vpop.xlane.xlu0 %1598
          %v1600 = vsel %vm1351, %v1586, 0.0
          %1601 = vadd.xlane.f32.xlu0 %v1600
          %v1602 = vpop.xlane.xlu0 %1601
          %v1603 = vadd.f32 %v1587, %v1593
          %v1604 = vadd.f32 %v1588, %v1596
          %v1605 = vadd.f32 %v1589, %v1599
          %v1606 = vadd.f32 %v1590, %v1602
          %v1607 = vmul.f32 %v1568, %v905
          %v1608 = vmul.f32 %v1570, %v906
          %v1609 = vmul.f32 %v1572, %v907
          %v1610 = vmul.f32 %v1574, %v908
          %v1611 = vpack.c.bf16 %v1580, %v1580
          %v1612 = vpack.c.bf16 %v1582, %v1582
          %v1613 = vpack.c.bf16 %v1584, %v1584
          %v1614 = vpack.c.bf16 %v1586, %v1586
          %v1616 = vsel %vm1351, %v1611, 0
          %vm1618 = vcmask 1043456
          %v1620 = vsel %vm1618, %v1271, 0
          %1622 = vmatprep.subr.bf16.mxu0 0
          %1623 = vmatpush1.bf16.msra.mxu0 %v1620
          %1624 = vmatprep.subr.bf16.mxu0 0
          %1625 = vmatpush1.bf16.msra.mxu0 0
          %1626 = vmatprep.subr.bf16.mxu0 0
          %1627 = vmatpush1.bf16.msra.mxu0 0
          %1628 = vmatprep.subr.bf16.mxu0 0
          %1629 = vmatpush1.bf16.msra.mxu0 0
          %1630 = vmatprep.subr.bf16.mxu0 0
          %1631 = vmatpush1.bf16.msra.mxu0 0
          %1632 = vmatprep.subr.bf16.mxu0 0
          %1633 = vmatpush1.bf16.msra.mxu0 0
          %1634 = vmatprep.subr.bf16.mxu0 0
          %1635 = vmatpush1.bf16.msra.mxu0 0
          %1636 = vmatprep.subr.bf16.mxu0 0
          %1637 = vmatpush1.bf16.msra.mxu0 0
          %1638 = vmatprep.subr.bf16.mxu0 0
          %1639 = vmatpush1.bf16.msra.mxu0 0
          %1640 = vmatprep.subr.bf16.mxu0 0
          %1641 = vmatpush1.bf16.msra.mxu0 0
          %1642 = vmatprep.subr.bf16.mxu0 0
          %1643 = vmatpush1.bf16.msra.mxu0 0
          %1644 = vmatprep.subr.bf16.mxu0 0
          %1645 = vmatpush1.bf16.msra.mxu0 0
          %1646 = vmatprep.subr.bf16.mxu0 0
          %1647 = vmatpush1.bf16.msra.mxu0 0
          %1648 = vmatprep.subr.bf16.mxu0 0
          %1649 = vmatpush1.bf16.msra.mxu0 0
          %1650 = vmatprep.subr.bf16.mxu0 0
          %1651 = vmatpush1.bf16.msra.mxu0 0
          %1652 = vmatprep.subr.bf16.mxu0 0
          %1653 = vmatpush1.bf16.msra.mxu0 0
          %1654 = vmatprep.mubr.bf16.mxu0 0
          %1655 = vmatmul.mubr.bf16.gmra.mrb[0].mxu0 %v1616
          %v1656 = vpop.f32.mrb[0].mxu0
          %v1657 = vadd.f32 0.0, %v1656
          %v1658 = vpop.f32.mrb[0].mxu0
          %v1659 = vpop.f32.mrb[0].mxu0
          %v1660 = vpop.f32.mrb[0].mxu0
          %1661 = vdwg.mxu0
          %v1663 = vsel %vm1351, %v1612, 0
          %v1666 = vsel %vm1618, %v1272, 0
          %1668 = vmatprep.subr.bf16.mxu0 0
          %1669 = vmatpush1.bf16.msra.mxu0 %v1666
          %1670 = vmatprep.subr.bf16.mxu0 0
          %1671 = vmatpush1.bf16.msra.mxu0 0
          %1672 = vmatprep.subr.bf16.mxu0 0
          %1673 = vmatpush1.bf16.msra.mxu0 0
          %1674 = vmatprep.subr.bf16.mxu0 0
          %1675 = vmatpush1.bf16.msra.mxu0 0
          %1676 = vmatprep.subr.bf16.mxu0 0
          %1677 = vmatpush1.bf16.msra.mxu0 0
          %1678 = vmatprep.subr.bf16.mxu0 0
          %1679 = vmatpush1.bf16.msra.mxu0 0
          %1680 = vmatprep.subr.bf16.mxu0 0
          %1681 = vmatpush1.bf16.msra.mxu0 0
          %1682 = vmatprep.subr.bf16.mxu0 0
          %1683 = vmatpush1.bf16.msra.mxu0 0
          %1684 = vmatprep.subr.bf16.mxu0 0
          %1685 = vmatpush1.bf16.msra.mxu0 0
          %1686 = vmatprep.subr.bf16.mxu0 0
          %1687 = vmatpush1.bf16.msra.mxu0 0
          %1688 = vmatprep.subr.bf16.mxu0 0
          %1689 = vmatpush1.bf16.msra.mxu0 0
          %1690 = vmatprep.subr.bf16.mxu0 0
          %1691 = vmatpush1.bf16.msra.mxu0 0
          %1692 = vmatprep.subr.bf16.mxu0 0
          %1693 = vmatpush1.bf16.msra.mxu0 0
          %1694 = vmatprep.subr.bf16.mxu0 0
          %1695 = vmatpush1.bf16.msra.mxu0 0
          %1696 = vmatprep.subr.bf16.mxu0 0
          %1697 = vmatpush1.bf16.msra.mxu0 0
          %1698 = vmatprep.subr.bf16.mxu0 0
          %1699 = vmatpush1.bf16.msra.mxu0 0
          %1700 = vmatprep.mubr.bf16.mxu0 0
          %1701 = vmatmul.mubr.bf16.gmra.mrb[0].mxu0 %v1663
          %v1702 = vpop.f32.mrb[0].mxu0
          %v1703 = vadd.f32 0.0, %v1702
          %v1704 = vpop.f32.mrb[0].mxu0
          %v1705 = vpop.f32.mrb[0].mxu0
          %v1706 = vpop.f32.mrb[0].mxu0
          %1707 = vdwg.mxu0
          %v1709 = vsel %vm1351, %v1613, 0
          %v1712 = vsel %vm1618, %v1273, 0
          %1714 = vmatprep.subr.bf16.mxu0 0
          %1715 = vmatpush1.bf16.msra.mxu0 %v1712
          %1716 = vmatprep.subr.bf16.mxu0 0
          %1717 = vmatpush1.bf16.msra.mxu0 0
          %1718 = vmatprep.subr.bf16.mxu0 0
          %1719 = vmatpush1.bf16.msra.mxu0 0
          %1720 = vmatprep.subr.bf16.mxu0 0
          %1721 = vmatpush1.bf16.msra.mxu0 0
          %1722 = vmatprep.subr.bf16.mxu0 0
          %1723 = vmatpush1.bf16.msra.mxu0 0
          %1724 = vmatprep.subr.bf16.mxu0 0
          %1725 = vmatpush1.bf16.msra.mxu0 0
          %1726 = vmatprep.subr.bf16.mxu0 0
          %1727 = vmatpush1.bf16.msra.mxu0 0
          %1728 = vmatprep.subr.bf16.mxu0 0
          %1729 = vmatpush1.bf16.msra.mxu0 0
          %1730 = vmatprep.subr.bf16.mxu0 0
          %1731 = vmatpush1.bf16.msra.mxu0 0
          %1732 = vmatprep.subr.bf16.mxu0 0
          %1733 = vmatpush1.bf16.msra.mxu0 0
          %1734 = vmatprep.subr.bf16.mxu0 0
          %1735 = vmatpush1.bf16.msra.mxu0 0
          %1736 = vmatprep.subr.bf16.mxu0 0
          %1737 = vmatpush1.bf16.msra.mxu0 0
          %1738 = vmatprep.subr.bf16.mxu0 0
          %1739 = vmatpush1.bf16.msra.mxu0 0
          %1740 = vmatprep.subr.bf16.mxu0 0
          %1741 = vmatpush1.bf16.msra.mxu0 0
          %1742 = vmatprep.subr.bf16.mxu0 0
          %1743 = vmatpush1.bf16.msra.mxu0 0
          %1744 = vmatprep.subr.bf16.mxu0 0
          %1745 = vmatpush1.bf16.msra.mxu0 0
          %1746 = vmatprep.mubr.bf16.mxu0 0
          %1747 = vmatmul.mubr.bf16.gmra.mrb[0].mxu0 %v1709
          %v1748 = vpop.f32.mrb[0].mxu0
          %v1749 = vadd.f32 0.0, %v1748
          %v1750 = vpop.f32.mrb[0].mxu0
          %v1751 = vpop.f32.mrb[0].mxu0
          %v1752 = vpop.f32.mrb[0].mxu0
          %1753 = vdwg.mxu0
          %v1755 = vsel %vm1351, %v1614, 0
          %v1758 = vsel %vm1618, %v1274, 0
          %1760 = vmatprep.subr.bf16.mxu0 0
          %1761 = vmatpush1.bf16.msra.mxu0 %v1758
          %1762 = vmatprep.subr.bf16.mxu0 0
          %1763 = vmatpush1.bf16.msra.mxu0 0
          %1764 = vmatprep.subr.bf16.mxu0 0
          %1765 = vmatpush1.bf16.msra.mxu0 0
          %1766 = vmatprep.subr.bf16.mxu0 0
          %1767 = vmatpush1.bf16.msra.mxu0 0
          %1768 = vmatprep.subr.bf16.mxu0 0
          %1769 = vmatpush1.bf16.msra.mxu0 0
          %1770 = vmatprep.subr.bf16.mxu0 0
          %1771 = vmatpush1.bf16.msra.mxu0 0
          %1772 = vmatprep.subr.bf16.mxu0 0
          %1773 = vmatpush1.bf16.msra.mxu0 0
          %1774 = vmatprep.subr.bf16.mxu0 0
          %1775 = vmatpush1.bf16.msra.mxu0 0
          %1776 = vmatprep.subr.bf16.mxu0 0
          %1777 = vmatpush1.bf16.msra.mxu0 0
          %1778 = vmatprep.subr.bf16.mxu0 0
          %1779 = vmatpush1.bf16.msra.mxu0 0
          %1780 = vmatprep.subr.bf16.mxu0 0
          %1781 = vmatpush1.bf16.msra.mxu0 0
          %1782 = vmatprep.subr.bf16.mxu0 0
          %1783 = vmatpush1.bf16.msra.mxu0 0
          %1784 = vmatprep.subr.bf16.mxu0 0
          %1785 = vmatpush1.bf16.msra.mxu0 0
          %1786 = vmatprep.subr.bf16.mxu0 0
          %1787 = vmatpush1.bf16.msra.mxu0 0
          %1788 = vmatprep.subr.bf16.mxu0 0
          %1789 = vmatpush1.bf16.msra.mxu0 0
          %1790 = vmatprep.subr.bf16.mxu0 0
          %1791 = vmatpush1.bf16.msra.mxu0 0
          %1792 = vmatprep.mubr.bf16.mxu0 0
          %1793 = vmatmul.mubr.bf16.gmra.mrb[0].mxu0 %v1755
          %v1794 = vpop.f32.mrb[0].mxu0
          %v1795 = vadd.f32 0.0, %v1794
          %v1796 = vpop.f32.mrb[0].mxu0
          %v1797 = vpop.f32.mrb[0].mxu0
          %v1798 = vpop.f32.mrb[0].mxu0
          %1799 = vdwg.mxu0
          %v1800 = vadd.f32 %v1607, %v1657
          %v1801 = vadd.f32 %v1608, %v1703
          %v1802 = vadd.f32 %v1609, %v1749
          %v1803 = vadd.f32 %v1610, %v1795
        $region113: #{tpu_custom_call.1} parent=63 // loop_footer
          %s894 = sadd.s32 %s892, 1
        $region114: #{tpu_custom_call.1} parent=63 // loop_footer_branch
          %891 = sbr.rel target = $region110
        $region115: #{tpu_custom_call.1} parent=63 // loop_exit
          _
        %v1804 = vrcp.pop %v901
        %v1805 = vrcp.pop %v902
        %v1806 = vrcp.pop %v903
        %v1807 = vrcp.pop %v904
        %v1808 = vmul.f32 %v905, %v1804
        %v1809 = vmul.f32 %v906, %v1805
        %v1810 = vmul.f32 %v907, %v1806
        %v1811 = vmul.f32 %v908, %v1807
        %v1812 = vcombine.low %v1808, %v1810
        %v1813 = vcombine.high %v1808, %v1810
        %v1815 = vunpack.c.l.s4 1983009808
        %v1816 = vunpack.c.0.s8 %v1815
        %v1817 = vlaneseq
        %v1818 = vshrl.u32 %v1817, 7
        %v1819 = vsub.s32 %v1816, %v1818
        %v1820 = vrot.slane %v1812, %v1819
        %v1822 = vunpack.c.l.s4 1983009808
        %v1823 = vunpack.c.0.s8 %v1822
        %v1824 = vlaneseq
        %v1825 = vshrl.u32 %v1824, 7
        %v1826 = vsub.s32 %v1823, %v1825
        %v1827 = vrot.slane %v1813, %v1826
        %v1828 = vcombine.low %v1809, %v1811
        %v1829 = vcombine.high %v1809, %v1811
        %v1831 = vunpack.c.l.s4 1983009808
        %v1832 = vunpack.c.0.s8 %v1831
        %v1833 = vlaneseq
        %v1834 = vshrl.u32 %v1833, 7
        %v1835 = vsub.s32 %v1832, %v1834
        %v1836 = vrot.slane %v1828, %v1835
        %v1838 = vunpack.c.l.s4 1983009808
        %v1839 = vunpack.c.0.s8 %v1838
        %v1840 = vlaneseq
        %v1841 = vshrl.u32 %v1840, 7
        %v1842 = vsub.s32 %v1839, %v1841
        %v1843 = vrot.slane %v1829, %v1842
        %v1844 = vcombine.low %v1820, %v1836
        %v1845 = vcombine.high %v1820, %v1836
        %v1847 = vunpack.c.l.s4 1934713408
        %v1848 = vunpack.c.0.s8 %v1847
        %v1849 = vlaneseq
        %v1850 = vshrl.u32 %v1849, 7
        %v1851 = vsub.s32 %v1848, %v1850
        %v1852 = vrot.slane %v1844, %v1851
        %v1854 = vunpack.c.l.s4 1934713408
        %v1855 = vunpack.c.0.s8 %v1854
        %v1856 = vlaneseq
        %v1857 = vshrl.u32 %v1856, 7
        %v1858 = vsub.s32 %v1855, %v1857
        %v1859 = vrot.slane %v1845, %v1858
        %v1860 = vcombine.low %v1827, %v1843
        %v1861 = vcombine.high %v1827, %v1843
        %v1863 = vunpack.c.l.s4 1934713408
        %v1864 = vunpack.c.0.s8 %v1863
        %v1865 = vlaneseq
        %v1866 = vshrl.u32 %v1865, 7
        %v1867 = vsub.s32 %v1864, %v1866
        %v1868 = vrot.slane %v1860, %v1867
        %v1870 = vunpack.c.l.s4 1934713408
        %v1871 = vunpack.c.0.s8 %v1870
        %v1872 = vlaneseq
        %v1873 = vshrl.u32 %v1872, 7
        %v1874 = vsub.s32 %v1871, %v1873
        %v1875 = vrot.slane %v1861, %v1874
        %v1876 = vcombine.high %v1852, 0.0
        %v1877 = vcombine.high %v1859, 0.0
        %v1878 = vcombine.high %v1868, 0.0
        %v1879 = vcombine.high %v1875, 0.0
        %v1880 = vcombine.low %v1852, %v1859
        %v1882 = vunpack.c.l.s4 1983009808
        %v1883 = vunpack.c.0.s8 %v1882
        %v1884 = vlaneseq
        %v1885 = vshrl.u32 %v1884, 7
        %v1886 = vsub.s32 %v1883, %v1885
        %v1887 = vrot.slane %v1880, %v1886
        %v1888 = vcombine.low %v1876, %v1877
        %v1890 = vunpack.c.l.s4 1983009808
        %v1891 = vunpack.c.0.s8 %v1890
        %v1892 = vlaneseq
        %v1893 = vshrl.u32 %v1892, 7
        %v1894 = vsub.s32 %v1891, %v1893
        %v1895 = vrot.slane %v1888, %v1894
        %v1896 = vcombine.low %v1868, %v1875
        %v1898 = vunpack.c.l.s4 1983009808
        %v1899 = vunpack.c.0.s8 %v1898
        %v1900 = vlaneseq
        %v1901 = vshrl.u32 %v1900, 7
        %v1902 = vsub.s32 %v1899, %v1901
        %v1903 = vrot.slane %v1896, %v1902
        %v1904 = vcombine.low %v1878, %v1879
        %v1906 = vunpack.c.l.s4 1983009808
        %v1907 = vunpack.c.0.s8 %v1906
        %v1908 = vlaneseq
        %v1909 = vshrl.u32 %v1908, 7
        %v1910 = vsub.s32 %v1907, %v1909
        %v1911 = vrot.slane %v1904, %v1910
        %v1912 = vcombine.low %v1887, %v1895
        %v1913 = vcombine.high %v1887, %v1895
        %v1915 = vunpack.c.l.s4 1934713408
        %v1916 = vunpack.c.0.s8 %v1915
        %v1917 = vlaneseq
        %v1918 = vshrl.u32 %v1917, 7
        %v1919 = vsub.s32 %v1916, %v1918
        %v1920 = vrot.slane %v1912, %v1919
        %v1922 = vunpack.c.l.s4 1934713408
        %v1923 = vunpack.c.0.s8 %v1922
        %v1924 = vlaneseq
        %v1925 = vshrl.u32 %v1924, 7
        %v1926 = vsub.s32 %v1923, %v1925
        %v1927 = vrot.slane %v1913, %v1926
        %v1928 = vcombine.low %v1903, %v1911
        %v1929 = vcombine.high %v1903, %v1911
        %v1931 = vunpack.c.l.s4 1934713408
        %v1932 = vunpack.c.0.s8 %v1931
        %v1933 = vlaneseq
        %v1934 = vshrl.u32 %v1933, 7
        %v1935 = vsub.s32 %v1932, %v1934
        %v1936 = vrot.slane %v1928, %v1935
        %v1938 = vunpack.c.l.s4 1934713408
        %v1939 = vunpack.c.0.s8 %v1938
        %v1940 = vlaneseq
        %v1941 = vshrl.u32 %v1940, 7
        %v1942 = vsub.s32 %v1939, %v1941
        %v1943 = vrot.slane %v1929, %v1942
        %v1944 = vcombine.low %v1920, %v1936
        %v1945 = vcombine.high %v1920, %v1936
        %v1946 = vcombine.low %v1927, %v1943
        %v1947 = vcombine.high %v1927, %v1943
        %1949 = vrot.lane.b32.xlu0 %v1945, 8
        %v1950 = vpop.permute.xlu0 %1949
        %1953 = vrot.lane.b32.xlu0 %v1946, 16
        %v1954 = vpop.permute.xlu0 %1953
        %1957 = vrot.lane.b32.xlu0 %v1947, 24
        %v1958 = vpop.permute.xlu0 %1957
        %vm1960 = vcmask 64512
        %v1961 = vsel %vm1960, %v1944, %v1950
        %vm1962 = vcmask 130048
        %v1963 = vsel %vm1962, %v1961, %v1954
        %vm1964 = vcmask 195584
        %v1965 = vsel %vm1964, %v1963, %v1958
        %v1966 = vpack.c.bf16 %v1965, %v1965
        %v1967 = vld [vmem:[#allocation10] sm:$0xf]
        %v1968 = vld [vmem:[#allocation10 + $0x4] sm:$0xf]
        %v1969 = vld [vmem:[#allocation10 + $0x8] sm:$0xf]
        %v1970 = vld [vmem:[#allocation10 + $0xc] sm:$0xf]
        %v1975 = vunpack.c.l.b16 %v1967
        %v1976 = vunpack.c.l.b16 %v1968
        %v1977 = vunpack.c.l.b16 %v1969
        %v1978 = vunpack.c.l.b16 %v1970
        %v1979 = vpack.c.b16 %v1976, %v1975
        %v1980 = vpack.c.b16 %v1978, %v1977
        %v1984 = vsel %vm583, %v1966, 0
        %1986 = vmatprep.subr.bf16.mxu0 0
        %1987 = vmatpush1.bf16.msra.mxu0 %v1979
        %1988 = vmatprep.subr.bf16.mxu0 0
        %1989 = vmatpush1.bf16.msra.mxu0 %v1980
        %1990 = vmatprep.subr.bf16.mxu0 0
        %1991 = vmatpush1.bf16.msra.mxu0 0
        %1992 = vmatprep.subr.bf16.mxu0 0
        %1993 = vmatpush1.bf16.msra.mxu0 0
        %1994 = vmatprep.subr.bf16.mxu0 0
        %1995 = vmatpush1.bf16.msra.mxu0 0
        %1996 = vmatprep.subr.bf16.mxu0 0
        %1997 = vmatpush1.bf16.msra.mxu0 0
        %1998 = vmatprep.subr.bf16.mxu0 0
        %1999 = vmatpush1.bf16.msra.mxu0 0
        %2000 = vmatprep.subr.bf16.mxu0 0
        %2001 = vmatpush1.bf16.msra.mxu0 0
        %2002 = vmatprep.subr.bf16.mxu0 0
        %2003 = vmatpush1.bf16.msra.mxu0 0
        %2004 = vmatprep.subr.bf16.mxu0 0
        %2005 = vmatpush1.bf16.msra.mxu0 0
        %2006 = vmatprep.subr.bf16.mxu0 0
        %2007 = vmatpush1.bf16.msra.mxu0 0
        %2008 = vmatprep.subr.bf16.mxu0 0
        %2009 = vmatpush1.bf16.msra.mxu0 0
        %2010 = vmatprep.subr.bf16.mxu0 0
        %2011 = vmatpush1.bf16.msra.mxu0 0
        %2012 = vmatprep.subr.bf16.mxu0 0
        %2013 = vmatpush1.bf16.msra.mxu0 0
        %2014 = vmatprep.subr.bf16.mxu0 0
        %2015 = vmatpush1.bf16.msra.mxu0 0
        %2016 = vmatprep.subr.bf16.mxu0 0
        %2017 = vmatpush1.bf16.msra.mxu0 0
        %2018 = vmatprep.mubr.bf16.mxu0 0
        %2019 = vmatmul.mubr.bf16.gmra.mrb[0].mxu0 %v1984
        %v2020 = vpop.f32.mrb[0].mxu0
        %v2021 = vadd.f32 0.0, %v2020
        %v2022 = vpop.f32.mrb[0].mxu0
        %v2023 = vpop.f32.mrb[0].mxu0
        %v2024 = vpop.f32.mrb[0].mxu0
        %2025 = vdwg.mxu0
        %v2026 = vadd.f32 %v580, %v2021
        %v2027 = vld [vmem:[#allocation13] sm:$0x1]
        %v2028 = vmul.f32 %v2026, %v2026
        %v2029 = vsel %vm583, %v2028, 0.0
        %2030 = vadd.xlane.f32.xlu0 %v2029
        %v2031 = vpop.xlane.xlu0 %2030
        %v2032 = vmul.f32 %v2031, %v587
        %v2033 = vadd.f32 %v2032, 1e-05
        %v2034 = vrsqrt.pop %v2033
        %v2035 = vmul.f32 %v2026, %v2034
        %v2037 = vlaneseq
        %v2038 = vshrl.u32 %v2037, 7
        %v2039 = vsub.s32 0, %v2038
        %v2040 = vrot.slane %v2027, %v2039
        %v2042 = vmul.f32 %v2035, %v2040
        %v2043 = vpack.c.bf16 %v2042, %v2042
        %v2044 = vld [vmem:[#allocation14] sm:$0xf]
        %v2045 = vld [vmem:[#allocation14 + $0x4] sm:$0xf]
        %v2046 = vld [vmem:[#allocation14 + $0x8] sm:$0xf]
        %v2047 = vld [vmem:[#allocation14 + $0xc] sm:$0xf]
        %v2052 = vunpack.c.l.b16 %v2044
        %v2053 = vunpack.c.l.b16 %v2045
        %v2054 = vunpack.c.l.b16 %v2046
        %v2055 = vunpack.c.l.b16 %v2047
        %v2056 = vpack.c.b16 %v2053, %v2052
        %v2057 = vpack.c.b16 %v2055, %v2054
        %v2061 = vsel %vm583, %v2043, 0
        %2063 = vmatprep.subr.bf16.mxu0 0
        %2064 = vmatpush1.bf16.msra.mxu0 %v2056
        %2065 = vmatprep.subr.bf16.mxu0 0
        %2066 = vmatpush1.bf16.msra.mxu0 %v2057
        %2067 = vmatprep.subr.bf16.mxu0 0
        %2068 = vmatpush1.bf16.msra.mxu0 0
        %2069 = vmatprep.subr.bf16.mxu0 0
        %2070 = vmatpush1.bf16.msra.mxu0 0
        %2071 = vmatprep.subr.bf16.mxu0 0
        %2072 = vmatpush1.bf16.msra.mxu0 0
        %2073 = vmatprep.subr.bf16.mxu0 0
        %2074 = vmatpush1.bf16.msra.mxu0 0
        %2075 = vmatprep.subr.bf16.mxu0 0
        %2076 = vmatpush1.bf16.msra.mxu0 0
        %2077 = vmatprep.subr.bf16.mxu0 0
        %2078 = vmatpush1.bf16.msra.mxu0 0
        %2079 = vmatprep.subr.bf16.mxu0 0
        %2080 = vmatpush1.bf16.msra.mxu0 0
        %2081 = vmatprep.subr.bf16.mxu0 0
        %2082 = vmatpush1.bf16.msra.mxu0 0
        %2083 = vmatprep.subr.bf16.mxu0 0
        %2084 = vmatpush1.bf16.msra.mxu0 0
        %2085 = vmatprep.subr.bf16.mxu0 0
        %2086 = vmatpush1.bf16.msra.mxu0 0
        %2087 = vmatprep.subr.bf16.mxu0 0
        %2088 = vmatpush1.bf16.msra.mxu0 0
        %2089 = vmatprep.subr.bf16.mxu0 0
        %2090 = vmatpush1.bf16.msra.mxu0 0
        %2091 = vmatprep.subr.bf16.mxu0 0
        %2092 = vmatpush1.bf16.msra.mxu0 0
        %2093 = vmatprep.subr.bf16.mxu0 0
        %2094 = vmatpush1.bf16.msra.mxu0 0
        %2095 = vmatprep.mubr.bf16.mxu0 0
        %2096 = vmatmul.mubr.bf16.gmra.mrb[0].mxu0 %v2061
        %v2097 = vpop.f32.mrb[0].mxu0
        %v2098 = vadd.f32 0.0, %v2097
        %v2099 = vpop.f32.mrb[0].mxu0
        %v2100 = vpop.f32.mrb[0].mxu0
        %v2101 = vpop.f32.mrb[0].mxu0
        %2102 = vdwg.mxu0
        %v2103 = vxor.u32 %v2098, 2147483648
        %v2104 = vmul.f32 %v2103, 1.442695
        %v2105 = vpow.pop %v2104
        %v2106 = vadd.f32 %v2105, 1.0
        %v2107 = vrcp.pop %v2106
        %v2108 = vmul.f32 1.0, %v2107
        %v2109 = vmul.f32 %v2098, %v2108
        %2111 = vrot.lane.b32.xlu0 %v2098, 64
        %v2112 = vpop.permute.xlu0 %2111
        %v2114 = vmul.f32 %v2109, %v2112
        %v2115 = vpack.c.bf16 %v2114, %v2114
        %v2116 = vld [vmem:[#allocation16] sm:$0xf]
        %v2117 = vld [vmem:[#allocation16 + $0x4] sm:$0xf]
        %v2118 = vld [vmem:[#allocation16 + $0x8] sm:$0xf]
        %v2119 = vld [vmem:[#allocation16 + $0xc] sm:$0xf]
        %v2120 = vld [vmem:[#allocation16 + $0x10] sm:$0xf]
        %v2121 = vld [vmem:[#allocation16 + $0x14] sm:$0xf]
        %v2122 = vld [vmem:[#allocation16 + $0x18] sm:$0xf]
        %v2123 = vld [vmem:[#allocation16 + $0x1c] sm:$0xf]
        %v2132 = vunpack.c.l.b16 %v2116
        %v2133 = vunpack.c.l.b16 %v2117
        %v2134 = vunpack.c.l.b16 %v2118
        %v2135 = vunpack.c.l.b16 %v2119
        %v2136 = vunpack.c.l.b16 %v2120
        %v2137 = vunpack.c.l.b16 %v2121
        %v2138 = vunpack.c.l.b16 %v2122
        %v2139 = vunpack.c.l.b16 %v2123
        %v2140 = vpack.c.b16 %v2133, %v2132
        %v2141 = vpack.c.b16 %v2135, %v2134
        %v2142 = vpack.c.b16 %v2137, %v2136
        %v2143 = vpack.c.b16 %v2139, %v2138
        %vm2148 = vcmask 523264
        %v2150 = vsel %vm2148, %v2115, 0
        %2152 = vmatprep.subr.bf16.mxu0 0
        %2153 = vmatpush1.bf16.msra.mxu0 %v2140
        %2154 = vmatprep.subr.bf16.mxu0 0
        %2155 = vmatpush1.bf16.msra.mxu0 %v2141
        %2156 = vmatprep.subr.bf16.mxu0 0
        %2157 = vmatpush1.bf16.msra.mxu0 %v2142
        %2158 = vmatprep.subr.bf16.mxu0 0
        %2159 = vmatpush1.bf16.msra.mxu0 %v2143
        %2160 = vmatprep.subr.bf16.mxu0 0
        %2161 = vmatpush1.bf16.msra.mxu0 0
        %2162 = vmatprep.subr.bf16.mxu0 0
        %2163 = vmatpush1.bf16.msra.mxu0 0
        %2164 = vmatprep.subr.bf16.mxu0 0
        %2165 = vmatpush1.bf16.msra.mxu0 0
        %2166 = vmatprep.subr.bf16.mxu0 0
        %2167 = vmatpush1.bf16.msra.mxu0 0
        %2168 = vmatprep.subr.bf16.mxu0 0
        %2169 = vmatpush1.bf16.msra.mxu0 0
        %2170 = vmatprep.subr.bf16.mxu0 0
        %2171 = vmatpush1.bf16.msra.mxu0 0
        %2172 = vmatprep.subr.bf16.mxu0 0
        %2173 = vmatpush1.bf16.msra.mxu0 0
        %2174 = vmatprep.subr.bf16.mxu0 0
        %2175 = vmatpush1.bf16.msra.mxu0 0
        %2176 = vmatprep.subr.bf16.mxu0 0
        %2177 = vmatpush1.bf16.msra.mxu0 0
        %2178 = vmatprep.subr.bf16.mxu0 0
        %2179 = vmatpush1.bf16.msra.mxu0 0
        %2180 = vmatprep.subr.bf16.mxu0 0
        %2181 = vmatpush1.bf16.msra.mxu0 0
        %2182 = vmatprep.subr.bf16.mxu0 0
        %2183 = vmatpush1.bf16.msra.mxu0 0
        %2184 = vmatprep.mubr.bf16.mxu0 0
        %2185 = vmatmul.mubr.bf16.gmra.mrb[0].mxu0 %v2150
        %v2186 = vpop.f32.mrb[0].mxu0
        %v2187 = vadd.f32 0.0, %v2186
        %v2188 = vpop.f32.mrb[0].mxu0
        %v2189 = vpop.f32.mrb[0].mxu0
        %v2190 = vpop.f32.mrb[0].mxu0
        %2191 = vdwg.mxu0
        %v2192 = vadd.f32 %v2026, %v2187
        %2193 = vst.msk [vmem:[%s577] sm:$0xff] %vm583, %v2192
        %s2194 = sand.u32 %s300, 1
        %s2195 = scalar_lea.sflag [#allocation4], %s2194
        %s2196 = sand.u32 %s300, 1
        %s2197 = smul.addr %s2196, 8
        %s2198 = scalar_lea.vmem [#allocation20], %s2197
        // Predicated region
        $region116: #{tpu_custom_call.1} parent=63 // pred_check
          %p2199 = pneg %p310
        $region117: #{tpu_custom_call.1} parent=63 // pred_check_branch
          %2201 = sbr.rel (%p2199) target = $region119
        $region118: #{tpu_custom_call.1} parent=63 // pred_region
          %s2203 = ssub.s32 128, 128
          %2204 = vsyncadd %s2195, %s2203
          %s2205 = sadd.s32 %s40, %s39
          %s2206 = smul.addr %s2205, 128
          %s2207 = scalar_lea.hbm %s11, %s2206
          %s2209 = sshll.u32 %s2198, 4
          %s2210 = int_to_ptr.vmem [resolvable:$true] %s2209
          %2212 = dma.vmem_to_hbm [thread:$0]  %s2210, 128, %s2207, %s2195
        $region119: #{tpu_custom_call.1} parent=63 // pred_fallthru
          _
      $region64: #{tpu_custom_call.1} parent=5 // pred_fallthru
        _
      %p2213 = scmp.le.s32.totalorder 2, %s30
      // Predicated region
      $region120: #{tpu_custom_call.1} parent=5 // pred_check
        %p2214 = pneg %p2213
      $region121: #{tpu_custom_call.1} parent=5 // pred_check_branch
        %2216 = sbr.rel (%p2214) target = $region123
      $region122: #{tpu_custom_call.1} parent=5 // pred_region
        %s2217 = ssub.s32 %s30, 2
        // Predicated region
        $region124: #{tpu_custom_call.1} parent=122 // pred_check
          %p2218 = pneg %p316
        $region125: #{tpu_custom_call.1} parent=122 // pred_check_branch
          %2220 = sbr.rel (%p2218) target = $region127
        $region126: #{tpu_custom_call.1} parent=122 // pred_region
          %s2221 = sand.u32 %s301, 1
          %s2222 = scalar_lea.sflag [#allocation4], %s2221
          %s2223 = sand.u32 %s301, 1
          %s2224 = smul.addr %s2223, 8
          %s2225 = scalar_lea.vmem [#allocation20], %s2224
          %2226 = dma.done %s2222, 128
        $region127: #{tpu_custom_call.1} parent=122 // pred_fallthru
          _
      $region123: #{tpu_custom_call.1} parent=5 // pred_fallthru
        _
    $region6: #{tpu_custom_call.1} parent=1 // loop_footer
      %s34 = sadd.s32 1, %s30
    $region7: #{tpu_custom_call.1} parent=1 // loop_footer_branch
      %29 = sbr.rel target = $region3
    $region8: #{tpu_custom_call.1} parent=1 // loop_exit
      _
    %2227 = vsyncpa [#allocation3], 1
    %s2228 = scalar_lea.sflag [#allocation3], 1
    %2229 = vsyncpa %s2228, 1
    %2230 = vsyncpa [#allocation6], 1
    %s2231 = scalar_lea.sflag [#allocation6], 1
    %2232 = vsyncpa %s2231, 1
    %2233 = vsyncpa [#allocation9], 1
    %2234 = vsyncpa [#allocation12], 1
    %2235 = vsyncpa [#allocation15], 1
    %2236 = vsyncpa [#allocation18], 1
    %2237 = vsyncpa [#allocation4], 1
    %s2238 = scalar_lea.sflag [#allocation4], 1
    %2239 = vsyncpa %s2238, 1

</llo_original>
